<compile_context>
chip_gen: v7x
topology: tpu7x:2x2x1
jax: 0.10.0
libtpu: 0.0.40
codegen_flags: <defaults>
</compile_context>

<pallas_src>
import functools

import jax
import jax.numpy as jnp
from jax.experimental import pallas as pl
from jax.experimental.pallas import tpu as pltpu


# (kernel_size, stride, out_channels) for the three Nature-CNN convs.
CONV_CFG = ((8, 4, 32), (4, 2, 64), (3, 1, 64))
FINAL_LAYER = 512

_VMEM_LIMIT = 32 * 1024 * 1024     # fits v5e/v6e/v7x scoped VMEM comfortably
_ROW_ALIGN = 16                    # bf16 sublane tile -> layout-trivial reshapes
_CONV_BLOCK_BATCH = 8              # images per conv grid step
_HEAD_BLOCK_M = 256                # row tile for the fused MLP head


def _cdiv(a, b):
    return (a + b - 1) // b


def _round_up(a, m):
    return _cdiv(a, m) * m


# ---------------------------------------------------------------------------
# Conv kernel: per batch tile, accumulate over the (KH/s)*(KW/s) taps of the
# space-to-depth'd input.  out = relu(sum_t patch_t @ w_t + b).
# ---------------------------------------------------------------------------
def _conv_tap_matmul_kernel(x_ref, w_ref, b_ref, o_ref, *, taps, oh, ow_p, relu):
    tb = x_ref.shape[0]
    cin = x_ref.shape[3]
    rows = tb * oh * ow_p
    acc = jnp.zeros((rows, o_ref.shape[1]), jnp.float32)
    for t, (ph, pw) in enumerate(taps):            # static unroll (<= 9 taps)
        patch = x_ref[:, pl.ds(ph, oh), pl.ds(pw, ow_p), :]   # (tb, oh, ow_p, cin)
        lhs = patch.reshape(rows, cin)             # ow_p % 16 == 0 -> trivial
        acc = acc + jnp.dot(lhs, w_ref[t], preferred_element_type=jnp.float32)
    acc = acc + b_ref[...]                         # (1, cout) broadcast, f32
    if relu:
        acc = jnp.maximum(acc, 0.0)
    o_ref[...] = acc.astype(o_ref.dtype)


def conv2d_pallas(x, w_taps, b_row, *, kernel, stride, relu=True,
                  block_batch=_CONV_BLOCK_BATCH, row_align=_ROW_ALIGN):
    """x: (B,H,W,Cin) bf16 NHWC. w_taps: (taps, s*s*Cin, Cout) bf16.
    b_row: (1, Cout) f32.  Returns (B, OH, OW, Cout) bf16."""
    B, H, W, _ = x.shape
    s = stride
    OH = (H - kernel) // s + 1
    OW = (W - kernel) // s + 1
    assert OH >= 1 and OW >= 1, (H, W, kernel, s)
    kh2, kw2 = kernel // s, kernel // s

    # Crop to the region the conv actually reads, then space-to-depth by the
    # stride so the conv becomes stride-1 with a (kh2 x kw2) kernel.
    hu, wu = (OH - 1) * s + kernel, (OW - 1) * s + kernel
    x = x[:, :hu, :wu, :]
    if s > 1:
        hs, ws = hu // s, wu // s
        cin0 = x.shape[-1]
        x = x.reshape(B, hs, s, ws, s, cin0)
        x = jnp.transpose(x, (0, 1, 3, 2, 4, 5)).reshape(B, hs, ws, s * s * cin0)
    cin2 = x.shape[-1]
    taps = tuple((ph, pw) for ph in range(kh2) for pw in range(kw2))
    assert w_taps.shape[0] == len(taps) and w_taps.shape[1] == cin2, w_taps.shape
    cout = w_taps.shape[2]

    # Pad the output-width to a multiple of the sublane tile so the in-kernel
    # reshape (tb, OH, ow_p, cin) -> (rows, cin) is layout trivial.  Pad the
    # input W accordingly (zeros); the extra columns are sliced off at the end.
    ow_p = _round_up(OW, row_align)
    ws_need = ow_p + kw2 - 1
    if ws_need > x.shape[2]:
        x = jnp.pad(x, ((0, 0), (0, 0), (0, ws_need - x.shape[2]), (0, 0)))

    # Batch tiling (grid axis, double-buffered, split across TCs on v7x).
    tb = min(block_batch, B)
    bp = _cdiv(B, tb) * tb
    if bp > B:
        x = jnp.pad(x, ((0, bp - B), (0, 0), (0, 0), (0, 0)))
    hs_cur, ws_cur = x.shape[1], x.shape[2]
    rows_blk = tb * OH * ow_p

    kern = functools.partial(_conv_tap_matmul_kernel, taps=taps, oh=OH,
                             ow_p=ow_p, relu=relu)
    flops = 2 * bp * OH * ow_p * cout * (len(taps) * cin2)
    bytes_accessed = (x.size * 2 + w_taps.size * 2 + b_row.size * 4
                      + bp * OH * ow_p * cout * 2)

    out = pl.pallas_call(
        kern,
        out_shape=jax.ShapeDtypeStruct((bp * OH * ow_p, cout), jnp.bfloat16),
        grid=(bp // tb,),
        in_specs=[
            pl.BlockSpec((tb, hs_cur, ws_cur, cin2), lambda i: (i, 0, 0, 0)),
            pl.BlockSpec(w_taps.shape, lambda i: (0, 0, 0)),   # resident weights
            pl.BlockSpec(b_row.shape, lambda i: (0, 0)),       # resident bias
        ],
        out_specs=pl.BlockSpec((rows_blk, cout), lambda i: (i, 0)),
        compiler_params=pltpu.CompilerParams(
            dimension_semantics=("parallel",),
            vmem_limit_bytes=_VMEM_LIMIT),
        cost_estimate=pl.CostEstimate(flops=int(flops), transcendentals=0,
                                      bytes_accessed=int(bytes_accessed)),
    )(x, w_taps, b_row)

    out = out.reshape(bp, OH, ow_p, cout)
    return out[:B, :, :OW, :]


# ---------------------------------------------------------------------------
# Fused MLP head: q = relu(x @ wfc + bfc) @ wq + bq   (one pallas_call)
# ---------------------------------------------------------------------------
def _mlp_head_kernel(x_ref, wf_ref, bf_ref, wq_ref, bq_ref, o_ref):
    h = jnp.dot(x_ref[...], wf_ref[...], preferred_element_type=jnp.float32)
    h = jnp.maximum(h + bf_ref[...], 0.0)
    q = jnp.dot(h.astype(wq_ref.dtype), wq_ref[...],
                preferred_element_type=jnp.float32)
    o_ref[...] = (q + bq_ref[...]).astype(o_ref.dtype)


def mlp_head_pallas(x, wf, bf, wq, bq, *, block_m=_HEAD_BLOCK_M):
    """x: (B, K) bf16; wf: (K, F) bf16; bf: (1, F) f32; wq: (F, Ap) bf16;
    bq: (1, Ap) f32.  Returns (B, Ap) f32 (Ap is the 128-padded action dim)."""
    B, K = x.shape
    F = wf.shape[1]
    Ap = wq.shape[1]
    # Row tile: multiple of 8, capped so double-buffered tiles stay well under
    # v7x's 64 MiB VMEM even with the full (K, F) weight resident.
    tm = min(block_m, _round_up(B, 8))
    mp = _cdiv(B, tm) * tm
    if mp > B:
        x = jnp.pad(x, ((0, mp - B), (0, 0)))

    flops = 2 * mp * (K * F + F * Ap)
    bytes_accessed = mp * K * 2 + K * F * 2 + F * Ap * 2 + mp * Ap * 4

    out = pl.pallas_call(
        _mlp_head_kernel,
        out_shape=jax.ShapeDtypeStruct((mp, Ap), jnp.float32),
        grid=(mp // tm,),
        in_specs=[
            pl.BlockSpec((tm, K), lambda i: (i, 0)),
            pl.BlockSpec((K, F), lambda i: (0, 0)),
            pl.BlockSpec((1, F), lambda i: (0, 0)),
            pl.BlockSpec((F, Ap), lambda i: (0, 0)),
            pl.BlockSpec((1, Ap), lambda i: (0, 0)),
        ],
        out_specs=pl.BlockSpec((tm, Ap), lambda i: (i, 0)),
        compiler_params=pltpu.CompilerParams(
            dimension_semantics=("parallel",),
            vmem_limit_bytes=_VMEM_LIMIT),
        cost_estimate=pl.CostEstimate(flops=int(flops), transcendentals=0,
                                      bytes_accessed=int(bytes_accessed)),
    )(x, wf, bf, wq, bq)
    return out[:B]


# ---------------------------------------------------------------------------
# Parameter prep: PyTorch-layout params -> kernel-ready layout (done once).
# ---------------------------------------------------------------------------
def _prep_conv_weight(w_oihw, b, stride):
    """(Cout,Cin,KH,KW) -> (taps, s*s*Cin, Cout) bf16 matching the
    space-to-depth'd input's (rh, rw, cin) channel ordering."""
    cout, cin, kh, kw = w_oihw.shape
    s = stride
    assert kh % s == 0 and kw % s == 0
    kh2, kw2 = kh // s, kw // s
    w = jnp.transpose(w_oihw, (2, 3, 1, 0))                  # (KH, KW, Cin, Cout)
    w = w.reshape(kh2, s, kw2, s, cin, cout)
    w = jnp.transpose(w, (0, 2, 1, 3, 4, 5))                 # (kh2,kw2,s,s,Cin,Cout)
    w = w.reshape(kh2 * kw2, s * s * cin, cout)
    return w.astype(jnp.bfloat16), b.reshape(1, cout).astype(jnp.float32)


def prepare_params(params):
    """One-time conversion to MXU-friendly bf16 layouts (arrays only)."""
    prep = {}
    for li, (_, stride, _) in enumerate(CONV_CFG, start=1):
        w, b = _prep_conv_weight(params[f"w{li}"], params[f"b{li}"], stride)
        prep[f"cw{li}"] = w
        prep[f"cb{li}"] = b
    # wfc rows are already in NHWC-flatten (h, w, c) order -- see init_params.
    # When importing PyTorch weights, permute the rows once from (c, h, w).
    prep["wfc"] = params["wfc"].astype(jnp.bfloat16)
    prep["bfc"] = params["bfc"].reshape(1, -1).astype(jnp.float32)
    num_actions = params["bq"].shape[0]
    ap = _round_up(num_actions, 128)                         # lane-dense Q head
    prep["wq"] = jnp.pad(params["wq"], ((0, 0), (0, ap - num_actions))
                         ).astype(jnp.bfloat16)
    prep["bq"] = jnp.pad(params["bq"], (0, ap - num_actions)
                         ).reshape(1, ap).astype(jnp.float32)
    return prep


# ---------------------------------------------------------------------------
# Network forward (nature_cnn + final Linear to num_actions)
# ---------------------------------------------------------------------------
def network_forward(x_nchw, prep, *, num_actions):
    x = jnp.transpose(x_nchw, (0, 2, 3, 1)).astype(jnp.bfloat16)   # NCHW -> NHWC
    for li, (ksize, stride, _) in enumerate(CONV_CFG, start=1):
        x = conv2d_pallas(x, prep[f"cw{li}"], prep[f"cb{li}"],
                          kernel=ksize, stride=stride, relu=True)
    xf = x.reshape(x.shape[0], -1)          # NHWC flatten (matches wfc row order)
    q = mlp_head_pallas(xf, prep["wfc"], prep["bfc"], prep["wq"], prep["bq"])
    return q[:, :num_actions]


# ---------------------------------------------------------------------------
# Deterministic initialisation (He-style scaling) + pure-JAX reference.
# ---------------------------------------------------------------------------
def init_params(key, in_channels, n_flatten, final_layer=FINAL_LAYER,
                num_actions=6):
    ks = jax.random.split(key, 8)

    def he(k, shape, fan_in):
        return jax.random.normal(k, shape, jnp.float32) * jnp.sqrt(2.0 / fan_in)

    params, cin = {}, in_channels
    for li, (ksize, _, depth) in enumerate(CONV_CFG, start=1):
        params[f"w{li}"] = he(ks[li - 1], (depth, cin, ksize, ksize),
                              cin * ksize * ksize)
        params[f"b{li}"] = jnp.zeros((depth,), jnp.float32)
        cin = depth
    params["wfc"] = he(ks[5], (n_flatten, final_layer), n_flatten)
    params["bfc"] = jnp.zeros((final_layer,), jnp.float32)
    params["wq"] = he(ks[6], (final_layer, num_actions), final_layer)
    params["bq"] = jnp.zeros((num_actions,), jnp.float32)
    return params


def reference_forward(x_nchw, params):
    """Pure-JAX f32 reference with identical semantics (for validation)."""
    x = jnp.transpose(x_nchw, (0, 2, 3, 1))
    for li, (_, stride, _) in enumerate(CONV_CFG, start=1):
        w = jnp.transpose(params[f"w{li}"], (2, 3, 1, 0))    # HWIO
        x = jax.lax.conv_general_dilated(
            x, w, (stride, stride), "VALID",
            dimension_numbers=("NHWC", "HWIO", "NHWC"))
        x = jax.nn.relu(x + params[f"b{li}"])
    xf = x.reshape(x.shape[0], -1)
    h = jax.nn.relu(xf @ params["wfc"] + params["bfc"])
    return h @ params["wq"] + params["bq"]


# TODO(synk): env / FrameStack / replay buffer / act() (argmax on host) are
# training-loop glue, not part of the forward pass, and are not implemented.

if __name__ == "__main__":
    # Small but structurally valid shapes for the Nature CNN:
    # 36 -> conv(8,s4) -> 8 -> conv(4,s2) -> 3 -> conv(3,s1) -> 1
    batch, channels, spatial = 2, 4, 36
    num_actions = 6

    h = spatial
    for ksize, stride, depth in CONV_CFG:
        h = (h - ksize) // stride + 1
    n_flatten = CONV_CFG[-1][2] * h * h     # mirrors the torch n_flatten probe

    key = jax.random.PRNGKey(0)
    k_x, k_p = jax.random.split(key)
    x = jax.random.normal(k_x, (batch, channels, spatial, spatial), jnp.float32)
    params = init_params(k_p, channels, n_flatten, num_actions=num_actions)
    prep = prepare_params(params)

    fwd = jax.jit(network_forward, static_argnames="num_actions")
    q_values = fwd(x, prep, num_actions=num_actions)
    q_values = jax.block_until_ready(q_values)

    assert q_values.shape == (batch, num_actions), q_values.shape
    assert q_values.dtype == jnp.float32
    assert bool(jnp.all(jnp.isfinite(q_values)))

    # bf16 MXU inputs -> compare against the f32 reference with a loose tol.
    q_ref = reference_forward(x, params)
    assert bool(jnp.allclose(q_values, q_ref, rtol=5e-2, atol=2e-1)), (
        q_values, q_ref)

    print("KERNEL_OK")
</pallas_src>

<mosaic_0001>
module attributes {stable_mosaic.version = 11 : i64} {
  func.func @_conv_tap_matmul_kernel(%arg0: i32, %arg1: memref<2x9x17x64xbf16, #tpu.memory_space<vmem>>, %arg2: memref<4x64x32xbf16, #tpu.memory_space<vmem>>, %arg3: memref<1x32xf32, #tpu.memory_space<vmem>>, %arg4: memref<256x32xbf16, #tpu.memory_space<vmem>>) attributes {dimension_semantics = [#tpu.dimension_semantics<parallel>], iteration_bounds = array<i64: 1>, scalar_prefetch = 0 : i64, scratch_operands = 0 : i64, tpu.core_type = #tpu.core_type<tc>, window_params = [{transform_indices = @transform_0, window_bounds = array<i64: 2, 9, 17, 64>}, {pipeline_mode = #tpu.pipeline_mode<synchronous>, transform_indices = @transform_1, window_bounds = array<i64: 4, 64, 32>}, {pipeline_mode = #tpu.pipeline_mode<synchronous>, transform_indices = @transform_2, window_bounds = array<i64: 1, 32>}, {transform_indices = @transform_3, window_bounds = array<i64: 256, 32>}]} {
    %cst = arith.constant 0.000000e+00 : f32
    %0 = vector.broadcast %cst : f32 to vector<256x32xf32>
    %c0 = arith.constant 0 : index
    %c0_0 = arith.constant 0 : index
    %c0_1 = arith.constant 0 : index
    %c0_2 = arith.constant 0 : index
    %1 = vector.load %arg1[%c0, %c0_0, %c0_1, %c0_2] : memref<2x9x17x64xbf16, #tpu.memory_space<vmem>>, vector<2x8x16x64xbf16>
    %2 = vector.shape_cast %1 : vector<2x8x16x64xbf16> to vector<256x64xbf16>
    %c0_3 = arith.constant 0 : index
    %c0_4 = arith.constant 0 : index
    %c0_5 = arith.constant 0 : index
    %3 = vector.load %arg2[%c0_3, %c0_4, %c0_5] : memref<4x64x32xbf16, #tpu.memory_space<vmem>>, vector<1x64x32xbf16>
    %4 = vector.shape_cast %3 : vector<1x64x32xbf16> to vector<64x32xbf16>
    %cst_6 = arith.constant dense<0.000000e+00> : vector<256x32xf32>
    %5 = tpu.matmul %2, %4, %cst_6 {dimension_numbers = #tpu.dot_dimension_numbers<[1], [0], [0], [1], [0, 0, 1, 1], [], []>} : vector<256x64xbf16>, vector<64x32xbf16>, vector<256x32xf32> -> vector<256x32xf32>
    %6 = arith.addf %0, %5 : vector<256x32xf32>
    %c0_7 = arith.constant 0 : index
    %c0_8 = arith.constant 0 : index
    %c1 = arith.constant 1 : index
    %c0_9 = arith.constant 0 : index
    %7 = vector.load %arg1[%c0_7, %c0_8, %c1, %c0_9] : memref<2x9x17x64xbf16, #tpu.memory_space<vmem>>, vector<2x8x16x64xbf16>
    %8 = vector.shape_cast %7 : vector<2x8x16x64xbf16> to vector<256x64xbf16>
    %c1_10 = arith.constant 1 : index
    %c0_11 = arith.constant 0 : index
    %c0_12 = arith.constant 0 : index
    %9 = vector.load %arg2[%c1_10, %c0_11, %c0_12] : memref<4x64x32xbf16, #tpu.memory_space<vmem>>, vector<1x64x32xbf16>
    %10 = vector.shape_cast %9 : vector<1x64x32xbf16> to vector<64x32xbf16>
    %cst_13 = arith.constant dense<0.000000e+00> : vector<256x32xf32>
    %11 = tpu.matmul %8, %10, %cst_13 {dimension_numbers = #tpu.dot_dimension_numbers<[1], [0], [0], [1], [0, 0, 1, 1], [], []>} : vector<256x64xbf16>, vector<64x32xbf16>, vector<256x32xf32> -> vector<256x32xf32>
    %12 = arith.addf %6, %11 : vector<256x32xf32>
    %c0_14 = arith.constant 0 : index
    %c1_15 = arith.constant 1 : index
    %c0_16 = arith.constant 0 : index
    %c0_17 = arith.constant 0 : index
    %13 = vector.load %arg1[%c0_14, %c1_15, %c0_16, %c0_17] : memref<2x9x17x64xbf16, #tpu.memory_space<vmem>>, vector<2x8x16x64xbf16>
    %14 = vector.shape_cast %13 : vector<2x8x16x64xbf16> to vector<256x64xbf16>
    %c2 = arith.constant 2 : index
    %c0_18 = arith.constant 0 : index
    %c0_19 = arith.constant 0 : index
    %15 = vector.load %arg2[%c2, %c0_18, %c0_19] : memref<4x64x32xbf16, #tpu.memory_space<vmem>>, vector<1x64x32xbf16>
    %16 = vector.shape_cast %15 : vector<1x64x32xbf16> to vector<64x32xbf16>
    %cst_20 = arith.constant dense<0.000000e+00> : vector<256x32xf32>
    %17 = tpu.matmul %14, %16, %cst_20 {dimension_numbers = #tpu.dot_dimension_numbers<[1], [0], [0], [1], [0, 0, 1, 1], [], []>} : vector<256x64xbf16>, vector<64x32xbf16>, vector<256x32xf32> -> vector<256x32xf32>
    %18 = arith.addf %12, %17 : vector<256x32xf32>
    %c0_21 = arith.constant 0 : index
    %c1_22 = arith.constant 1 : index
    %c1_23 = arith.constant 1 : index
    %c0_24 = arith.constant 0 : index
    %19 = vector.load %arg1[%c0_21, %c1_22, %c1_23, %c0_24] : memref<2x9x17x64xbf16, #tpu.memory_space<vmem>>, vector<2x8x16x64xbf16>
    %20 = vector.shape_cast %19 : vector<2x8x16x64xbf16> to vector<256x64xbf16>
    %c3 = arith.constant 3 : index
    %c0_25 = arith.constant 0 : index
    %c0_26 = arith.constant 0 : index
    %21 = vector.load %arg2[%c3, %c0_25, %c0_26] : memref<4x64x32xbf16, #tpu.memory_space<vmem>>, vector<1x64x32xbf16>
    %22 = vector.shape_cast %21 : vector<1x64x32xbf16> to vector<64x32xbf16>
    %cst_27 = arith.constant dense<0.000000e+00> : vector<256x32xf32>
    %23 = tpu.matmul %20, %22, %cst_27 {dimension_numbers = #tpu.dot_dimension_numbers<[1], [0], [0], [1], [0, 0, 1, 1], [], []>} : vector<256x64xbf16>, vector<64x32xbf16>, vector<256x32xf32> -> vector<256x32xf32>
    %24 = arith.addf %18, %23 : vector<256x32xf32>
    %c0_28 = arith.constant 0 : index
    %c0_29 = arith.constant 0 : index
    %25 = vector.load %arg3[%c0_28, %c0_29] : memref<1x32xf32, #tpu.memory_space<vmem>>, vector<1x32xf32>
    %26 = vector.broadcast %25 : vector<1x32xf32> to vector<256x32xf32>
    %27 = arith.addf %24, %26 : vector<256x32xf32>
    %cst_30 = arith.constant 0.000000e+00 : f32
    %28 = vector.broadcast %cst_30 : f32 to vector<256x32xf32>
    %29 = arith.maximumf %27, %28 : vector<256x32xf32>
    %30 = arith.truncf %29 : vector<256x32xf32> to vector<256x32xbf16>
    %c0_31 = arith.constant 0 : index
    %c0_32 = arith.constant 0 : index
    %31 = vector.load %arg4[%c0_31, %c0_32] : memref<256x32xbf16, #tpu.memory_space<vmem>>, vector<256x32xbf16>
    tpu.vector_store %arg4[%c0_31, %c0_32], %30 {strides = array<i32>} : memref<256x32xbf16, #tpu.memory_space<vmem>>, vector<256x32xbf16>,
    return
  }
  func.func @transform_0(%arg0: i32) -> (i32, i32, i32, i32) {
    %c0_i32 = arith.constant 0 : i32
    %c0_i32_0 = arith.constant 0 : i32
    %c0_i32_1 = arith.constant 0 : i32
    %c0_i32_2 = arith.constant 0 : i32
    return %arg0, %c0_i32, %c0_i32_0, %c0_i32_1 : i32, i32, i32, i32
  }
  func.func @transform_1(%arg0: i32) -> (i32, i32, i32) {
    %c0_i32 = arith.constant 0 : i32
    %c0_i32_0 = arith.constant 0 : i32
    %c0_i32_1 = arith.constant 0 : i32
    %c0_i32_2 = arith.constant 0 : i32
    return %c0_i32, %c0_i32_0, %c0_i32_1 : i32, i32, i32
  }
  func.func @transform_2(%arg0: i32) -> (i32, i32) {
    %c0_i32 = arith.constant 0 : i32
    %c0_i32_0 = arith.constant 0 : i32
    %c0_i32_1 = arith.constant 0 : i32
    return %c0_i32, %c0_i32_0 : i32, i32
  }
  func.func @transform_3(%arg0: i32) -> (i32, i32) {
    %c0_i32 = arith.constant 0 : i32
    %c0_i32_0 = arith.constant 0 : i32
    return %arg0, %c0_i32 : i32, i32
  }
}

module attributes {stable_mosaic.version = 11 : i64} {
  func.func @_conv_tap_matmul_kernel(%arg0: i32, %arg1: memref<2x4x17x128xbf16, #tpu.memory_space<vmem>>, %arg2: memref<4x128x64xbf16, #tpu.memory_space<vmem>>, %arg3: memref<1x64xf32, #tpu.memory_space<vmem>>, %arg4: memref<96x64xbf16, #tpu.memory_space<vmem>>) attributes {dimension_semantics = [#tpu.dimension_semantics<parallel>], iteration_bounds = array<i64: 1>, scalar_prefetch = 0 : i64, scratch_operands = 0 : i64, tpu.core_type = #tpu.core_type<tc>, window_params = [{transform_indices = @transform_0, window_bounds = array<i64: 2, 4, 17, 128>}, {pipeline_mode = #tpu.pipeline_mode<synchronous>, transform_indices = @transform_1, window_bounds = array<i64: 4, 128, 64>}, {pipeline_mode = #tpu.pipeline_mode<synchronous>, transform_indices = @transform_2, window_bounds = array<i64: 1, 64>}, {transform_indices = @transform_3, window_bounds = array<i64: 96, 64>}]} {
    %cst = arith.constant 0.000000e+00 : f32
    %0 = vector.broadcast %cst : f32 to vector<96x64xf32>
    %c0 = arith.constant 0 : index
    %c0_0 = arith.constant 0 : index
    %c0_1 = arith.constant 0 : index
    %c0_2 = arith.constant 0 : index
    %1 = vector.load %arg1[%c0, %c0_0, %c0_1, %c0_2] : memref<2x4x17x128xbf16, #tpu.memory_space<vmem>>, vector<2x3x16x128xbf16>
    %2 = vector.shape_cast %1 : vector<2x3x16x128xbf16> to vector<96x128xbf16>
    %c0_3 = arith.constant 0 : index
    %c0_4 = arith.constant 0 : index
    %c0_5 = arith.constant 0 : index
    %3 = vector.load %arg2[%c0_3, %c0_4, %c0_5] : memref<4x128x64xbf16, #tpu.memory_space<vmem>>, vector<1x128x64xbf16>
    %4 = vector.shape_cast %3 : vector<1x128x64xbf16> to vector<128x64xbf16>
    %cst_6 = arith.constant dense<0.000000e+00> : vector<96x64xf32>
    %5 = tpu.matmul %2, %4, %cst_6 {dimension_numbers = #tpu.dot_dimension_numbers<[1], [0], [0], [1], [0, 0, 1, 1], [], []>} : vector<96x128xbf16>, vector<128x64xbf16>, vector<96x64xf32> -> vector<96x64xf32>
    %6 = arith.addf %0, %5 : vector<96x64xf32>
    %c0_7 = arith.constant 0 : index
    %c0_8 = arith.constant 0 : index
    %c1 = arith.constant 1 : index
    %c0_9 = arith.constant 0 : index
    %7 = vector.load %arg1[%c0_7, %c0_8, %c1, %c0_9] : memref<2x4x17x128xbf16, #tpu.memory_space<vmem>>, vector<2x3x16x128xbf16>
    %8 = vector.shape_cast %7 : vector<2x3x16x128xbf16> to vector<96x128xbf16>
    %c1_10 = arith.constant 1 : index
    %c0_11 = arith.constant 0 : index
    %c0_12 = arith.constant 0 : index
    %9 = vector.load %arg2[%c1_10, %c0_11, %c0_12] : memref<4x128x64xbf16, #tpu.memory_space<vmem>>, vector<1x128x64xbf16>
    %10 = vector.shape_cast %9 : vector<1x128x64xbf16> to vector<128x64xbf16>
    %cst_13 = arith.constant dense<0.000000e+00> : vector<96x64xf32>
    %11 = tpu.matmul %8, %10, %cst_13 {dimension_numbers = #tpu.dot_dimension_numbers<[1], [0], [0], [1], [0, 0, 1, 1], [], []>} : vector<96x128xbf16>, vector<128x64xbf16>, vector<96x64xf32> -> vector<96x64xf32>
    %12 = arith.addf %6, %11 : vector<96x64xf32>
    %c0_14 = arith.constant 0 : index
    %c1_15 = arith.constant 1 : index
    %c0_16 = arith.constant 0 : index
    %c0_17 = arith.constant 0 : index
    %13 = vector.load %arg1[%c0_14, %c1_15, %c0_16, %c0_17] : memref<2x4x17x128xbf16, #tpu.memory_space<vmem>>, vector<2x3x16x128xbf16>
    %14 = vector.shape_cast %13 : vector<2x3x16x128xbf16> to vector<96x128xbf16>
    %c2 = arith.constant 2 : index
    %c0_18 = arith.constant 0 : index
    %c0_19 = arith.constant 0 : index
    %15 = vector.load %arg2[%c2, %c0_18, %c0_19] : memref<4x128x64xbf16, #tpu.memory_space<vmem>>, vector<1x128x64xbf16>
    %16 = vector.shape_cast %15 : vector<1x128x64xbf16> to vector<128x64xbf16>
    %cst_20 = arith.constant dense<0.000000e+00> : vector<96x64xf32>
    %17 = tpu.matmul %14, %16, %cst_20 {dimension_numbers = #tpu.dot_dimension_numbers<[1], [0], [0], [1], [0, 0, 1, 1], [], []>} : vector<96x128xbf16>, vector<128x64xbf16>, vector<96x64xf32> -> vector<96x64xf32>
    %18 = arith.addf %12, %17 : vector<96x64xf32>
    %c0_21 = arith.constant 0 : index
    %c1_22 = arith.constant 1 : index
    %c1_23 = arith.constant 1 : index
    %c0_24 = arith.constant 0 : index
    %19 = vector.load %arg1[%c0_21, %c1_22, %c1_23, %c0_24] : memref<2x4x17x128xbf16, #tpu.memory_space<vmem>>, vector<2x3x16x128xbf16>
    %20 = vector.shape_cast %19 : vector<2x3x16x128xbf16> to vector<96x128xbf16>
    %c3 = arith.constant 3 : index
    %c0_25 = arith.constant 0 : index
    %c0_26 = arith.constant 0 : index
    %21 = vector.load %arg2[%c3, %c0_25, %c0_26] : memref<4x128x64xbf16, #tpu.memory_space<vmem>>, vector<1x128x64xbf16>
    %22 = vector.shape_cast %21 : vector<1x128x64xbf16> to vector<128x64xbf16>
    %cst_27 = arith.constant dense<0.000000e+00> : vector<96x64xf32>
    %23 = tpu.matmul %20, %22, %cst_27 {dimension_numbers = #tpu.dot_dimension_numbers<[1], [0], [0], [1], [0, 0, 1, 1], [], []>} : vector<96x128xbf16>, vector<128x64xbf16>, vector<96x64xf32> -> vector<96x64xf32>
    %24 = arith.addf %18, %23 : vector<96x64xf32>
    %c0_28 = arith.constant 0 : index
    %c0_29 = arith.constant 0 : index
    %25 = vector.load %arg3[%c0_28, %c0_29] : memref<1x64xf32, #tpu.memory_space<vmem>>, vector<1x64xf32>
    %26 = vector.broadcast %25 : vector<1x64xf32> to vector<96x64xf32>
    %27 = arith.addf %24, %26 : vector<96x64xf32>
    %cst_30 = arith.constant 0.000000e+00 : f32
    %28 = vector.broadcast %cst_30 : f32 to vector<96x64xf32>
    %29 = arith.maximumf %27, %28 : vector<96x64xf32>
    %30 = arith.truncf %29 : vector<96x64xf32> to vector<96x64xbf16>
    %c0_31 = arith.constant 0 : index
    %c0_32 = arith.constant 0 : index
    %31 = vector.load %arg4[%c0_31, %c0_32] : memref<96x64xbf16, #tpu.memory_space<vmem>>, vector<96x64xbf16>
    tpu.vector_store %arg4[%c0_31, %c0_32], %30 {strides = array<i32>} : memref<96x64xbf16, #tpu.memory_space<vmem>>, vector<96x64xbf16>,
    return
  }
  func.func @transform_0(%arg0: i32) -> (i32, i32, i32, i32) {
    %c0_i32 = arith.constant 0 : i32
    %c0_i32_0 = arith.constant 0 : i32
    %c0_i32_1 = arith.constant 0 : i32
    %c0_i32_2 = arith.constant 0 : i32
    return %arg0, %c0_i32, %c0_i32_0, %c0_i32_1 : i32, i32, i32, i32
  }
  func.func @transform_1(%arg0: i32) -> (i32, i32, i32) {
    %c0_i32 = arith.constant 0 : i32
    %c0_i32_0 = arith.constant 0 : i32
    %c0_i32_1 = arith.constant 0 : i32
    %c0_i32_2 = arith.constant 0 : i32
    return %c0_i32, %c0_i32_0, %c0_i32_1 : i32, i32, i32
  }
  func.func @transform_2(%arg0: i32) -> (i32, i32) {
    %c0_i32 = arith.constant 0 : i32
    %c0_i32_0 = arith.constant 0 : i32
    %c0_i32_1 = arith.constant 0 : i32
    return %c0_i32, %c0_i32_0 : i32, i32
  }
  func.func @transform_3(%arg0: i32) -> (i32, i32) {
    %c0_i32 = arith.constant 0 : i32
    %c0_i32_0 = arith.constant 0 : i32
    return %arg0, %c0_i32 : i32, i32
  }
}

module attributes {stable_mosaic.version = 11 : i64} {
  func.func @_conv_tap_matmul_kernel(%arg0: i32, %arg1: memref<2x3x18x64xbf16, #tpu.memory_space<vmem>>, %arg2: memref<9x64x64xbf16, #tpu.memory_space<vmem>>, %arg3: memref<1x64xf32, #tpu.memory_space<vmem>>, %arg4: memref<32x64xbf16, #tpu.memory_space<vmem>>) attributes {dimension_semantics = [#tpu.dimension_semantics<parallel>], iteration_bounds = array<i64: 1>, scalar_prefetch = 0 : i64, scratch_operands = 0 : i64, tpu.core_type = #tpu.core_type<tc>, window_params = [{transform_indices = @transform_0, window_bounds = array<i64: 2, 3, 18, 64>}, {pipeline_mode = #tpu.pipeline_mode<synchronous>, transform_indices = @transform_1, window_bounds = array<i64: 9, 64, 64>}, {pipeline_mode = #tpu.pipeline_mode<synchronous>, transform_indices = @transform_2, window_bounds = array<i64: 1, 64>}, {transform_indices = @transform_3, window_bounds = array<i64: 32, 64>}]} {
    %cst = arith.constant 0.000000e+00 : f32
    %0 = vector.broadcast %cst : f32 to vector<32x64xf32>
    %c0 = arith.constant 0 : index
    %c0_0 = arith.constant 0 : index
    %c0_1 = arith.constant 0 : index
    %c0_2 = arith.constant 0 : index
    %1 = vector.load %arg1[%c0, %c0_0, %c0_1, %c0_2] : memref<2x3x18x64xbf16, #tpu.memory_space<vmem>>, vector<2x1x16x64xbf16>
    %2 = vector.shape_cast %1 : vector<2x1x16x64xbf16> to vector<32x64xbf16>
    %c0_3 = arith.constant 0 : index
    %c0_4 = arith.constant 0 : index
    %c0_5 = arith.constant 0 : index
    %3 = vector.load %arg2[%c0_3, %c0_4, %c0_5] : memref<9x64x64xbf16, #tpu.memory_space<vmem>>, vector<1x64x64xbf16>
    %4 = vector.shape_cast %3 : vector<1x64x64xbf16> to vector<64x64xbf16>
    %cst_6 = arith.constant dense<0.000000e+00> : vector<32x64xf32>
    %5 = tpu.matmul %2, %4, %cst_6 {dimension_numbers = #tpu.dot_dimension_numbers<[1], [0], [0], [1], [0, 0, 1, 1], [], []>} : vector<32x64xbf16>, vector<64x64xbf16>, vector<32x64xf32> -> vector<32x64xf32>
    %6 = arith.addf %0, %5 : vector<32x64xf32>
    %c0_7 = arith.constant 0 : index
    %c0_8 = arith.constant 0 : index
    %c1 = arith.constant 1 : index
    %c0_9 = arith.constant 0 : index
    %7 = vector.load %arg1[%c0_7, %c0_8, %c1, %c0_9] : memref<2x3x18x64xbf16, #tpu.memory_space<vmem>>, vector<2x1x16x64xbf16>
    %8 = vector.shape_cast %7 : vector<2x1x16x64xbf16> to vector<32x64xbf16>
    %c1_10 = arith.constant 1 : index
    %c0_11 = arith.constant 0 : index
    %c0_12 = arith.constant 0 : index
    %9 = vector.load %arg2[%c1_10, %c0_11, %c0_12] : memref<9x64x64xbf16, #tpu.memory_space<vmem>>, vector<1x64x64xbf16>
    %10 = vector.shape_cast %9 : vector<1x64x64xbf16> to vector<64x64xbf16>
    %cst_13 = arith.constant dense<0.000000e+00> : vector<32x64xf32>
    %11 = tpu.matmul %8, %10, %cst_13 {dimension_numbers = #tpu.dot_dimension_numbers<[1], [0], [0], [1], [0, 0, 1, 1], [], []>} : vector<32x64xbf16>, vector<64x64xbf16>, vector<32x64xf32> -> vector<32x64xf32>
    %12 = arith.addf %6, %11 : vector<32x64xf32>
    %c0_14 = arith.constant 0 : index
    %c0_15 = arith.constant 0 : index
    %c2 = arith.constant 2 : index
    %c0_16 = arith.constant 0 : index
    %13 = vector.load %arg1[%c0_14, %c0_15, %c2, %c0_16] : memref<2x3x18x64xbf16, #tpu.memory_space<vmem>>, vector<2x1x16x64xbf16>
    %14 = vector.shape_cast %13 : vector<2x1x16x64xbf16> to vector<32x64xbf16>
    %c2_17 = arith.constant 2 : index
    %c0_18 = arith.constant 0 : index
    %c0_19 = arith.constant 0 : index
    %15 = vector.load %arg2[%c2_17, %c0_18, %c0_19] : memref<9x64x64xbf16, #tpu.memory_space<vmem>>, vector<1x64x64xbf16>
    %16 = vector.shape_cast %15 : vector<1x64x64xbf16> to vector<64x64xbf16>
    %cst_20 = arith.constant dense<0.000000e+00> : vector<32x64xf32>
    %17 = tpu.matmul %14, %16, %cst_20 {dimension_numbers = #tpu.dot_dimension_numbers<[1], [0], [0], [1], [0, 0, 1, 1], [], []>} : vector<32x64xbf16>, vector<64x64xbf16>, vector<32x64xf32> -> vector<32x64xf32>
    %18 = arith.addf %12, %17 : vector<32x64xf32>
    %c0_21 = arith.constant 0 : index
    %c1_22 = arith.constant 1 : index
    %c0_23 = arith.constant 0 : index
    %c0_24 = arith.constant 0 : index
    %19 = vector.load %arg1[%c0_21, %c1_22, %c0_23, %c0_24] : memref<2x3x18x64xbf16, #tpu.memory_space<vmem>>, vector<2x1x16x64xbf16>
    %20 = vector.shape_cast %19 : vector<2x1x16x64xbf16> to vector<32x64xbf16>
    %c3 = arith.constant 3 : index
    %c0_25 = arith.constant 0 : index
    %c0_26 = arith.constant 0 : index
    %21 = vector.load %arg2[%c3, %c0_25, %c0_26] : memref<9x64x64xbf16, #tpu.memory_space<vmem>>, vector<1x64x64xbf16>
    %22 = vector.shape_cast %21 : vector<1x64x64xbf16> to vector<64x64xbf16>
    %cst_27 = arith.constant dense<0.000000e+00> : vector<32x64xf32>
    %23 = tpu.matmul %20, %22, %cst_27 {dimension_numbers = #tpu.dot_dimension_numbers<[1], [0], [0], [1], [0, 0, 1, 1], [], []>} : vector<32x64xbf16>, vector<64x64xbf16>, vector<32x64xf32> -> vector<32x64xf32>
    %24 = arith.addf %18, %23 : vector<32x64xf32>
    %c0_28 = arith.constant 0 : index
    %c1_29 = arith.constant 1 : index
    %c1_30 = arith.constant 1 : index
    %c0_31 = arith.constant 0 : index
    %25 = vector.load %arg1[%c0_28, %c1_29, %c1_30, %c0_31] : memref<2x3x18x64xbf16, #tpu.memory_space<vmem>>, vector<2x1x16x64xbf16>
    %26 = vector.shape_cast %25 : vector<2x1x16x64xbf16> to vector<32x64xbf16>
    %c4 = arith.constant 4 : index
    %c0_32 = arith.constant 0 : index
    %c0_33 = arith.constant 0 : index
    %27 = vector.load %arg2[%c4, %c0_32, %c0_33] : memref<9x64x64xbf16, #tpu.memory_space<vmem>>, vector<1x64x64xbf16>
    %28 = vector.shape_cast %27 : vector<1x64x64xbf16> to vector<64x64xbf16>
    %cst_34 = arith.constant dense<0.000000e+00> : vector<32x64xf32>
    %29 = tpu.matmul %26, %28, %cst_34 {dimension_numbers = #tpu.dot_dimension_numbers<[1], [0], [0], [1], [0, 0, 1, 1], [], []>} : vector<32x64xbf16>, vector<64x64xbf16>, vector<32x64xf32> -> vector<32x64xf32>
    %30 = arith.addf %24, %29 : vector<32x64xf32>
    %c0_35 = arith.constant 0 : index
    %c1_36 = arith.constant 1 : index
    %c2_37 = arith.constant 2 : index
    %c0_38 = arith.constant 0 : index
    %31 = vector.load %arg1[%c0_35, %c1_36, %c2_37, %c0_38] : memref<2x3x18x64xbf16, #tpu.memory_space<vmem>>, vector<2x1x16x64xbf16>
    %32 = vector.shape_cast %31 : vector<2x1x16x64xbf16> to vector<32x64xbf16>
    %c5 = arith.constant 5 : index
    %c0_39 = arith.constant 0 : index
    %c0_40 = arith.constant 0 : index
    %33 = vector.load %arg2[%c5, %c0_39, %c0_40] : memref<9x64x64xbf16, #tpu.memory_space<vmem>>, vector<1x64x64xbf16>
    %34 = vector.shape_cast %33 : vector<1x64x64xbf16> to vector<64x64xbf16>
    %cst_41 = arith.constant dense<0.000000e+00> : vector<32x64xf32>
    %35 = tpu.matmul %32, %34, %cst_41 {dimension_numbers = #tpu.dot_dimension_numbers<[1], [0], [0], [1], [0, 0, 1, 1], [], []>} : vector<32x64xbf16>, vector<64x64xbf16>, vector<32x64xf32> -> vector<32x64xf32>
    %36 = arith.addf %30, %35 : vector<32x64xf32>
    %c0_42 = arith.constant 0 : index
    %c2_43 = arith.constant 2 : index
    %c0_44 = arith.constant 0 : index
    %c0_45 = arith.constant 0 : index
    %37 = vector.load %arg1[%c0_42, %c2_43, %c0_44, %c0_45] : memref<2x3x18x64xbf16, #tpu.memory_space<vmem>>, vector<2x1x16x64xbf16>
    %38 = vector.shape_cast %37 : vector<2x1x16x64xbf16> to vector<32x64xbf16>
    %c6 = arith.constant 6 : index
    %c0_46 = arith.constant 0 : index
    %c0_47 = arith.constant 0 : index
    %39 = vector.load %arg2[%c6, %c0_46, %c0_47] : memref<9x64x64xbf16, #tpu.memory_space<vmem>>, vector<1x64x64xbf16>
    %40 = vector.shape_cast %39 : vector<1x64x64xbf16> to vector<64x64xbf16>
    %cst_48 = arith.constant dense<0.000000e+00> : vector<32x64xf32>
    %41 = tpu.matmul %38, %40, %cst_48 {dimension_numbers = #tpu.dot_dimension_numbers<[1], [0], [0], [1], [0, 0, 1, 1], [], []>} : vector<32x64xbf16>, vector<64x64xbf16>, vector<32x64xf32> -> vector<32x64xf32>
    %42 = arith.addf %36, %41 : vector<32x64xf32>
    %c0_49 = arith.constant 0 : index
    %c2_50 = arith.constant 2 : index
    %c1_51 = arith.constant 1 : index
    %c0_52 = arith.constant 0 : index
    %43 = vector.load %arg1[%c0_49, %c2_50, %c1_51, %c0_52] : memref<2x3x18x64xbf16, #tpu.memory_space<vmem>>, vector<2x1x16x64xbf16>
    %44 = vector.shape_cast %43 : vector<2x1x16x64xbf16> to vector<32x64xbf16>
    %c7 = arith.constant 7 : index
    %c0_53 = arith.constant 0 : index
    %c0_54 = arith.constant 0 : index
    %45 = vector.load %arg2[%c7, %c0_53, %c0_54] : memref<9x64x64xbf16, #tpu.memory_space<vmem>>, vector<1x64x64xbf16>
    %46 = vector.shape_cast %45 : vector<1x64x64xbf16> to vector<64x64xbf16>
    %cst_55 = arith.constant dense<0.000000e+00> : vector<32x64xf32>
    %47 = tpu.matmul %44, %46, %cst_55 {dimension_numbers = #tpu.dot_dimension_numbers<[1], [0], [0], [1], [0, 0, 1, 1], [], []>} : vector<32x64xbf16>, vector<64x64xbf16>, vector<32x64xf32> -> vector<32x64xf32>
    %48 = arith.addf %42, %47 : vector<32x64xf32>
    %c0_56 = arith.constant 0 : index
    %c2_57 = arith.constant 2 : index
    %c2_58 = arith.constant 2 : index
    %c0_59 = arith.constant 0 : index
    %49 = vector.load %arg1[%c0_56, %c2_57, %c2_58, %c0_59] : memref<2x3x18x64xbf16, #tpu.memory_space<vmem>>, vector<2x1x16x64xbf16>
    %50 = vector.shape_cast %49 : vector<2x1x16x64xbf16> to vector<32x64xbf16>
    %c8 = arith.constant 8 : index
    %c0_60 = arith.constant 0 : index
    %c0_61 = arith.constant 0 : index
    %51 = vector.load %arg2[%c8, %c0_60, %c0_61] : memref<9x64x64xbf16, #tpu.memory_space<vmem>>, vector<1x64x64xbf16>
    %52 = vector.shape_cast %51 : vector<1x64x64xbf16> to vector<64x64xbf16>
    %cst_62 = arith.constant dense<0.000000e+00> : vector<32x64xf32>
    %53 = tpu.matmul %50, %52, %cst_62 {dimension_numbers = #tpu.dot_dimension_numbers<[1], [0], [0], [1], [0, 0, 1, 1], [], []>} : vector<32x64xbf16>, vector<64x64xbf16>, vector<32x64xf32> -> vector<32x64xf32>
    %54 = arith.addf %48, %53 : vector<32x64xf32>
    %c0_63 = arith.constant 0 : index
    %c0_64 = arith.constant 0 : index
    %55 = vector.load %arg3[%c0_63, %c0_64] : memref<1x64xf32, #tpu.memory_space<vmem>>, vector<1x64xf32>
    %56 = vector.broadcast %55 : vector<1x64xf32> to vector<32x64xf32>
    %57 = arith.addf %54, %56 : vector<32x64xf32>
    %cst_65 = arith.constant 0.000000e+00 : f32
    %58 = vector.broadcast %cst_65 : f32 to vector<32x64xf32>
    %59 = arith.maximumf %57, %58 : vector<32x64xf32>
    %60 = arith.truncf %59 : vector<32x64xf32> to vector<32x64xbf16>
    %c0_66 = arith.constant 0 : index
    %c0_67 = arith.constant 0 : index
    %61 = vector.load %arg4[%c0_66, %c0_67] : memref<32x64xbf16, #tpu.memory_space<vmem>>, vector<32x64xbf16>
    tpu.vector_store %arg4[%c0_66, %c0_67], %60 {strides = array<i32>} : memref<32x64xbf16, #tpu.memory_space<vmem>>, vector<32x64xbf16>,
    return
  }
  func.func @transform_0(%arg0: i32) -> (i32, i32, i32, i32) {
    %c0_i32 = arith.constant 0 : i32
    %c0_i32_0 = arith.constant 0 : i32
    %c0_i32_1 = arith.constant 0 : i32
    %c0_i32_2 = arith.constant 0 : i32
    return %arg0, %c0_i32, %c0_i32_0, %c0_i32_1 : i32, i32, i32, i32
  }
  func.func @transform_1(%arg0: i32) -> (i32, i32, i32) {
    %c0_i32 = arith.constant 0 : i32
    %c0_i32_0 = arith.constant 0 : i32
    %c0_i32_1 = arith.constant 0 : i32
    %c0_i32_2 = arith.constant 0 : i32
    return %c0_i32, %c0_i32_0, %c0_i32_1 : i32, i32, i32
  }
  func.func @transform_2(%arg0: i32) -> (i32, i32) {
    %c0_i32 = arith.constant 0 : i32
    %c0_i32_0 = arith.constant 0 : i32
    %c0_i32_1 = arith.constant 0 : i32
    return %c0_i32, %c0_i32_0 : i32, i32
  }
  func.func @transform_3(%arg0: i32) -> (i32, i32) {
    %c0_i32 = arith.constant 0 : i32
    %c0_i32_0 = arith.constant 0 : i32
    return %arg0, %c0_i32 : i32, i32
  }
}

module attributes {stable_mosaic.version = 11 : i64} {
  func.func @_mlp_head_kernel(%arg0: i32, %arg1: memref<8x64xbf16, #tpu.memory_space<vmem>>, %arg2: memref<64x512xbf16, #tpu.memory_space<vmem>>, %arg3: memref<1x512xf32, #tpu.memory_space<vmem>>, %arg4: memref<512x128xbf16, #tpu.memory_space<vmem>>, %arg5: memref<1x128xf32, #tpu.memory_space<vmem>>, %arg6: memref<8x128xf32, #tpu.memory_space<vmem>>) attributes {dimension_semantics = [#tpu.dimension_semantics<parallel>], iteration_bounds = array<i64: 1>, scalar_prefetch = 0 : i64, scratch_operands = 0 : i64, tpu.core_type = #tpu.core_type<tc>, window_params = [{transform_indices = @transform_0, window_bounds = array<i64: 8, 64>}, {pipeline_mode = #tpu.pipeline_mode<synchronous>, transform_indices = @transform_1, window_bounds = array<i64: 64, 512>}, {pipeline_mode = #tpu.pipeline_mode<synchronous>, transform_indices = @transform_2, window_bounds = array<i64: 1, 512>}, {pipeline_mode = #tpu.pipeline_mode<synchronous>, transform_indices = @transform_3, window_bounds = array<i64: 512, 128>}, {pipeline_mode = #tpu.pipeline_mode<synchronous>, transform_indices = @transform_4, window_bounds = array<i64: 1, 128>}, {transform_indices = @transform_5, window_bounds = array<i64: 8, 128>}]} {
    %c0 = arith.constant 0 : index
    %c0_0 = arith.constant 0 : index
    %0 = vector.load %arg1[%c0, %c0_0] : memref<8x64xbf16, #tpu.memory_space<vmem>>, vector<8x64xbf16>
    %c0_1 = arith.constant 0 : index
    %c0_2 = arith.constant 0 : index
    %1 = vector.load %arg2[%c0_1, %c0_2] : memref<64x512xbf16, #tpu.memory_space<vmem>>, vector<64x512xbf16>
    %cst = arith.constant dense<0.000000e+00> : vector<8x512xf32>
    %2 = tpu.matmul %0, %1, %cst {dimension_numbers = #tpu.dot_dimension_numbers<[1], [0], [0], [1], [0, 0, 1, 1], [], []>} : vector<8x64xbf16>, vector<64x512xbf16>, vector<8x512xf32> -> vector<8x512xf32>
    %c0_3 = arith.constant 0 : index
    %c0_4 = arith.constant 0 : index
    %3 = vector.load %arg3[%c0_3, %c0_4] : memref<1x512xf32, #tpu.memory_space<vmem>>, vector<1x512xf32>
    %4 = vector.broadcast %3 : vector<1x512xf32> to vector<8x512xf32>
    %5 = arith.addf %2, %4 : vector<8x512xf32>
    %cst_5 = arith.constant 0.000000e+00 : f32
    %6 = vector.broadcast %cst_5 : f32 to vector<8x512xf32>
    %7 = arith.maximumf %5, %6 : vector<8x512xf32>
    %8 = arith.truncf %7 : vector<8x512xf32> to vector<8x512xbf16>
    %c0_6 = arith.constant 0 : index
    %c0_7 = arith.constant 0 : index
    %9 = vector.load %arg4[%c0_6, %c0_7] : memref<512x128xbf16, #tpu.memory_space<vmem>>, vector<512x128xbf16>
    %cst_8 = arith.constant dense<0.000000e+00> : vector<8x128xf32>
    %10 = tpu.matmul %8, %9, %cst_8 {dimension_numbers = #tpu.dot_dimension_numbers<[1], [0], [0], [1], [0, 0, 1, 1], [], []>} : vector<8x512xbf16>, vector<512x128xbf16>, vector<8x128xf32> -> vector<8x128xf32>
    %c0_9 = arith.constant 0 : index
    %c0_10 = arith.constant 0 : index
    %11 = vector.load %arg5[%c0_9, %c0_10] : memref<1x128xf32, #tpu.memory_space<vmem>>, vector<1x128xf32>
    %12 = vector.broadcast %11 : vector<1x128xf32> to vector<8x128xf32>
    %13 = arith.addf %10, %12 : vector<8x128xf32>
    %c0_11 = arith.constant 0 : index
    %c0_12 = arith.constant 0 : index
    %14 = vector.load %arg6[%c0_11, %c0_12] : memref<8x128xf32, #tpu.memory_space<vmem>>, vector<8x128xf32>
    tpu.vector_store %arg6[%c0_11, %c0_12], %13 {strides = array<i32>} : memref<8x128xf32, #tpu.memory_space<vmem>>, vector<8x128xf32>,
    return
  }
  func.func @transform_0(%arg0: i32) -> (i32, i32) {
    %c0_i32 = arith.constant 0 : i32
    %c0_i32_0 = arith.constant 0 : i32
    return %arg0, %c0_i32 : i32, i32
  }
  func.func @transform_1(%arg0: i32) -> (i32, i32) {
    %c0_i32 = arith.constant 0 : i32
    %c0_i32_0 = arith.constant 0 : i32
    %c0_i32_1 = arith.constant 0 : i32
    return %c0_i32, %c0_i32_0 : i32, i32
  }
  func.func @transform_2(%arg0: i32) -> (i32, i32) {
    %c0_i32 = arith.constant 0 : i32
    %c0_i32_0 = arith.constant 0 : i32
    %c0_i32_1 = arith.constant 0 : i32
    return %c0_i32, %c0_i32_0 : i32, i32
  }
  func.func @transform_3(%arg0: i32) -> (i32, i32) {
    %c0_i32 = arith.constant 0 : i32
    %c0_i32_0 = arith.constant 0 : i32
    %c0_i32_1 = arith.constant 0 : i32
    return %c0_i32, %c0_i32_0 : i32, i32
  }
  func.func @transform_4(%arg0: i32) -> (i32, i32) {
    %c0_i32 = arith.constant 0 : i32
    %c0_i32_0 = arith.constant 0 : i32
    %c0_i32_1 = arith.constant 0 : i32
    return %c0_i32, %c0_i32_0 : i32, i32
  }
  func.func @transform_5(%arg0: i32) -> (i32, i32) {
    %c0_i32 = arith.constant 0 : i32
    %c0_i32_0 = arith.constant 0 : i32
    return %arg0, %c0_i32 : i32, i32
  }
}

</mosaic_0001>

<llo_original>
// kernel: network_forward.5
$region0: #{network_forward.5}
  #allocation0 [shape = 'u32[]', space=smem, size = 0x4, offset = 0x4, fixed_abs, tag = 'smem constant byte address 0x4 - core index']
  #allocation1 [shape = 'u32[144,128]{1,0:T(1,128)}', space=vmem, size = 0x12000, scoped, tag = 'internal scratch']
  %s0 = inlined_call_operand.vmem [shape: bf16[2,4,17,128], index: 0, kind: input, shape index: {}]
  %s1 = inlined_call_operand.vmem [shape: bf16[4,128,64], index: 1, kind: input, shape index: {}]
  %s2 = inlined_call_operand.vmem [shape: f32[1,64], index: 2, kind: input, shape index: {}]
  %s3 = inlined_call_operand.vmem [shape: bf16[96,64], index: 3, kind: output, shape index: {}]
  %s4 = sld [smem:[#allocation0]]
  $region22: #{network_forward.5} parent=0
    _
  %s6 = ssub.s32 1, %s4
  %s7 = scalar_select 0, %s6, %s4
  // Predicated region
  $region2: #{network_forward.5} parent=0 // pred_check
    _
  $region3: #{network_forward.5} parent=0 // pred_check_branch
    %9 = sbr.rel (0) target = $region5
  $region4: #{network_forward.5} parent=0 // pred_region
    _
  $region5: #{network_forward.5} parent=0 // pred_fallthru
    _
  // Predicated region
  $region6: #{network_forward.5} parent=0 // pred_check
    _
  $region7: #{network_forward.5} parent=0 // pred_check_branch
    %11 = sbr.rel (0) target = $region9
  $region8: #{network_forward.5} parent=0 // pred_region
    _
  $region9: #{network_forward.5} parent=0 // pred_fallthru
    _
  // Predicated region
  $region10: #{network_forward.5} parent=0 // pred_check
    _
  $region11: #{network_forward.5} parent=0 // pred_check_branch
    %13 = sbr.rel (0) target = $region13
  $region12: #{network_forward.5} parent=0 // pred_region
    _
  $region13: #{network_forward.5} parent=0 // pred_fallthru
    _
  %v15 = vld [vmem:[%s0] sm:$0xf]
  %v16 = vld [vmem:[%s0 + $0x4] sm:$0xf]
  %v17 = vld [vmem:[%s0 + $0xc] sm:$0xf]
  %v18 = vld [vmem:[%s0 + $0x10] sm:$0xf]
  %v19 = vld [vmem:[%s0 + $0x18] sm:$0xf]
  %v20 = vld [vmem:[%s0 + $0x1c] sm:$0xf]
  %v21 = vld [vmem:[%s0 + $0x30] sm:$0xf]
  %v22 = vld [vmem:[%s0 + $0x34] sm:$0xf]
  %v23 = vld [vmem:[%s0 + $0x3c] sm:$0xf]
  %v24 = vld [vmem:[%s0 + $0x40] sm:$0xf]
  %v25 = vld [vmem:[%s0 + $0x48] sm:$0xf]
  %v26 = vld [vmem:[%s0 + $0x4c] sm:$0xf]
  %v27 = vld [vmem:[%s1] sm:$0xf]
  %v28 = vld [vmem:[%s1 + $0x4] sm:$0xf]
  %v29 = vld [vmem:[%s1 + $0x8] sm:$0xf]
  %v30 = vld [vmem:[%s1 + $0xc] sm:$0xf]
  %v31 = vld [vmem:[%s1 + $0x10] sm:$0xf]
  %v32 = vld [vmem:[%s1 + $0x14] sm:$0xf]
  %v33 = vld [vmem:[%s1 + $0x18] sm:$0xf]
  %v34 = vld [vmem:[%s1 + $0x1c] sm:$0xf]
  %v35 = vld [vmem:[%s1 + $0x20] sm:$0xf]
  %v36 = vld [vmem:[%s1 + $0x24] sm:$0xf]
  %v37 = vld [vmem:[%s1 + $0x28] sm:$0xf]
  %v38 = vld [vmem:[%s1 + $0x2c] sm:$0xf]
  %v39 = vld [vmem:[%s1 + $0x30] sm:$0xf]
  %v40 = vld [vmem:[%s1 + $0x34] sm:$0xf]
  %v41 = vld [vmem:[%s1 + $0x38] sm:$0xf]
  %v42 = vld [vmem:[%s1 + $0x3c] sm:$0xf]
  %v43 = vld [vmem:[%s0 + $0x8] sm:$0x1]
  %v44 = vld [vmem:[%s0 + $0x14] sm:$0x1]
  %v45 = vld [vmem:[%s0 + $0x20] sm:$0x1]
  %v46 = vld [vmem:[%s0 + $0x38] sm:$0x1]
  %v47 = vld [vmem:[%s0 + $0x44] sm:$0x1]
  %v48 = vld [vmem:[%s0 + $0x50] sm:$0x1]
  %vm49 = vsmask.f32 3328
  %vm50 = vsmask.f32 7440
  %vm51 = vmor %vm49, %vm50
  %v53 = vshrl.u32 %v15, 16
  %v55 = vrot.slane %v53, 4
  %v56 = vshll.u32 %v15, 16
  %v58 = vrot.slane %v56, 5
  %v59 = vor.u32 %v55, %v58
  %v60 = vrot.slane %v59, 4
  %v62 = vshll.u32 %v16, 16
  %v64 = vrot.slane %v62, 5
  %v65 = vsel %vm51, %v60, %v64
  %v66 = vshrl.u32 %v16, 16
  %v68 = vrot.slane %v66, 4
  %v69 = vor.u32 %v68, %v64
  %v70 = vrot.slane %v69, 4
  %v72 = vshll.u32 %v43, 16
  %v74 = vrot.slane %v72, 5
  %v75 = vsel %vm51, %v70, %v74
  %v77 = vshrl.u32 %v17, 16
  %v79 = vrot.slane %v77, 4
  %v80 = vshll.u32 %v17, 16
  %v82 = vrot.slane %v80, 5
  %v83 = vor.u32 %v79, %v82
  %v84 = vrot.slane %v83, 4
  %v86 = vshll.u32 %v18, 16
  %v88 = vrot.slane %v86, 5
  %v89 = vsel %vm51, %v84, %v88
  %v90 = vshrl.u32 %v18, 16
  %v92 = vrot.slane %v90, 4
  %v93 = vor.u32 %v92, %v88
  %v94 = vrot.slane %v93, 4
  %v96 = vshll.u32 %v44, 16
  %v98 = vrot.slane %v96, 5
  %v99 = vsel %vm51, %v94, %v98
  %v101 = vshrl.u32 %v19, 16
  %v103 = vrot.slane %v101, 4
  %v104 = vshll.u32 %v19, 16
  %v106 = vrot.slane %v104, 5
  %v107 = vor.u32 %v103, %v106
  %v108 = vrot.slane %v107, 4
  %v110 = vshll.u32 %v20, 16
  %v112 = vrot.slane %v110, 5
  %v113 = vsel %vm51, %v108, %v112
  %v114 = vshrl.u32 %v20, 16
  %v116 = vrot.slane %v114, 4
  %v117 = vor.u32 %v116, %v112
  %v118 = vrot.slane %v117, 4
  %v120 = vshll.u32 %v45, 16
  %v122 = vrot.slane %v120, 5
  %v123 = vsel %vm51, %v118, %v122
  %v125 = vshrl.u32 %v21, 16
  %v127 = vrot.slane %v125, 4
  %v128 = vshll.u32 %v21, 16
  %v130 = vrot.slane %v128, 5
  %v131 = vor.u32 %v127, %v130
  %v132 = vrot.slane %v131, 4
  %v134 = vshll.u32 %v22, 16
  %v136 = vrot.slane %v134, 5
  %v137 = vsel %vm51, %v132, %v136
  %v138 = vshrl.u32 %v22, 16
  %v140 = vrot.slane %v138, 4
  %v141 = vor.u32 %v140, %v136
  %v142 = vrot.slane %v141, 4
  %v144 = vshll.u32 %v46, 16
  %v146 = vrot.slane %v144, 5
  %v147 = vsel %vm51, %v142, %v146
  %v149 = vshrl.u32 %v23, 16
  %v151 = vrot.slane %v149, 4
  %v152 = vshll.u32 %v23, 16
  %v154 = vrot.slane %v152, 5
  %v155 = vor.u32 %v151, %v154
  %v156 = vrot.slane %v155, 4
  %v158 = vshll.u32 %v24, 16
  %v160 = vrot.slane %v158, 5
  %v161 = vsel %vm51, %v156, %v160
  %v162 = vshrl.u32 %v24, 16
  %v164 = vrot.slane %v162, 4
  %v165 = vor.u32 %v164, %v160
  %v166 = vrot.slane %v165, 4
  %v168 = vshll.u32 %v47, 16
  %v170 = vrot.slane %v168, 5
  %v171 = vsel %vm51, %v166, %v170
  %v173 = vshrl.u32 %v25, 16
  %v175 = vrot.slane %v173, 4
  %v176 = vshll.u32 %v25, 16
  %v178 = vrot.slane %v176, 5
  %v179 = vor.u32 %v175, %v178
  %v180 = vrot.slane %v179, 4
  %v182 = vshll.u32 %v26, 16
  %v184 = vrot.slane %v182, 5
  %v185 = vsel %vm51, %v180, %v184
  %v186 = vshrl.u32 %v26, 16
  %v188 = vrot.slane %v186, 4
  %v189 = vor.u32 %v188, %v184
  %v190 = vrot.slane %v189, 4
  %v192 = vshll.u32 %v48, 16
  %v194 = vrot.slane %v192, 5
  %v195 = vsel %vm51, %v190, %v194
  %s196 = scalar_lea.vmem %s1, 64
  %v197 = vld [vmem:[%s196] sm:$0xf]
  %v198 = vld [vmem:[%s196 + $0x4] sm:$0xf]
  %v199 = vld [vmem:[%s196 + $0x8] sm:$0xf]
  %v200 = vld [vmem:[%s196 + $0xc] sm:$0xf]
  %v201 = vld [vmem:[%s196 + $0x10] sm:$0xf]
  %v202 = vld [vmem:[%s196 + $0x14] sm:$0xf]
  %v203 = vld [vmem:[%s196 + $0x18] sm:$0xf]
  %v204 = vld [vmem:[%s196 + $0x1c] sm:$0xf]
  %v205 = vld [vmem:[%s196 + $0x20] sm:$0xf]
  %v206 = vld [vmem:[%s196 + $0x24] sm:$0xf]
  %v207 = vld [vmem:[%s196 + $0x28] sm:$0xf]
  %v208 = vld [vmem:[%s196 + $0x2c] sm:$0xf]
  %v209 = vld [vmem:[%s196 + $0x30] sm:$0xf]
  %v210 = vld [vmem:[%s196 + $0x34] sm:$0xf]
  %v211 = vld [vmem:[%s196 + $0x38] sm:$0xf]
  %v212 = vld [vmem:[%s196 + $0x3c] sm:$0xf]
  %v213 = vunpack.c.l.b16 %v65
  %v214 = vunpack.c.l.b16 %v75
  %v215 = vunpack.c.l.b16 %v89
  %v216 = vunpack.c.l.b16 %v99
  %v217 = vunpack.c.l.b16 %v113
  %v218 = vunpack.c.l.b16 %v123
  %v219 = vunpack.c.l.b16 %v137
  %v220 = vunpack.c.l.b16 %v147
  %v221 = vunpack.c.l.b16 %v161
  %v222 = vunpack.c.l.b16 %v171
  %v223 = vunpack.c.l.b16 %v185
  %v224 = vunpack.c.l.b16 %v195
  %v225 = vpack.c.b16 %v214, %v213
  %v226 = vpack.c.b16 %v216, %v215
  %v227 = vpack.c.b16 %v218, %v217
  %v228 = vpack.c.b16 %v220, %v219
  %v229 = vpack.c.b16 %v222, %v221
  %v230 = vpack.c.b16 %v224, %v223
  %v253 = vunpack.c.l.b16 %v197
  %v254 = vunpack.c.l.b16 %v198
  %v255 = vunpack.c.l.b16 %v199
  %v256 = vunpack.c.l.b16 %v200
  %v257 = vunpack.c.l.b16 %v201
  %v258 = vunpack.c.l.b16 %v202
  %v259 = vunpack.c.l.b16 %v203
  %v260 = vunpack.c.l.b16 %v204
  %v261 = vunpack.c.l.b16 %v205
  %v262 = vunpack.c.l.b16 %v206
  %v263 = vunpack.c.l.b16 %v207
  %v264 = vunpack.c.l.b16 %v208
  %v265 = vunpack.c.l.b16 %v209
  %v266 = vunpack.c.l.b16 %v210
  %v267 = vunpack.c.l.b16 %v211
  %v268 = vunpack.c.l.b16 %v212
  %v269 = vpack.c.b16 %v254, %v253
  %v270 = vpack.c.b16 %v256, %v255
  %v271 = vpack.c.b16 %v258, %v257
  %v272 = vpack.c.b16 %v260, %v259
  %v273 = vpack.c.b16 %v262, %v261
  %v274 = vpack.c.b16 %v264, %v263
  %v275 = vpack.c.b16 %v266, %v265
  %v276 = vpack.c.b16 %v268, %v267
  %285 = vmatprep.subr.bf16.mxu0 0
  %286 = vmatpush1.bf16.msra.mxu0 %v269
  %287 = vmatprep.subr.bf16.mxu0 0
  %288 = vmatpush1.bf16.msra.mxu0 %v270
  %289 = vmatprep.subr.bf16.mxu0 0
  %290 = vmatpush1.bf16.msra.mxu0 %v271
  %291 = vmatprep.subr.bf16.mxu0 0
  %292 = vmatpush1.bf16.msra.mxu0 %v272
  %293 = vmatprep.subr.bf16.mxu0 0
  %294 = vmatpush1.bf16.msra.mxu0 %v273
  %295 = vmatprep.subr.bf16.mxu0 0
  %296 = vmatpush1.bf16.msra.mxu0 %v274
  %297 = vmatprep.subr.bf16.mxu0 0
  %298 = vmatpush1.bf16.msra.mxu0 %v275
  %299 = vmatprep.subr.bf16.mxu0 0
  %300 = vmatpush1.bf16.msra.mxu0 %v276
  %301 = vmatprep.subr.bf16.mxu0 0
  %302 = vmatpush1.bf16.msra.mxu0 0
  %303 = vmatprep.subr.bf16.mxu0 0
  %304 = vmatpush1.bf16.msra.mxu0 0
  %305 = vmatprep.subr.bf16.mxu0 0
  %306 = vmatpush1.bf16.msra.mxu0 0
  %307 = vmatprep.subr.bf16.mxu0 0
  %308 = vmatpush1.bf16.msra.mxu0 0
  %309 = vmatprep.subr.bf16.mxu0 0
  %310 = vmatpush1.bf16.msra.mxu0 0
  %311 = vmatprep.subr.bf16.mxu0 0
  %312 = vmatpush1.bf16.msra.mxu0 0
  %313 = vmatprep.subr.bf16.mxu0 0
  %314 = vmatpush1.bf16.msra.mxu0 0
  %315 = vmatprep.subr.bf16.mxu0 0
  %316 = vmatpush1.bf16.msra.mxu0 0
  %317 = vmatprep.mubr.bf16.mxu0 0
  %318 = vmatmul.mubr.bf16.gmra.mrb[0].mxu0 %v225
  %v319 = vpop.f32.mrb[0].mxu0
  %v320 = vadd.f32 0.0, %v319
  %v321 = vpop.f32.mrb[0].mxu0
  %v322 = vpop.f32.mrb[0].mxu0
  %v323 = vadd.f32 0.0, %v322
  %v324 = vpop.f32.mrb[0].mxu0
  %325 = vmatprep.mubr.bf16.mxu0 0
  %326 = vmatmul.mubr.bf16.gmra.mrb[0].mxu0 %v226
  %v327 = vpop.f32.mrb[0].mxu0
  %v328 = vadd.f32 0.0, %v327
  %v329 = vpop.f32.mrb[0].mxu0
  %v330 = vpop.f32.mrb[0].mxu0
  %v331 = vadd.f32 0.0, %v330
  %v332 = vpop.f32.mrb[0].mxu0
  %333 = vmatprep.mubr.bf16.mxu0 0
  %334 = vmatmul.mubr.bf16.gmra.mrb[0].mxu0 %v227
  %v335 = vpop.f32.mrb[0].mxu0
  %v336 = vadd.f32 0.0, %v335
  %v337 = vpop.f32.mrb[0].mxu0
  %v338 = vpop.f32.mrb[0].mxu0
  %v339 = vadd.f32 0.0, %v338
  %v340 = vpop.f32.mrb[0].mxu0
  %341 = vmatprep.mubr.bf16.mxu0 0
  %342 = vmatmul.mubr.bf16.gmra.mrb[0].mxu0 %v228
  %v343 = vpop.f32.mrb[0].mxu0
  %v344 = vadd.f32 0.0, %v343
  %v345 = vpop.f32.mrb[0].mxu0
  %v346 = vpop.f32.mrb[0].mxu0
  %v347 = vadd.f32 0.0, %v346
  %v348 = vpop.f32.mrb[0].mxu0
  %349 = vmatprep.mubr.bf16.mxu0 0
  %350 = vmatmul.mubr.bf16.gmra.mrb[0].mxu0 %v229
  %v351 = vpop.f32.mrb[0].mxu0
  %v352 = vadd.f32 0.0, %v351
  %v353 = vpop.f32.mrb[0].mxu0
  %v354 = vpop.f32.mrb[0].mxu0
  %v355 = vadd.f32 0.0, %v354
  %v356 = vpop.f32.mrb[0].mxu0
  %357 = vmatprep.mubr.bf16.mxu0 0
  %358 = vmatmul.mubr.bf16.gmra.mrb[0].mxu0 %v230
  %v359 = vpop.f32.mrb[0].mxu0
  %v360 = vadd.f32 0.0, %v359
  %v361 = vpop.f32.mrb[0].mxu0
  %v362 = vpop.f32.mrb[0].mxu0
  %v363 = vadd.f32 0.0, %v362
  %v364 = vpop.f32.mrb[0].mxu0
  %365 = vdwg.mxu0
  %v378 = vunpack.c.l.b16 %v15
  %v379 = vunpack.c.l.b16 %v16
  %v380 = vunpack.c.l.b16 %v17
  %v381 = vunpack.c.l.b16 %v18
  %v382 = vunpack.c.l.b16 %v19
  %v383 = vunpack.c.l.b16 %v20
  %v384 = vunpack.c.l.b16 %v21
  %v385 = vunpack.c.l.b16 %v22
  %v386 = vunpack.c.l.b16 %v23
  %v387 = vunpack.c.l.b16 %v24
  %v388 = vunpack.c.l.b16 %v25
  %v389 = vunpack.c.l.b16 %v26
  %v390 = vpack.c.b16 %v379, %v378
  %v391 = vpack.c.b16 %v381, %v380
  %v392 = vpack.c.b16 %v383, %v382
  %v393 = vpack.c.b16 %v385, %v384
  %v394 = vpack.c.b16 %v387, %v386
  %v395 = vpack.c.b16 %v389, %v388
  %v418 = vunpack.c.l.b16 %v27
  %v419 = vunpack.c.l.b16 %v28
  %v420 = vunpack.c.l.b16 %v29
  %v421 = vunpack.c.l.b16 %v30
  %v422 = vunpack.c.l.b16 %v31
  %v423 = vunpack.c.l.b16 %v32
  %v424 = vunpack.c.l.b16 %v33
  %v425 = vunpack.c.l.b16 %v34
  %v426 = vunpack.c.l.b16 %v35
  %v427 = vunpack.c.l.b16 %v36
  %v428 = vunpack.c.l.b16 %v37
  %v429 = vunpack.c.l.b16 %v38
  %v430 = vunpack.c.l.b16 %v39
  %v431 = vunpack.c.l.b16 %v40
  %v432 = vunpack.c.l.b16 %v41
  %v433 = vunpack.c.l.b16 %v42
  %v434 = vpack.c.b16 %v419, %v418
  %v435 = vpack.c.b16 %v421, %v420
  %v436 = vpack.c.b16 %v423, %v422
  %v437 = vpack.c.b16 %v425, %v424
  %v438 = vpack.c.b16 %v427, %v426
  %v439 = vpack.c.b16 %v429, %v428
  %v440 = vpack.c.b16 %v431, %v430
  %v441 = vpack.c.b16 %v433, %v432
  %450 = vmatprep.subr.bf16.mxu0 0
  %451 = vmatpush1.bf16.msra.mxu0 %v434
  %452 = vmatprep.subr.bf16.mxu0 0
  %453 = vmatpush1.bf16.msra.mxu0 %v435
  %454 = vmatprep.subr.bf16.mxu0 0
  %455 = vmatpush1.bf16.msra.mxu0 %v436
  %456 = vmatprep.subr.bf16.mxu0 0
  %457 = vmatpush1.bf16.msra.mxu0 %v437
  %458 = vmatprep.subr.bf16.mxu0 0
  %459 = vmatpush1.bf16.msra.mxu0 %v438
  %460 = vmatprep.subr.bf16.mxu0 0
  %461 = vmatpush1.bf16.msra.mxu0 %v439
  %462 = vmatprep.subr.bf16.mxu0 0
  %463 = vmatpush1.bf16.msra.mxu0 %v440
  %464 = vmatprep.subr.bf16.mxu0 0
  %465 = vmatpush1.bf16.msra.mxu0 %v441
  %466 = vmatprep.subr.bf16.mxu0 0
  %467 = vmatpush1.bf16.msra.mxu0 0
  %468 = vmatprep.subr.bf16.mxu0 0
  %469 = vmatpush1.bf16.msra.mxu0 0
  %470 = vmatprep.subr.bf16.mxu0 0
  %471 = vmatpush1.bf16.msra.mxu0 0
  %472 = vmatprep.subr.bf16.mxu0 0
  %473 = vmatpush1.bf16.msra.mxu0 0
  %474 = vmatprep.subr.bf16.mxu0 0
  %475 = vmatpush1.bf16.msra.mxu0 0
  %476 = vmatprep.subr.bf16.mxu0 0
  %477 = vmatpush1.bf16.msra.mxu0 0
  %478 = vmatprep.subr.bf16.mxu0 0
  %479 = vmatpush1.bf16.msra.mxu0 0
  %480 = vmatprep.subr.bf16.mxu0 0
  %481 = vmatpush1.bf16.msra.mxu0 0
  %482 = vmatprep.mubr.bf16.mxu0 0
  %483 = vmatmul.mubr.bf16.gmra.mrb[0].mxu0 %v390
  %v484 = vpop.f32.mrb[0].mxu0
  %v485 = vadd.f32 %v320, %v484
  %v486 = vpop.f32.mrb[0].mxu0
  %v487 = vpop.f32.mrb[0].mxu0
  %v488 = vadd.f32 %v323, %v487
  %v489 = vpop.f32.mrb[0].mxu0
  %490 = vmatprep.mubr.bf16.mxu0 0
  %491 = vmatmul.mubr.bf16.gmra.mrb[0].mxu0 %v391
  %v492 = vpop.f32.mrb[0].mxu0
  %v493 = vadd.f32 %v328, %v492
  %v494 = vpop.f32.mrb[0].mxu0
  %v495 = vpop.f32.mrb[0].mxu0
  %v496 = vadd.f32 %v331, %v495
  %v497 = vpop.f32.mrb[0].mxu0
  %498 = vmatprep.mubr.bf16.mxu0 0
  %499 = vmatmul.mubr.bf16.gmra.mrb[0].mxu0 %v392
  %v500 = vpop.f32.mrb[0].mxu0
  %v501 = vadd.f32 %v336, %v500
  %v502 = vpop.f32.mrb[0].mxu0
  %v503 = vpop.f32.mrb[0].mxu0
  %v504 = vadd.f32 %v339, %v503
  %v505 = vpop.f32.mrb[0].mxu0
  %506 = vmatprep.mubr.bf16.mxu0 0
  %507 = vmatmul.mubr.bf16.gmra.mrb[0].mxu0 %v393
  %v508 = vpop.f32.mrb[0].mxu0
  %v509 = vadd.f32 %v344, %v508
  %v510 = vpop.f32.mrb[0].mxu0
  %v511 = vpop.f32.mrb[0].mxu0
  %v512 = vadd.f32 %v347, %v511
  %v513 = vpop.f32.mrb[0].mxu0
  %514 = vmatprep.mubr.bf16.mxu0 0
  %515 = vmatmul.mubr.bf16.gmra.mrb[0].mxu0 %v394
  %v516 = vpop.f32.mrb[0].mxu0
  %v517 = vadd.f32 %v352, %v516
  %v518 = vpop.f32.mrb[0].mxu0
  %v519 = vpop.f32.mrb[0].mxu0
  %v520 = vadd.f32 %v355, %v519
  %v521 = vpop.f32.mrb[0].mxu0
  %522 = vmatprep.mubr.bf16.mxu0 0
  %523 = vmatmul.mubr.bf16.gmra.mrb[0].mxu0 %v395
  %v524 = vpop.f32.mrb[0].mxu0
  %v525 = vadd.f32 %v360, %v524
  %v526 = vpop.f32.mrb[0].mxu0
  %v527 = vpop.f32.mrb[0].mxu0
  %v528 = vadd.f32 %v363, %v527
  %v529 = vpop.f32.mrb[0].mxu0
  %530 = vdwg.mxu0
  %s531 = scalar_lea.vmem %s0, 12
  %v532 = vld [vmem:[%s531] sm:$0xf]
  %v533 = vld [vmem:[%s531 + $0x4] sm:$0xf]
  %v534 = vld [vmem:[%s531 + $0xc] sm:$0xf]
  %v535 = vld [vmem:[%s531 + $0x10] sm:$0xf]
  %v536 = vld [vmem:[%s531 + $0x18] sm:$0xf]
  %v537 = vld [vmem:[%s531 + $0x1c] sm:$0xf]
  %v538 = vld [vmem:[%s531 + $0x30] sm:$0xf]
  %v539 = vld [vmem:[%s531 + $0x34] sm:$0xf]
  %v540 = vld [vmem:[%s531 + $0x3c] sm:$0xf]
  %v541 = vld [vmem:[%s531 + $0x40] sm:$0xf]
  %v542 = vld [vmem:[%s531 + $0x48] sm:$0xf]
  %v543 = vld [vmem:[%s531 + $0x4c] sm:$0xf]
  %s544 = scalar_lea.vmem %s1, 128
  %v545 = vld [vmem:[%s544] sm:$0xf]
  %v546 = vld [vmem:[%s544 + $0x4] sm:$0xf]
  %v547 = vld [vmem:[%s544 + $0x8] sm:$0xf]
  %v548 = vld [vmem:[%s544 + $0xc] sm:$0xf]
  %v549 = vld [vmem:[%s544 + $0x10] sm:$0xf]
  %v550 = vld [vmem:[%s544 + $0x14] sm:$0xf]
  %v551 = vld [vmem:[%s544 + $0x18] sm:$0xf]
  %v552 = vld [vmem:[%s544 + $0x1c] sm:$0xf]
  %v553 = vld [vmem:[%s544 + $0x20] sm:$0xf]
  %v554 = vld [vmem:[%s544 + $0x24] sm:$0xf]
  %v555 = vld [vmem:[%s544 + $0x28] sm:$0xf]
  %v556 = vld [vmem:[%s544 + $0x2c] sm:$0xf]
  %v557 = vld [vmem:[%s544 + $0x30] sm:$0xf]
  %v558 = vld [vmem:[%s544 + $0x34] sm:$0xf]
  %v559 = vld [vmem:[%s544 + $0x38] sm:$0xf]
  %v560 = vld [vmem:[%s544 + $0x3c] sm:$0xf]
  %v573 = vunpack.c.l.b16 %v532
  %v574 = vunpack.c.l.b16 %v533
  %v575 = vunpack.c.l.b16 %v534
  %v576 = vunpack.c.l.b16 %v535
  %v577 = vunpack.c.l.b16 %v536
  %v578 = vunpack.c.l.b16 %v537
  %v579 = vunpack.c.l.b16 %v538
  %v580 = vunpack.c.l.b16 %v539
  %v581 = vunpack.c.l.b16 %v540
  %v582 = vunpack.c.l.b16 %v541
  %v583 = vunpack.c.l.b16 %v542
  %v584 = vunpack.c.l.b16 %v543
  %v585 = vpack.c.b16 %v574, %v573
  %v586 = vpack.c.b16 %v576, %v575
  %v587 = vpack.c.b16 %v578, %v577
  %v588 = vpack.c.b16 %v580, %v579
  %v589 = vpack.c.b16 %v582, %v581
  %v590 = vpack.c.b16 %v584, %v583
  %v613 = vunpack.c.l.b16 %v545
  %v614 = vunpack.c.l.b16 %v546
  %v615 = vunpack.c.l.b16 %v547
  %v616 = vunpack.c.l.b16 %v548
  %v617 = vunpack.c.l.b16 %v549
  %v618 = vunpack.c.l.b16 %v550
  %v619 = vunpack.c.l.b16 %v551
  %v620 = vunpack.c.l.b16 %v552
  %v621 = vunpack.c.l.b16 %v553
  %v622 = vunpack.c.l.b16 %v554
  %v623 = vunpack.c.l.b16 %v555
  %v624 = vunpack.c.l.b16 %v556
  %v625 = vunpack.c.l.b16 %v557
  %v626 = vunpack.c.l.b16 %v558
  %v627 = vunpack.c.l.b16 %v559
  %v628 = vunpack.c.l.b16 %v560
  %v629 = vpack.c.b16 %v614, %v613
  %v630 = vpack.c.b16 %v616, %v615
  %v631 = vpack.c.b16 %v618, %v617
  %v632 = vpack.c.b16 %v620, %v619
  %v633 = vpack.c.b16 %v622, %v621
  %v634 = vpack.c.b16 %v624, %v623
  %v635 = vpack.c.b16 %v626, %v625
  %v636 = vpack.c.b16 %v628, %v627
  %645 = vmatprep.subr.bf16.mxu0 0
  %646 = vmatpush1.bf16.msra.mxu0 %v629
  %647 = vmatprep.subr.bf16.mxu0 0
  %648 = vmatpush1.bf16.msra.mxu0 %v630
  %649 = vmatprep.subr.bf16.mxu0 0
  %650 = vmatpush1.bf16.msra.mxu0 %v631
  %651 = vmatprep.subr.bf16.mxu0 0
  %652 = vmatpush1.bf16.msra.mxu0 %v632
  %653 = vmatprep.subr.bf16.mxu0 0
  %654 = vmatpush1.bf16.msra.mxu0 %v633
  %655 = vmatprep.subr.bf16.mxu0 0
  %656 = vmatpush1.bf16.msra.mxu0 %v634
  %657 = vmatprep.subr.bf16.mxu0 0
  %658 = vmatpush1.bf16.msra.mxu0 %v635
  %659 = vmatprep.subr.bf16.mxu0 0
  %660 = vmatpush1.bf16.msra.mxu0 %v636
  %661 = vmatprep.subr.bf16.mxu0 0
  %662 = vmatpush1.bf16.msra.mxu0 0
  %663 = vmatprep.subr.bf16.mxu0 0
  %664 = vmatpush1.bf16.msra.mxu0 0
  %665 = vmatprep.subr.bf16.mxu0 0
  %666 = vmatpush1.bf16.msra.mxu0 0
  %667 = vmatprep.subr.bf16.mxu0 0
  %668 = vmatpush1.bf16.msra.mxu0 0
  %669 = vmatprep.subr.bf16.mxu0 0
  %670 = vmatpush1.bf16.msra.mxu0 0
  %671 = vmatprep.subr.bf16.mxu0 0
  %672 = vmatpush1.bf16.msra.mxu0 0
  %673 = vmatprep.subr.bf16.mxu0 0
  %674 = vmatpush1.bf16.msra.mxu0 0
  %675 = vmatprep.subr.bf16.mxu0 0
  %676 = vmatpush1.bf16.msra.mxu0 0
  %677 = vmatprep.mubr.bf16.mxu0 0
  %678 = vmatmul.mubr.bf16.gmra.mrb[0].mxu0 %v585
  %v679 = vpop.f32.mrb[0].mxu0
  %v680 = vadd.f32 0.0, %v679
  %v681 = vpop.f32.mrb[0].mxu0
  %v682 = vpop.f32.mrb[0].mxu0
  %v683 = vadd.f32 0.0, %v682
  %v684 = vpop.f32.mrb[0].mxu0
  %685 = vmatprep.mubr.bf16.mxu0 0
  %686 = vmatmul.mubr.bf16.gmra.mrb[0].mxu0 %v586
  %v687 = vpop.f32.mrb[0].mxu0
  %v688 = vadd.f32 0.0, %v687
  %v689 = vpop.f32.mrb[0].mxu0
  %v690 = vpop.f32.mrb[0].mxu0
  %v691 = vadd.f32 0.0, %v690
  %v692 = vpop.f32.mrb[0].mxu0
  %693 = vmatprep.mubr.bf16.mxu0 0
  %694 = vmatmul.mubr.bf16.gmra.mrb[0].mxu0 %v587
  %v695 = vpop.f32.mrb[0].mxu0
  %v696 = vadd.f32 0.0, %v695
  %v697 = vpop.f32.mrb[0].mxu0
  %v698 = vpop.f32.mrb[0].mxu0
  %v699 = vadd.f32 0.0, %v698
  %v700 = vpop.f32.mrb[0].mxu0
  %701 = vmatprep.mubr.bf16.mxu0 0
  %702 = vmatmul.mubr.bf16.gmra.mrb[0].mxu0 %v588
  %v703 = vpop.f32.mrb[0].mxu0
  %v704 = vadd.f32 0.0, %v703
  %v705 = vpop.f32.mrb[0].mxu0
  %v706 = vpop.f32.mrb[0].mxu0
  %v707 = vadd.f32 0.0, %v706
  %v708 = vpop.f32.mrb[0].mxu0
  %709 = vmatprep.mubr.bf16.mxu0 0
  %710 = vmatmul.mubr.bf16.gmra.mrb[0].mxu0 %v589
  %v711 = vpop.f32.mrb[0].mxu0
  %v712 = vadd.f32 0.0, %v711
  %v713 = vpop.f32.mrb[0].mxu0
  %v714 = vpop.f32.mrb[0].mxu0
  %v715 = vadd.f32 0.0, %v714
  %v716 = vpop.f32.mrb[0].mxu0
  %717 = vmatprep.mubr.bf16.mxu0 0
  %718 = vmatmul.mubr.bf16.gmra.mrb[0].mxu0 %v590
  %v719 = vpop.f32.mrb[0].mxu0
  %v720 = vadd.f32 0.0, %v719
  %v721 = vpop.f32.mrb[0].mxu0
  %v722 = vpop.f32.mrb[0].mxu0
  %v723 = vadd.f32 0.0, %v722
  %v724 = vpop.f32.mrb[0].mxu0
  %725 = vdwg.mxu0
  %v726 = vadd.f32 %v485, %v680
  %v727 = vadd.f32 %v488, %v683
  %v728 = vadd.f32 %v493, %v688
  %v729 = vadd.f32 %v496, %v691
  %v730 = vadd.f32 %v501, %v696
  %v731 = vadd.f32 %v504, %v699
  %v732 = vadd.f32 %v509, %v704
  %v733 = vadd.f32 %v512, %v707
  %v734 = vadd.f32 %v517, %v712
  %v735 = vadd.f32 %v520, %v715
  %v736 = vadd.f32 %v525, %v720
  %v737 = vadd.f32 %v528, %v723
  %v738 = vld [vmem:[%s531] sm:$0xf]
  %v739 = vld [vmem:[%s531 + $0x4] sm:$0xf]
  %v740 = vld [vmem:[%s531 + $0x8] sm:$0x1]
  %v741 = vld [vmem:[%s531 + $0xc] sm:$0xf]
  %v742 = vld [vmem:[%s531 + $0x10] sm:$0xf]
  %v743 = vld [vmem:[%s531 + $0x14] sm:$0x1]
  %v744 = vld [vmem:[%s531 + $0x18] sm:$0xf]
  %v745 = vld [vmem:[%s531 + $0x1c] sm:$0xf]
  %v746 = vld [vmem:[%s531 + $0x20] sm:$0x1]
  %v747 = vld [vmem:[%s531 + $0x30] sm:$0xf]
  %v748 = vld [vmem:[%s531 + $0x34] sm:$0xf]
  %v749 = vld [vmem:[%s531 + $0x38] sm:$0x1]
  %v750 = vld [vmem:[%s531 + $0x3c] sm:$0xf]
  %v751 = vld [vmem:[%s531 + $0x40] sm:$0xf]
  %v752 = vld [vmem:[%s531 + $0x44] sm:$0x1]
  %v753 = vld [vmem:[%s531 + $0x48] sm:$0xf]
  %v754 = vld [vmem:[%s531 + $0x4c] sm:$0xf]
  %v755 = vld [vmem:[%s531 + $0x50] sm:$0x1]
  %v757 = vshrl.u32 %v738, 16
  %v759 = vrot.slane %v757, 4
  %v760 = vshll.u32 %v738, 16
  %v762 = vrot.slane %v760, 5
  %v763 = vor.u32 %v759, %v762
  %v764 = vrot.slane %v763, 4
  %v766 = vshll.u32 %v739, 16
  %v768 = vrot.slane %v766, 5
  %v769 = vsel %vm51, %v764, %v768
  %v770 = vshrl.u32 %v739, 16
  %v772 = vrot.slane %v770, 4
  %v773 = vor.u32 %v772, %v768
  %v774 = vrot.slane %v773, 4
  %v776 = vshll.u32 %v740, 16
  %v778 = vrot.slane %v776, 5
  %v779 = vsel %vm51, %v774, %v778
  %v781 = vshrl.u32 %v741, 16
  %v783 = vrot.slane %v781, 4
  %v784 = vshll.u32 %v741, 16
  %v786 = vrot.slane %v784, 5
  %v787 = vor.u32 %v783, %v786
  %v788 = vrot.slane %v787, 4
  %v790 = vshll.u32 %v742, 16
  %v792 = vrot.slane %v790, 5
  %v793 = vsel %vm51, %v788, %v792
  %v794 = vshrl.u32 %v742, 16
  %v796 = vrot.slane %v794, 4
  %v797 = vor.u32 %v796, %v792
  %v798 = vrot.slane %v797, 4
  %v800 = vshll.u32 %v743, 16
  %v802 = vrot.slane %v800, 5
  %v803 = vsel %vm51, %v798, %v802
  %v805 = vshrl.u32 %v744, 16
  %v807 = vrot.slane %v805, 4
  %v808 = vshll.u32 %v744, 16
  %v810 = vrot.slane %v808, 5
  %v811 = vor.u32 %v807, %v810
  %v812 = vrot.slane %v811, 4
  %v814 = vshll.u32 %v745, 16
  %v816 = vrot.slane %v814, 5
  %v817 = vsel %vm51, %v812, %v816
  %v818 = vshrl.u32 %v745, 16
  %v820 = vrot.slane %v818, 4
  %v821 = vor.u32 %v820, %v816
  %v822 = vrot.slane %v821, 4
  %v824 = vshll.u32 %v746, 16
  %v826 = vrot.slane %v824, 5
  %v827 = vsel %vm51, %v822, %v826
  %v829 = vshrl.u32 %v747, 16
  %v831 = vrot.slane %v829, 4
  %v832 = vshll.u32 %v747, 16
  %v834 = vrot.slane %v832, 5
  %v835 = vor.u32 %v831, %v834
  %v836 = vrot.slane %v835, 4
  %v838 = vshll.u32 %v748, 16
  %v840 = vrot.slane %v838, 5
  %v841 = vsel %vm51, %v836, %v840
  %v842 = vshrl.u32 %v748, 16
  %v844 = vrot.slane %v842, 4
  %v845 = vor.u32 %v844, %v840
  %v846 = vrot.slane %v845, 4
  %v848 = vshll.u32 %v749, 16
  %v850 = vrot.slane %v848, 5
  %v851 = vsel %vm51, %v846, %v850
  %v853 = vshrl.u32 %v750, 16
  %v855 = vrot.slane %v853, 4
  %v856 = vshll.u32 %v750, 16
  %v858 = vrot.slane %v856, 5
  %v859 = vor.u32 %v855, %v858
  %v860 = vrot.slane %v859, 4
  %v862 = vshll.u32 %v751, 16
  %v864 = vrot.slane %v862, 5
  %v865 = vsel %vm51, %v860, %v864
  %v866 = vshrl.u32 %v751, 16
  %v868 = vrot.slane %v866, 4
  %v869 = vor.u32 %v868, %v864
  %v870 = vrot.slane %v869, 4
  %v872 = vshll.u32 %v752, 16
  %v874 = vrot.slane %v872, 5
  %v875 = vsel %vm51, %v870, %v874
  %v877 = vshrl.u32 %v753, 16
  %v879 = vrot.slane %v877, 4
  %v880 = vshll.u32 %v753, 16
  %v882 = vrot.slane %v880, 5
  %v883 = vor.u32 %v879, %v882
  %v884 = vrot.slane %v883, 4
  %v886 = vshll.u32 %v754, 16
  %v888 = vrot.slane %v886, 5
  %v889 = vsel %vm51, %v884, %v888
  %v890 = vshrl.u32 %v754, 16
  %v892 = vrot.slane %v890, 4
  %v893 = vor.u32 %v892, %v888
  %v894 = vrot.slane %v893, 4
  %v896 = vshll.u32 %v755, 16
  %v898 = vrot.slane %v896, 5
  %v899 = vsel %vm51, %v894, %v898
  %s900 = scalar_lea.vmem %s1, 192
  %v901 = vld [vmem:[%s900] sm:$0xf]
  %v902 = vld [vmem:[%s900 + $0x4] sm:$0xf]
  %v903 = vld [vmem:[%s900 + $0x8] sm:$0xf]
  %v904 = vld [vmem:[%s900 + $0xc] sm:$0xf]
  %v905 = vld [vmem:[%s900 + $0x10] sm:$0xf]
  %v906 = vld [vmem:[%s900 + $0x14] sm:$0xf]
  %v907 = vld [vmem:[%s900 + $0x18] sm:$0xf]
  %v908 = vld [vmem:[%s900 + $0x1c] sm:$0xf]
  %v909 = vld [vmem:[%s900 + $0x20] sm:$0xf]
  %v910 = vld [vmem:[%s900 + $0x24] sm:$0xf]
  %v911 = vld [vmem:[%s900 + $0x28] sm:$0xf]
  %v912 = vld [vmem:[%s900 + $0x2c] sm:$0xf]
  %v913 = vld [vmem:[%s900 + $0x30] sm:$0xf]
  %v914 = vld [vmem:[%s900 + $0x34] sm:$0xf]
  %v915 = vld [vmem:[%s900 + $0x38] sm:$0xf]
  %v916 = vld [vmem:[%s900 + $0x3c] sm:$0xf]
  %v917 = vunpack.c.l.b16 %v769
  %v918 = vunpack.c.l.b16 %v779
  %v919 = vunpack.c.l.b16 %v793
  %v920 = vunpack.c.l.b16 %v803
  %v921 = vunpack.c.l.b16 %v817
  %v922 = vunpack.c.l.b16 %v827
  %v923 = vunpack.c.l.b16 %v841
  %v924 = vunpack.c.l.b16 %v851
  %v925 = vunpack.c.l.b16 %v865
  %v926 = vunpack.c.l.b16 %v875
  %v927 = vunpack.c.l.b16 %v889
  %v928 = vunpack.c.l.b16 %v899
  %v929 = vpack.c.b16 %v918, %v917
  %v930 = vpack.c.b16 %v920, %v919
  %v931 = vpack.c.b16 %v922, %v921
  %v932 = vpack.c.b16 %v924, %v923
  %v933 = vpack.c.b16 %v926, %v925
  %v934 = vpack.c.b16 %v928, %v927
  %v957 = vunpack.c.l.b16 %v901
  %v958 = vunpack.c.l.b16 %v902
  %v959 = vunpack.c.l.b16 %v903
  %v960 = vunpack.c.l.b16 %v904
  %v961 = vunpack.c.l.b16 %v905
  %v962 = vunpack.c.l.b16 %v906
  %v963 = vunpack.c.l.b16 %v907
  %v964 = vunpack.c.l.b16 %v908
  %v965 = vunpack.c.l.b16 %v909
  %v966 = vunpack.c.l.b16 %v910
  %v967 = vunpack.c.l.b16 %v911
  %v968 = vunpack.c.l.b16 %v912
  %v969 = vunpack.c.l.b16 %v913
  %v970 = vunpack.c.l.b16 %v914
  %v971 = vunpack.c.l.b16 %v915
  %v972 = vunpack.c.l.b16 %v916
  %v973 = vpack.c.b16 %v958, %v957
  %v974 = vpack.c.b16 %v960, %v959
  %v975 = vpack.c.b16 %v962, %v961
  %v976 = vpack.c.b16 %v964, %v963
  %v977 = vpack.c.b16 %v966, %v965
  %v978 = vpack.c.b16 %v968, %v967
  %v979 = vpack.c.b16 %v970, %v969
  %v980 = vpack.c.b16 %v972, %v971
  %989 = vmatprep.subr.bf16.mxu0 0
  %990 = vmatpush1.bf16.msra.mxu0 %v973
  %991 = vmatprep.subr.bf16.mxu0 0
  %992 = vmatpush1.bf16.msra.mxu0 %v974
  %993 = vmatprep.subr.bf16.mxu0 0
  %994 = vmatpush1.bf16.msra.mxu0 %v975
  %995 = vmatprep.subr.bf16.mxu0 0
  %996 = vmatpush1.bf16.msra.mxu0 %v976
  %997 = vmatprep.subr.bf16.mxu0 0
  %998 = vmatpush1.bf16.msra.mxu0 %v977
  %999 = vmatprep.subr.bf16.mxu0 0
  %1000 = vmatpush1.bf16.msra.mxu0 %v978
  %1001 = vmatprep.subr.bf16.mxu0 0
  %1002 = vmatpush1.bf16.msra.mxu0 %v979
  %1003 = vmatprep.subr.bf16.mxu0 0
  %1004 = vmatpush1.bf16.msra.mxu0 %v980
  %1005 = vmatprep.subr.bf16.mxu0 0
  %1006 = vmatpush1.bf16.msra.mxu0 0
  %1007 = vmatprep.subr.bf16.mxu0 0
  %1008 = vmatpush1.bf16.msra.mxu0 0
  %1009 = vmatprep.subr.bf16.mxu0 0
  %1010 = vmatpush1.bf16.msra.mxu0 0
  %1011 = vmatprep.subr.bf16.mxu0 0
  %1012 = vmatpush1.bf16.msra.mxu0 0
  %1013 = vmatprep.subr.bf16.mxu0 0
  %1014 = vmatpush1.bf16.msra.mxu0 0
  %1015 = vmatprep.subr.bf16.mxu0 0
  %1016 = vmatpush1.bf16.msra.mxu0 0
  %1017 = vmatprep.subr.bf16.mxu0 0
  %1018 = vmatpush1.bf16.msra.mxu0 0
  %1019 = vmatprep.subr.bf16.mxu0 0
  %1020 = vmatpush1.bf16.msra.mxu0 0
  %1021 = vmatprep.mubr.bf16.mxu0 0
  %1022 = vmatmul.mubr.bf16.gmra.mrb[0].mxu0 %v929
  %v1023 = vpop.f32.mrb[0].mxu0
  %v1024 = vadd.f32 0.0, %v1023
  %v1025 = vpop.f32.mrb[0].mxu0
  %v1026 = vpop.f32.mrb[0].mxu0
  %v1027 = vadd.f32 0.0, %v1026
  %v1028 = vpop.f32.mrb[0].mxu0
  %1029 = vmatprep.mubr.bf16.mxu0 0
  %1030 = vmatmul.mubr.bf16.gmra.mrb[0].mxu0 %v930
  %v1031 = vpop.f32.mrb[0].mxu0
  %v1032 = vadd.f32 0.0, %v1031
  %v1033 = vpop.f32.mrb[0].mxu0
  %v1034 = vpop.f32.mrb[0].mxu0
  %v1035 = vadd.f32 0.0, %v1034
  %v1036 = vpop.f32.mrb[0].mxu0
  %1037 = vmatprep.mubr.bf16.mxu0 0
  %1038 = vmatmul.mubr.bf16.gmra.mrb[0].mxu0 %v931
  %v1039 = vpop.f32.mrb[0].mxu0
  %v1040 = vadd.f32 0.0, %v1039
  %v1041 = vpop.f32.mrb[0].mxu0
  %v1042 = vpop.f32.mrb[0].mxu0
  %v1043 = vadd.f32 0.0, %v1042
  %v1044 = vpop.f32.mrb[0].mxu0
  %1045 = vmatprep.mubr.bf16.mxu0 0
  %1046 = vmatmul.mubr.bf16.gmra.mrb[0].mxu0 %v932
  %v1047 = vpop.f32.mrb[0].mxu0
  %v1048 = vadd.f32 0.0, %v1047
  %v1049 = vpop.f32.mrb[0].mxu0
  %v1050 = vpop.f32.mrb[0].mxu0
  %v1051 = vadd.f32 0.0, %v1050
  %v1052 = vpop.f32.mrb[0].mxu0
  %1053 = vmatprep.mubr.bf16.mxu0 0
  %1054 = vmatmul.mubr.bf16.gmra.mrb[0].mxu0 %v933
  %v1055 = vpop.f32.mrb[0].mxu0
  %v1056 = vadd.f32 0.0, %v1055
  %v1057 = vpop.f32.mrb[0].mxu0
  %v1058 = vpop.f32.mrb[0].mxu0
  %v1059 = vadd.f32 0.0, %v1058
  %v1060 = vpop.f32.mrb[0].mxu0
  %1061 = vmatprep.mubr.bf16.mxu0 0
  %1062 = vmatmul.mubr.bf16.gmra.mrb[0].mxu0 %v934
  %v1063 = vpop.f32.mrb[0].mxu0
  %v1064 = vadd.f32 0.0, %v1063
  %v1065 = vpop.f32.mrb[0].mxu0
  %v1066 = vpop.f32.mrb[0].mxu0
  %v1067 = vadd.f32 0.0, %v1066
  %v1068 = vpop.f32.mrb[0].mxu0
  %1069 = vdwg.mxu0
  %v1070 = vadd.f32 %v726, %v1024
  %v1071 = vadd.f32 %v727, %v1027
  %v1072 = vadd.f32 %v728, %v1032
  %v1073 = vadd.f32 %v729, %v1035
  %v1074 = vadd.f32 %v730, %v1040
  %v1075 = vadd.f32 %v731, %v1043
  %v1076 = vadd.f32 %v732, %v1048
  %v1077 = vadd.f32 %v733, %v1051
  %v1078 = vadd.f32 %v734, %v1056
  %v1079 = vadd.f32 %v735, %v1059
  %v1080 = vadd.f32 %v736, %v1064
  %v1081 = vadd.f32 %v737, %v1067
  %v1082 = vld [vmem:[%s2] sm:$0x1]
  %v1084 = vlaneseq
  %v1085 = vshrl.u32 %v1084, 7
  %v1086 = vsub.s32 0, %v1085
  %v1087 = vrot.slane %v1082, %v1086
  %v1089 = vadd.f32 %v1070, %v1087
  %v1090 = vadd.f32 %v1071, %v1087
  %v1091 = vadd.f32 %v1072, %v1087
  %v1092 = vadd.f32 %v1073, %v1087
  %v1093 = vadd.f32 %v1074, %v1087
  %v1094 = vadd.f32 %v1075, %v1087
  %v1095 = vadd.f32 %v1076, %v1087
  %v1096 = vadd.f32 %v1077, %v1087
  %v1097 = vadd.f32 %v1078, %v1087
  %v1098 = vadd.f32 %v1079, %v1087
  %v1099 = vadd.f32 %v1080, %v1087
  %v1100 = vadd.f32 %v1081, %v1087
  %v1101 = vmax.f32 %v1089, 0.0
  %v1102 = vmax.f32 %v1090, 0.0
  %v1103 = vmax.f32 %v1091, 0.0
  %v1104 = vmax.f32 %v1092, 0.0
  %v1105 = vmax.f32 %v1093, 0.0
  %v1106 = vmax.f32 %v1094, 0.0
  %v1107 = vmax.f32 %v1095, 0.0
  %v1108 = vmax.f32 %v1096, 0.0
  %v1109 = vmax.f32 %v1097, 0.0
  %v1110 = vmax.f32 %v1098, 0.0
  %v1111 = vmax.f32 %v1099, 0.0
  %v1112 = vmax.f32 %v1100, 0.0
  %v1113 = vpack.c.bf16 %v1102, %v1101
  %v1114 = vpack.c.bf16 %v1104, %v1103
  %v1115 = vpack.c.bf16 %v1106, %v1105
  %v1116 = vpack.c.bf16 %v1108, %v1107
  %v1117 = vpack.c.bf16 %v1110, %v1109
  %v1118 = vpack.c.bf16 %v1112, %v1111
  %v1125 = vunpack.c.l.b16 %v1113
  %v1126 = vunpack.c.h.b16 %v1113
  %v1127 = vunpack.c.l.b16 %v1114
  %v1128 = vunpack.c.h.b16 %v1114
  %v1129 = vunpack.c.l.b16 %v1115
  %v1130 = vunpack.c.h.b16 %v1115
  %v1131 = vunpack.c.l.b16 %v1116
  %v1132 = vunpack.c.h.b16 %v1116
  %v1133 = vunpack.c.l.b16 %v1117
  %v1134 = vunpack.c.h.b16 %v1117
  %v1135 = vunpack.c.l.b16 %v1118
  %v1136 = vunpack.c.h.b16 %v1118
  %v1137 = vpack.c.b16 %v1125, %v1125
  %v1138 = vpack.c.b16 %v1126, %v1126
  %v1139 = vpack.c.b16 %v1127, %v1127
  %v1140 = vpack.c.b16 %v1128, %v1128
  %v1141 = vpack.c.b16 %v1129, %v1129
  %v1142 = vpack.c.b16 %v1130, %v1130
  %v1143 = vpack.c.b16 %v1131, %v1131
  %v1144 = vpack.c.b16 %v1132, %v1132
  %v1145 = vpack.c.b16 %v1133, %v1133
  %v1146 = vpack.c.b16 %v1134, %v1134
  %v1147 = vpack.c.b16 %v1135, %v1135
  %v1148 = vpack.c.b16 %v1136, %v1136
  %vm1161 = vcmask 519168
  %1162 = vst.msk [vmem:[%s3] sm:$0xf] %vm1161, %v1137
  %1163 = vst.msk [vmem:[%s3 + $0x4] sm:$0xf] %vm1161, %v1138
  %1164 = vst.msk [vmem:[%s3 + $0x8] sm:$0xf] %vm1161, %v1139
  %1165 = vst.msk [vmem:[%s3 + $0xc] sm:$0xf] %vm1161, %v1140
  %1166 = vst.msk [vmem:[%s3 + $0x10] sm:$0xf] %vm1161, %v1141
  %1167 = vst.msk [vmem:[%s3 + $0x14] sm:$0xf] %vm1161, %v1142
  %1168 = vst.msk [vmem:[%s3 + $0x18] sm:$0xf] %vm1161, %v1143
  %1169 = vst.msk [vmem:[%s3 + $0x1c] sm:$0xf] %vm1161, %v1144
  %1170 = vst.msk [vmem:[%s3 + $0x20] sm:$0xf] %vm1161, %v1145
  %1171 = vst.msk [vmem:[%s3 + $0x24] sm:$0xf] %vm1161, %v1146
  %1172 = vst.msk [vmem:[%s3 + $0x28] sm:$0xf] %vm1161, %v1147
  %1173 = vst.msk [vmem:[%s3 + $0x2c] sm:$0xf] %vm1161, %v1148
  // Predicated region
  $region14: #{network_forward.5} parent=0 // pred_check
    _
  $region15: #{network_forward.5} parent=0 // pred_check_branch
    %1175 = sbr.rel (0) target = $region17
  $region16: #{network_forward.5} parent=0 // pred_region
    _
  $region17: #{network_forward.5} parent=0 // pred_fallthru
    _
  // Predicated region
  $region18: #{network_forward.5} parent=0 // pred_check
    _
  $region19: #{network_forward.5} parent=0 // pred_check_branch
    %1177 = sbr.rel (0) target = $region21
  $region20: #{network_forward.5} parent=0 // pred_region
    _
  $region21: #{network_forward.5} parent=0 // pred_fallthru
    _

// kernel: network_forward.4
$region0: #{network_forward.4}
  #allocation0 [shape = 'u32[]', space=smem, size = 0x4, offset = 0x4, fixed_abs, tag = 'smem constant byte address 0x4 - core index']
  #allocation1 [shape = 'u32[144,128]{1,0:T(1,128)}', space=vmem, size = 0x12000, scoped, tag = 'internal scratch']
  %s0 = inlined_call_operand.vmem [shape: bf16[2,9,17,64], index: 0, kind: input, shape index: {}]
  %s1 = inlined_call_operand.vmem [shape: bf16[4,64,32], index: 1, kind: input, shape index: {}]
  %s2 = inlined_call_operand.vmem [shape: f32[1,32], index: 2, kind: input, shape index: {}]
  %s3 = inlined_call_operand.vmem [shape: bf16[256,32], index: 3, kind: output, shape index: {}]
  %s4 = sld [smem:[#allocation0]]
  $region22: #{network_forward.4} parent=0
    _
  %s6 = ssub.s32 1, %s4
  %s7 = scalar_select 0, %s6, %s4
  // Predicated region
  $region2: #{network_forward.4} parent=0 // pred_check
    _
  $region3: #{network_forward.4} parent=0 // pred_check_branch
    %9 = sbr.rel (0) target = $region5
  $region4: #{network_forward.4} parent=0 // pred_region
    _
  $region5: #{network_forward.4} parent=0 // pred_fallthru
    _
  // Predicated region
  $region6: #{network_forward.4} parent=0 // pred_check
    _
  $region7: #{network_forward.4} parent=0 // pred_check_branch
    %11 = sbr.rel (0) target = $region9
  $region8: #{network_forward.4} parent=0 // pred_region
    _
  $region9: #{network_forward.4} parent=0 // pred_fallthru
    _
  // Predicated region
  $region10: #{network_forward.4} parent=0 // pred_check
    _
  $region11: #{network_forward.4} parent=0 // pred_check_branch
    %13 = sbr.rel (0) target = $region13
  $region12: #{network_forward.4} parent=0 // pred_region
    _
  $region13: #{network_forward.4} parent=0 // pred_fallthru
    _
  %v15 = vld [vmem:[%s0] sm:$0xf]
  %v16 = vld [vmem:[%s0 + $0x4] sm:$0xf]
  %v17 = vld [vmem:[%s0 + $0xc] sm:$0xf]
  %v18 = vld [vmem:[%s0 + $0x10] sm:$0xf]
  %v19 = vld [vmem:[%s0 + $0x18] sm:$0xf]
  %v20 = vld [vmem:[%s0 + $0x1c] sm:$0xf]
  %v21 = vld [vmem:[%s0 + $0x24] sm:$0xf]
  %v22 = vld [vmem:[%s0 + $0x28] sm:$0xf]
  %v23 = vld [vmem:[%s0 + $0x30] sm:$0xf]
  %v24 = vld [vmem:[%s0 + $0x34] sm:$0xf]
  %v25 = vld [vmem:[%s0 + $0x3c] sm:$0xf]
  %v26 = vld [vmem:[%s0 + $0x40] sm:$0xf]
  %v27 = vld [vmem:[%s0 + $0x48] sm:$0xf]
  %v28 = vld [vmem:[%s0 + $0x4c] sm:$0xf]
  %v29 = vld [vmem:[%s0 + $0x54] sm:$0xf]
  %v30 = vld [vmem:[%s0 + $0x58] sm:$0xf]
  %v31 = vld [vmem:[%s0 + $0x6c] sm:$0xf]
  %v32 = vld [vmem:[%s0 + $0x70] sm:$0xf]
  %v33 = vld [vmem:[%s0 + $0x78] sm:$0xf]
  %v34 = vld [vmem:[%s0 + $0x7c] sm:$0xf]
  %v35 = vld [vmem:[%s0 + $0x84] sm:$0xf]
  %v36 = vld [vmem:[%s0 + $0x88] sm:$0xf]
  %v37 = vld [vmem:[%s0 + $0x90] sm:$0xf]
  %v38 = vld [vmem:[%s0 + $0x94] sm:$0xf]
  %v39 = vld [vmem:[%s0 + $0x9c] sm:$0xf]
  %v40 = vld [vmem:[%s0 + $0xa0] sm:$0xf]
  %v41 = vld [vmem:[%s0 + $0xa8] sm:$0xf]
  %v42 = vld [vmem:[%s0 + $0xac] sm:$0xf]
  %v43 = vld [vmem:[%s0 + $0xb4] sm:$0xf]
  %v44 = vld [vmem:[%s0 + $0xb8] sm:$0xf]
  %v45 = vld [vmem:[%s0 + $0xc0] sm:$0xf]
  %v46 = vld [vmem:[%s0 + $0xc4] sm:$0xf]
  %v47 = vld [vmem:[%s1] sm:$0xf]
  %v48 = vld [vmem:[%s1 + $0x4] sm:$0xf]
  %v49 = vld [vmem:[%s1 + $0x8] sm:$0xf]
  %v50 = vld [vmem:[%s1 + $0xc] sm:$0xf]
  %v51 = vld [vmem:[%s1 + $0x10] sm:$0xf]
  %v52 = vld [vmem:[%s1 + $0x14] sm:$0xf]
  %v53 = vld [vmem:[%s1 + $0x18] sm:$0xf]
  %v54 = vld [vmem:[%s1 + $0x1c] sm:$0xf]
  %v55 = vld [vmem:[%s0 + $0x8] sm:$0x1]
  %v56 = vld [vmem:[%s0 + $0x14] sm:$0x1]
  %v57 = vld [vmem:[%s0 + $0x20] sm:$0x1]
  %v58 = vld [vmem:[%s0 + $0x2c] sm:$0x1]
  %v59 = vld [vmem:[%s0 + $0x38] sm:$0x1]
  %v60 = vld [vmem:[%s0 + $0x44] sm:$0x1]
  %v61 = vld [vmem:[%s0 + $0x50] sm:$0x1]
  %v62 = vld [vmem:[%s0 + $0x5c] sm:$0x1]
  %v63 = vld [vmem:[%s0 + $0x74] sm:$0x1]
  %v64 = vld [vmem:[%s0 + $0x80] sm:$0x1]
  %v65 = vld [vmem:[%s0 + $0x8c] sm:$0x1]
  %v66 = vld [vmem:[%s0 + $0x98] sm:$0x1]
  %v67 = vld [vmem:[%s0 + $0xa4] sm:$0x1]
  %v68 = vld [vmem:[%s0 + $0xb0] sm:$0x1]
  %v69 = vld [vmem:[%s0 + $0xbc] sm:$0x1]
  %v70 = vld [vmem:[%s0 + $0xc8] sm:$0x1]
  %vm71 = vsmask.f32 3328
  %vm72 = vsmask.f32 7440
  %vm73 = vmor %vm71, %vm72
  %v75 = vshrl.u32 %v15, 16
  %v77 = vrot.slane %v75, 4
  %v78 = vshll.u32 %v15, 16
  %v80 = vrot.slane %v78, 5
  %v81 = vor.u32 %v77, %v80
  %v82 = vrot.slane %v81, 4
  %v84 = vshll.u32 %v16, 16
  %v86 = vrot.slane %v84, 5
  %v87 = vsel %vm73, %v82, %v86
  %v88 = vshrl.u32 %v16, 16
  %v90 = vrot.slane %v88, 4
  %v91 = vor.u32 %v90, %v86
  %v92 = vrot.slane %v91, 4
  %v94 = vshll.u32 %v55, 16
  %v96 = vrot.slane %v94, 5
  %v97 = vsel %vm73, %v92, %v96
  %v99 = vshrl.u32 %v17, 16
  %v101 = vrot.slane %v99, 4
  %v102 = vshll.u32 %v17, 16
  %v104 = vrot.slane %v102, 5
  %v105 = vor.u32 %v101, %v104
  %v106 = vrot.slane %v105, 4
  %v108 = vshll.u32 %v18, 16
  %v110 = vrot.slane %v108, 5
  %v111 = vsel %vm73, %v106, %v110
  %v112 = vshrl.u32 %v18, 16
  %v114 = vrot.slane %v112, 4
  %v115 = vor.u32 %v114, %v110
  %v116 = vrot.slane %v115, 4
  %v118 = vshll.u32 %v56, 16
  %v120 = vrot.slane %v118, 5
  %v121 = vsel %vm73, %v116, %v120
  %v123 = vshrl.u32 %v19, 16
  %v125 = vrot.slane %v123, 4
  %v126 = vshll.u32 %v19, 16
  %v128 = vrot.slane %v126, 5
  %v129 = vor.u32 %v125, %v128
  %v130 = vrot.slane %v129, 4
  %v132 = vshll.u32 %v20, 16
  %v134 = vrot.slane %v132, 5
  %v135 = vsel %vm73, %v130, %v134
  %v136 = vshrl.u32 %v20, 16
  %v138 = vrot.slane %v136, 4
  %v139 = vor.u32 %v138, %v134
  %v140 = vrot.slane %v139, 4
  %v142 = vshll.u32 %v57, 16
  %v144 = vrot.slane %v142, 5
  %v145 = vsel %vm73, %v140, %v144
  %v147 = vshrl.u32 %v21, 16
  %v149 = vrot.slane %v147, 4
  %v150 = vshll.u32 %v21, 16
  %v152 = vrot.slane %v150, 5
  %v153 = vor.u32 %v149, %v152
  %v154 = vrot.slane %v153, 4
  %v156 = vshll.u32 %v22, 16
  %v158 = vrot.slane %v156, 5
  %v159 = vsel %vm73, %v154, %v158
  %v160 = vshrl.u32 %v22, 16
  %v162 = vrot.slane %v160, 4
  %v163 = vor.u32 %v162, %v158
  %v164 = vrot.slane %v163, 4
  %v166 = vshll.u32 %v58, 16
  %v168 = vrot.slane %v166, 5
  %v169 = vsel %vm73, %v164, %v168
  %v171 = vshrl.u32 %v23, 16
  %v173 = vrot.slane %v171, 4
  %v174 = vshll.u32 %v23, 16
  %v176 = vrot.slane %v174, 5
  %v177 = vor.u32 %v173, %v176
  %v178 = vrot.slane %v177, 4
  %v180 = vshll.u32 %v24, 16
  %v182 = vrot.slane %v180, 5
  %v183 = vsel %vm73, %v178, %v182
  %v184 = vshrl.u32 %v24, 16
  %v186 = vrot.slane %v184, 4
  %v187 = vor.u32 %v186, %v182
  %v188 = vrot.slane %v187, 4
  %v190 = vshll.u32 %v59, 16
  %v192 = vrot.slane %v190, 5
  %v193 = vsel %vm73, %v188, %v192
  %v195 = vshrl.u32 %v25, 16
  %v197 = vrot.slane %v195, 4
  %v198 = vshll.u32 %v25, 16
  %v200 = vrot.slane %v198, 5
  %v201 = vor.u32 %v197, %v200
  %v202 = vrot.slane %v201, 4
  %v204 = vshll.u32 %v26, 16
  %v206 = vrot.slane %v204, 5
  %v207 = vsel %vm73, %v202, %v206
  %v208 = vshrl.u32 %v26, 16
  %v210 = vrot.slane %v208, 4
  %v211 = vor.u32 %v210, %v206
  %v212 = vrot.slane %v211, 4
  %v214 = vshll.u32 %v60, 16
  %v216 = vrot.slane %v214, 5
  %v217 = vsel %vm73, %v212, %v216
  %v219 = vshrl.u32 %v27, 16
  %v221 = vrot.slane %v219, 4
  %v222 = vshll.u32 %v27, 16
  %v224 = vrot.slane %v222, 5
  %v225 = vor.u32 %v221, %v224
  %v226 = vrot.slane %v225, 4
  %v228 = vshll.u32 %v28, 16
  %v230 = vrot.slane %v228, 5
  %v231 = vsel %vm73, %v226, %v230
  %v232 = vshrl.u32 %v28, 16
  %v234 = vrot.slane %v232, 4
  %v235 = vor.u32 %v234, %v230
  %v236 = vrot.slane %v235, 4
  %v238 = vshll.u32 %v61, 16
  %v240 = vrot.slane %v238, 5
  %v241 = vsel %vm73, %v236, %v240
  %v243 = vshrl.u32 %v29, 16
  %v245 = vrot.slane %v243, 4
  %v246 = vshll.u32 %v29, 16
  %v248 = vrot.slane %v246, 5
  %v249 = vor.u32 %v245, %v248
  %v250 = vrot.slane %v249, 4
  %v252 = vshll.u32 %v30, 16
  %v254 = vrot.slane %v252, 5
  %v255 = vsel %vm73, %v250, %v254
  %v256 = vshrl.u32 %v30, 16
  %v258 = vrot.slane %v256, 4
  %v259 = vor.u32 %v258, %v254
  %v260 = vrot.slane %v259, 4
  %v262 = vshll.u32 %v62, 16
  %v264 = vrot.slane %v262, 5
  %v265 = vsel %vm73, %v260, %v264
  %v267 = vshrl.u32 %v31, 16
  %v269 = vrot.slane %v267, 4
  %v270 = vshll.u32 %v31, 16
  %v272 = vrot.slane %v270, 5
  %v273 = vor.u32 %v269, %v272
  %v274 = vrot.slane %v273, 4
  %v276 = vshll.u32 %v32, 16
  %v278 = vrot.slane %v276, 5
  %v279 = vsel %vm73, %v274, %v278
  %v280 = vshrl.u32 %v32, 16
  %v282 = vrot.slane %v280, 4
  %v283 = vor.u32 %v282, %v278
  %v284 = vrot.slane %v283, 4
  %v286 = vshll.u32 %v63, 16
  %v288 = vrot.slane %v286, 5
  %v289 = vsel %vm73, %v284, %v288
  %v291 = vshrl.u32 %v33, 16
  %v293 = vrot.slane %v291, 4
  %v294 = vshll.u32 %v33, 16
  %v296 = vrot.slane %v294, 5
  %v297 = vor.u32 %v293, %v296
  %v298 = vrot.slane %v297, 4
  %v300 = vshll.u32 %v34, 16
  %v302 = vrot.slane %v300, 5
  %v303 = vsel %vm73, %v298, %v302
  %v304 = vshrl.u32 %v34, 16
  %v306 = vrot.slane %v304, 4
  %v307 = vor.u32 %v306, %v302
  %v308 = vrot.slane %v307, 4
  %v310 = vshll.u32 %v64, 16
  %v312 = vrot.slane %v310, 5
  %v313 = vsel %vm73, %v308, %v312
  %v315 = vshrl.u32 %v35, 16
  %v317 = vrot.slane %v315, 4
  %v318 = vshll.u32 %v35, 16
  %v320 = vrot.slane %v318, 5
  %v321 = vor.u32 %v317, %v320
  %v322 = vrot.slane %v321, 4
  %v324 = vshll.u32 %v36, 16
  %v326 = vrot.slane %v324, 5
  %v327 = vsel %vm73, %v322, %v326
  %v328 = vshrl.u32 %v36, 16
  %v330 = vrot.slane %v328, 4
  %v331 = vor.u32 %v330, %v326
  %v332 = vrot.slane %v331, 4
  %v334 = vshll.u32 %v65, 16
  %v336 = vrot.slane %v334, 5
  %v337 = vsel %vm73, %v332, %v336
  %v339 = vshrl.u32 %v37, 16
  %v341 = vrot.slane %v339, 4
  %v342 = vshll.u32 %v37, 16
  %v344 = vrot.slane %v342, 5
  %v345 = vor.u32 %v341, %v344
  %v346 = vrot.slane %v345, 4
  %v348 = vshll.u32 %v38, 16
  %v350 = vrot.slane %v348, 5
  %v351 = vsel %vm73, %v346, %v350
  %v352 = vshrl.u32 %v38, 16
  %v354 = vrot.slane %v352, 4
  %v355 = vor.u32 %v354, %v350
  %v356 = vrot.slane %v355, 4
  %v358 = vshll.u32 %v66, 16
  %v360 = vrot.slane %v358, 5
  %v361 = vsel %vm73, %v356, %v360
  %v363 = vshrl.u32 %v39, 16
  %v365 = vrot.slane %v363, 4
  %v366 = vshll.u32 %v39, 16
  %v368 = vrot.slane %v366, 5
  %v369 = vor.u32 %v365, %v368
  %v370 = vrot.slane %v369, 4
  %v372 = vshll.u32 %v40, 16
  %v374 = vrot.slane %v372, 5
  %v375 = vsel %vm73, %v370, %v374
  %v376 = vshrl.u32 %v40, 16
  %v378 = vrot.slane %v376, 4
  %v379 = vor.u32 %v378, %v374
  %v380 = vrot.slane %v379, 4
  %v382 = vshll.u32 %v67, 16
  %v384 = vrot.slane %v382, 5
  %v385 = vsel %vm73, %v380, %v384
  %v387 = vshrl.u32 %v41, 16
  %v389 = vrot.slane %v387, 4
  %v390 = vshll.u32 %v41, 16
  %v392 = vrot.slane %v390, 5
  %v393 = vor.u32 %v389, %v392
  %v394 = vrot.slane %v393, 4
  %v396 = vshll.u32 %v42, 16
  %v398 = vrot.slane %v396, 5
  %v399 = vsel %vm73, %v394, %v398
  %v400 = vshrl.u32 %v42, 16
  %v402 = vrot.slane %v400, 4
  %v403 = vor.u32 %v402, %v398
  %v404 = vrot.slane %v403, 4
  %v406 = vshll.u32 %v68, 16
  %v408 = vrot.slane %v406, 5
  %v409 = vsel %vm73, %v404, %v408
  %v411 = vshrl.u32 %v43, 16
  %v413 = vrot.slane %v411, 4
  %v414 = vshll.u32 %v43, 16
  %v416 = vrot.slane %v414, 5
  %v417 = vor.u32 %v413, %v416
  %v418 = vrot.slane %v417, 4
  %v420 = vshll.u32 %v44, 16
  %v422 = vrot.slane %v420, 5
  %v423 = vsel %vm73, %v418, %v422
  %v424 = vshrl.u32 %v44, 16
  %v426 = vrot.slane %v424, 4
  %v427 = vor.u32 %v426, %v422
  %v428 = vrot.slane %v427, 4
  %v430 = vshll.u32 %v69, 16
  %v432 = vrot.slane %v430, 5
  %v433 = vsel %vm73, %v428, %v432
  %v435 = vshrl.u32 %v45, 16
  %v437 = vrot.slane %v435, 4
  %v438 = vshll.u32 %v45, 16
  %v440 = vrot.slane %v438, 5
  %v441 = vor.u32 %v437, %v440
  %v442 = vrot.slane %v441, 4
  %v444 = vshll.u32 %v46, 16
  %v446 = vrot.slane %v444, 5
  %v447 = vsel %vm73, %v442, %v446
  %v448 = vshrl.u32 %v46, 16
  %v450 = vrot.slane %v448, 4
  %v451 = vor.u32 %v450, %v446
  %v452 = vrot.slane %v451, 4
  %v454 = vshll.u32 %v70, 16
  %v456 = vrot.slane %v454, 5
  %v457 = vsel %vm73, %v452, %v456
  %s458 = scalar_lea.vmem %s1, 32
  %v459 = vld [vmem:[%s458] sm:$0xf]
  %v460 = vld [vmem:[%s458 + $0x4] sm:$0xf]
  %v461 = vld [vmem:[%s458 + $0x8] sm:$0xf]
  %v462 = vld [vmem:[%s458 + $0xc] sm:$0xf]
  %v463 = vld [vmem:[%s458 + $0x10] sm:$0xf]
  %v464 = vld [vmem:[%s458 + $0x14] sm:$0xf]
  %v465 = vld [vmem:[%s458 + $0x18] sm:$0xf]
  %v466 = vld [vmem:[%s458 + $0x1c] sm:$0xf]
  %v467 = vunpack.c.l.b16 %v87
  %v468 = vunpack.c.l.b16 %v97
  %v469 = vunpack.c.l.b16 %v111
  %v470 = vunpack.c.l.b16 %v121
  %v471 = vunpack.c.l.b16 %v135
  %v472 = vunpack.c.l.b16 %v145
  %v473 = vunpack.c.l.b16 %v159
  %v474 = vunpack.c.l.b16 %v169
  %v475 = vunpack.c.l.b16 %v183
  %v476 = vunpack.c.l.b16 %v193
  %v477 = vunpack.c.l.b16 %v207
  %v478 = vunpack.c.l.b16 %v217
  %v479 = vunpack.c.l.b16 %v231
  %v480 = vunpack.c.l.b16 %v241
  %v481 = vunpack.c.l.b16 %v255
  %v482 = vunpack.c.l.b16 %v265
  %v483 = vunpack.c.l.b16 %v279
  %v484 = vunpack.c.l.b16 %v289
  %v485 = vunpack.c.l.b16 %v303
  %v486 = vunpack.c.l.b16 %v313
  %v487 = vunpack.c.l.b16 %v327
  %v488 = vunpack.c.l.b16 %v337
  %v489 = vunpack.c.l.b16 %v351
  %v490 = vunpack.c.l.b16 %v361
  %v491 = vunpack.c.l.b16 %v375
  %v492 = vunpack.c.l.b16 %v385
  %v493 = vunpack.c.l.b16 %v399
  %v494 = vunpack.c.l.b16 %v409
  %v495 = vunpack.c.l.b16 %v423
  %v496 = vunpack.c.l.b16 %v433
  %v497 = vunpack.c.l.b16 %v447
  %v498 = vunpack.c.l.b16 %v457
  %v499 = vpack.c.b16 %v468, %v467
  %v500 = vpack.c.b16 %v470, %v469
  %v501 = vpack.c.b16 %v472, %v471
  %v502 = vpack.c.b16 %v474, %v473
  %v503 = vpack.c.b16 %v476, %v475
  %v504 = vpack.c.b16 %v478, %v477
  %v505 = vpack.c.b16 %v480, %v479
  %v506 = vpack.c.b16 %v482, %v481
  %v507 = vpack.c.b16 %v484, %v483
  %v508 = vpack.c.b16 %v486, %v485
  %v509 = vpack.c.b16 %v488, %v487
  %v510 = vpack.c.b16 %v490, %v489
  %v511 = vpack.c.b16 %v492, %v491
  %v512 = vpack.c.b16 %v494, %v493
  %v513 = vpack.c.b16 %v496, %v495
  %v514 = vpack.c.b16 %v498, %v497
  %v523 = vunpack.c.l.b16 %v459
  %v524 = vunpack.c.l.b16 %v460
  %v525 = vunpack.c.l.b16 %v461
  %v526 = vunpack.c.l.b16 %v462
  %v527 = vunpack.c.l.b16 %v463
  %v528 = vunpack.c.l.b16 %v464
  %v529 = vunpack.c.l.b16 %v465
  %v530 = vunpack.c.l.b16 %v466
  %v531 = vpack.c.b16 %v524, %v523
  %v532 = vpack.c.b16 %v526, %v525
  %v533 = vpack.c.b16 %v528, %v527
  %v534 = vpack.c.b16 %v530, %v529
  %vm539 = vcmask 523264
  %v541 = vsel %vm539, %v499, 0
  %v544 = vsel %vm539, %v500, 0
  %v547 = vsel %vm539, %v501, 0
  %v550 = vsel %vm539, %v502, 0
  %v553 = vsel %vm539, %v503, 0
  %v556 = vsel %vm539, %v504, 0
  %v559 = vsel %vm539, %v505, 0
  %v562 = vsel %vm539, %v506, 0
  %v565 = vsel %vm539, %v507, 0
  %v568 = vsel %vm539, %v508, 0
  %v571 = vsel %vm539, %v509, 0
  %v574 = vsel %vm539, %v510, 0
  %v577 = vsel %vm539, %v511, 0
  %v580 = vsel %vm539, %v512, 0
  %v583 = vsel %vm539, %v513, 0
  %v586 = vsel %vm539, %v514, 0
  %588 = vmatprep.subr.bf16.mxu0 0
  %589 = vmatpush1.bf16.msra.mxu0 %v531
  %590 = vmatprep.subr.bf16.mxu0 0
  %591 = vmatpush1.bf16.msra.mxu0 %v532
  %592 = vmatprep.subr.bf16.mxu0 0
  %593 = vmatpush1.bf16.msra.mxu0 %v533
  %594 = vmatprep.subr.bf16.mxu0 0
  %595 = vmatpush1.bf16.msra.mxu0 %v534
  %596 = vmatprep.subr.bf16.mxu0 0
  %597 = vmatpush1.bf16.msra.mxu0 0
  %598 = vmatprep.subr.bf16.mxu0 0
  %599 = vmatpush1.bf16.msra.mxu0 0
  %600 = vmatprep.subr.bf16.mxu0 0
  %601 = vmatpush1.bf16.msra.mxu0 0
  %602 = vmatprep.subr.bf16.mxu0 0
  %603 = vmatpush1.bf16.msra.mxu0 0
  %604 = vmatprep.subr.bf16.mxu0 0
  %605 = vmatpush1.bf16.msra.mxu0 0
  %606 = vmatprep.subr.bf16.mxu0 0
  %607 = vmatpush1.bf16.msra.mxu0 0
  %608 = vmatprep.subr.bf16.mxu0 0
  %609 = vmatpush1.bf16.msra.mxu0 0
  %610 = vmatprep.subr.bf16.mxu0 0
  %611 = vmatpush1.bf16.msra.mxu0 0
  %612 = vmatprep.subr.bf16.mxu0 0
  %613 = vmatpush1.bf16.msra.mxu0 0
  %614 = vmatprep.subr.bf16.mxu0 0
  %615 = vmatpush1.bf16.msra.mxu0 0
  %616 = vmatprep.subr.bf16.mxu0 0
  %617 = vmatpush1.bf16.msra.mxu0 0
  %618 = vmatprep.subr.bf16.mxu0 0
  %619 = vmatpush1.bf16.msra.mxu0 0
  %620 = vmatprep.mubr.bf16.mxu0 0
  %621 = vmatmul.mubr.bf16.gmra.mrb[0].mxu0 %v541
  %v622 = vpop.f32.mrb[0].mxu0
  %v623 = vadd.f32 0.0, %v622
  %v624 = vpop.f32.mrb[0].mxu0
  %v625 = vpop.f32.mrb[0].mxu0
  %v626 = vadd.f32 0.0, %v625
  %v627 = vpop.f32.mrb[0].mxu0
  %628 = vmatprep.mubr.bf16.mxu0 0
  %629 = vmatmul.mubr.bf16.gmra.mrb[0].mxu0 %v544
  %v630 = vpop.f32.mrb[0].mxu0
  %v631 = vadd.f32 0.0, %v630
  %v632 = vpop.f32.mrb[0].mxu0
  %v633 = vpop.f32.mrb[0].mxu0
  %v634 = vadd.f32 0.0, %v633
  %v635 = vpop.f32.mrb[0].mxu0
  %636 = vmatprep.mubr.bf16.mxu0 0
  %637 = vmatmul.mubr.bf16.gmra.mrb[0].mxu0 %v547
  %v638 = vpop.f32.mrb[0].mxu0
  %v639 = vadd.f32 0.0, %v638
  %v640 = vpop.f32.mrb[0].mxu0
  %v641 = vpop.f32.mrb[0].mxu0
  %v642 = vadd.f32 0.0, %v641
  %v643 = vpop.f32.mrb[0].mxu0
  %644 = vmatprep.mubr.bf16.mxu0 0
  %645 = vmatmul.mubr.bf16.gmra.mrb[0].mxu0 %v550
  %v646 = vpop.f32.mrb[0].mxu0
  %v647 = vadd.f32 0.0, %v646
  %v648 = vpop.f32.mrb[0].mxu0
  %v649 = vpop.f32.mrb[0].mxu0
  %v650 = vadd.f32 0.0, %v649
  %v651 = vpop.f32.mrb[0].mxu0
  %652 = vmatprep.mubr.bf16.mxu0 0
  %653 = vmatmul.mubr.bf16.gmra.mrb[0].mxu0 %v553
  %v654 = vpop.f32.mrb[0].mxu0
  %v655 = vadd.f32 0.0, %v654
  %v656 = vpop.f32.mrb[0].mxu0
  %v657 = vpop.f32.mrb[0].mxu0
  %v658 = vadd.f32 0.0, %v657
  %v659 = vpop.f32.mrb[0].mxu0
  %660 = vmatprep.mubr.bf16.mxu0 0
  %661 = vmatmul.mubr.bf16.gmra.mrb[0].mxu0 %v556
  %v662 = vpop.f32.mrb[0].mxu0
  %v663 = vadd.f32 0.0, %v662
  %v664 = vpop.f32.mrb[0].mxu0
  %v665 = vpop.f32.mrb[0].mxu0
  %v666 = vadd.f32 0.0, %v665
  %v667 = vpop.f32.mrb[0].mxu0
  %668 = vmatprep.mubr.bf16.mxu0 0
  %669 = vmatmul.mubr.bf16.gmra.mrb[0].mxu0 %v559
  %v670 = vpop.f32.mrb[0].mxu0
  %v671 = vadd.f32 0.0, %v670
  %v672 = vpop.f32.mrb[0].mxu0
  %v673 = vpop.f32.mrb[0].mxu0
  %v674 = vadd.f32 0.0, %v673
  %v675 = vpop.f32.mrb[0].mxu0
  %676 = vmatprep.mubr.bf16.mxu0 0
  %677 = vmatmul.mubr.bf16.gmra.mrb[0].mxu0 %v562
  %v678 = vpop.f32.mrb[0].mxu0
  %v679 = vadd.f32 0.0, %v678
  %v680 = vpop.f32.mrb[0].mxu0
  %v681 = vpop.f32.mrb[0].mxu0
  %v682 = vadd.f32 0.0, %v681
  %v683 = vpop.f32.mrb[0].mxu0
  %684 = vmatprep.mubr.bf16.mxu0 0
  %685 = vmatmul.mubr.bf16.gmra.mrb[0].mxu0 %v565
  %v686 = vpop.f32.mrb[0].mxu0
  %v687 = vadd.f32 0.0, %v686
  %v688 = vpop.f32.mrb[0].mxu0
  %v689 = vpop.f32.mrb[0].mxu0
  %v690 = vadd.f32 0.0, %v689
  %v691 = vpop.f32.mrb[0].mxu0
  %692 = vmatprep.mubr.bf16.mxu0 0
  %693 = vmatmul.mubr.bf16.gmra.mrb[0].mxu0 %v568
  %v694 = vpop.f32.mrb[0].mxu0
  %v695 = vadd.f32 0.0, %v694
  %v696 = vpop.f32.mrb[0].mxu0
  %v697 = vpop.f32.mrb[0].mxu0
  %v698 = vadd.f32 0.0, %v697
  %v699 = vpop.f32.mrb[0].mxu0
  %700 = vmatprep.mubr.bf16.mxu0 0
  %701 = vmatmul.mubr.bf16.gmra.mrb[0].mxu0 %v571
  %v702 = vpop.f32.mrb[0].mxu0
  %v703 = vadd.f32 0.0, %v702
  %v704 = vpop.f32.mrb[0].mxu0
  %v705 = vpop.f32.mrb[0].mxu0
  %v706 = vadd.f32 0.0, %v705
  %v707 = vpop.f32.mrb[0].mxu0
  %708 = vmatprep.mubr.bf16.mxu0 0
  %709 = vmatmul.mubr.bf16.gmra.mrb[0].mxu0 %v574
  %v710 = vpop.f32.mrb[0].mxu0
  %v711 = vadd.f32 0.0, %v710
  %v712 = vpop.f32.mrb[0].mxu0
  %v713 = vpop.f32.mrb[0].mxu0
  %v714 = vadd.f32 0.0, %v713
  %v715 = vpop.f32.mrb[0].mxu0
  %716 = vmatprep.mubr.bf16.mxu0 0
  %717 = vmatmul.mubr.bf16.gmra.mrb[0].mxu0 %v577
  %v718 = vpop.f32.mrb[0].mxu0
  %v719 = vadd.f32 0.0, %v718
  %v720 = vpop.f32.mrb[0].mxu0
  %v721 = vpop.f32.mrb[0].mxu0
  %v722 = vadd.f32 0.0, %v721
  %v723 = vpop.f32.mrb[0].mxu0
  %724 = vmatprep.mubr.bf16.mxu0 0
  %725 = vmatmul.mubr.bf16.gmra.mrb[0].mxu0 %v580
  %v726 = vpop.f32.mrb[0].mxu0
  %v727 = vadd.f32 0.0, %v726
  %v728 = vpop.f32.mrb[0].mxu0
  %v729 = vpop.f32.mrb[0].mxu0
  %v730 = vadd.f32 0.0, %v729
  %v731 = vpop.f32.mrb[0].mxu0
  %732 = vmatprep.mubr.bf16.mxu0 0
  %733 = vmatmul.mubr.bf16.gmra.mrb[0].mxu0 %v583
  %v734 = vpop.f32.mrb[0].mxu0
  %v735 = vadd.f32 0.0, %v734
  %v736 = vpop.f32.mrb[0].mxu0
  %v737 = vpop.f32.mrb[0].mxu0
  %v738 = vadd.f32 0.0, %v737
  %v739 = vpop.f32.mrb[0].mxu0
  %740 = vmatprep.mubr.bf16.mxu0 0
  %741 = vmatmul.mubr.bf16.gmra.mrb[0].mxu0 %v586
  %v742 = vpop.f32.mrb[0].mxu0
  %v743 = vadd.f32 0.0, %v742
  %v744 = vpop.f32.mrb[0].mxu0
  %v745 = vpop.f32.mrb[0].mxu0
  %v746 = vadd.f32 0.0, %v745
  %v747 = vpop.f32.mrb[0].mxu0
  %748 = vdwg.mxu0
  %v781 = vunpack.c.l.b16 %v15
  %v782 = vunpack.c.l.b16 %v16
  %v783 = vunpack.c.l.b16 %v17
  %v784 = vunpack.c.l.b16 %v18
  %v785 = vunpack.c.l.b16 %v19
  %v786 = vunpack.c.l.b16 %v20
  %v787 = vunpack.c.l.b16 %v21
  %v788 = vunpack.c.l.b16 %v22
  %v789 = vunpack.c.l.b16 %v23
  %v790 = vunpack.c.l.b16 %v24
  %v791 = vunpack.c.l.b16 %v25
  %v792 = vunpack.c.l.b16 %v26
  %v793 = vunpack.c.l.b16 %v27
  %v794 = vunpack.c.l.b16 %v28
  %v795 = vunpack.c.l.b16 %v29
  %v796 = vunpack.c.l.b16 %v30
  %v797 = vunpack.c.l.b16 %v31
  %v798 = vunpack.c.l.b16 %v32
  %v799 = vunpack.c.l.b16 %v33
  %v800 = vunpack.c.l.b16 %v34
  %v801 = vunpack.c.l.b16 %v35
  %v802 = vunpack.c.l.b16 %v36
  %v803 = vunpack.c.l.b16 %v37
  %v804 = vunpack.c.l.b16 %v38
  %v805 = vunpack.c.l.b16 %v39
  %v806 = vunpack.c.l.b16 %v40
  %v807 = vunpack.c.l.b16 %v41
  %v808 = vunpack.c.l.b16 %v42
  %v809 = vunpack.c.l.b16 %v43
  %v810 = vunpack.c.l.b16 %v44
  %v811 = vunpack.c.l.b16 %v45
  %v812 = vunpack.c.l.b16 %v46
  %v813 = vpack.c.b16 %v782, %v781
  %v814 = vpack.c.b16 %v784, %v783
  %v815 = vpack.c.b16 %v786, %v785
  %v816 = vpack.c.b16 %v788, %v787
  %v817 = vpack.c.b16 %v790, %v789
  %v818 = vpack.c.b16 %v792, %v791
  %v819 = vpack.c.b16 %v794, %v793
  %v820 = vpack.c.b16 %v796, %v795
  %v821 = vpack.c.b16 %v798, %v797
  %v822 = vpack.c.b16 %v800, %v799
  %v823 = vpack.c.b16 %v802, %v801
  %v824 = vpack.c.b16 %v804, %v803
  %v825 = vpack.c.b16 %v806, %v805
  %v826 = vpack.c.b16 %v808, %v807
  %v827 = vpack.c.b16 %v810, %v809
  %v828 = vpack.c.b16 %v812, %v811
  %v837 = vunpack.c.l.b16 %v47
  %v838 = vunpack.c.l.b16 %v48
  %v839 = vunpack.c.l.b16 %v49
  %v840 = vunpack.c.l.b16 %v50
  %v841 = vunpack.c.l.b16 %v51
  %v842 = vunpack.c.l.b16 %v52
  %v843 = vunpack.c.l.b16 %v53
  %v844 = vunpack.c.l.b16 %v54
  %v845 = vpack.c.b16 %v838, %v837
  %v846 = vpack.c.b16 %v840, %v839
  %v847 = vpack.c.b16 %v842, %v841
  %v848 = vpack.c.b16 %v844, %v843
  %v854 = vsel %vm539, %v813, 0
  %v857 = vsel %vm539, %v814, 0
  %v860 = vsel %vm539, %v815, 0
  %v863 = vsel %vm539, %v816, 0
  %v866 = vsel %vm539, %v817, 0
  %v869 = vsel %vm539, %v818, 0
  %v872 = vsel %vm539, %v819, 0
  %v875 = vsel %vm539, %v820, 0
  %v878 = vsel %vm539, %v821, 0
  %v881 = vsel %vm539, %v822, 0
  %v884 = vsel %vm539, %v823, 0
  %v887 = vsel %vm539, %v824, 0
  %v890 = vsel %vm539, %v825, 0
  %v893 = vsel %vm539, %v826, 0
  %v896 = vsel %vm539, %v827, 0
  %v899 = vsel %vm539, %v828, 0
  %901 = vmatprep.subr.bf16.mxu0 0
  %902 = vmatpush1.bf16.msra.mxu0 %v845
  %903 = vmatprep.subr.bf16.mxu0 0
  %904 = vmatpush1.bf16.msra.mxu0 %v846
  %905 = vmatprep.subr.bf16.mxu0 0
  %906 = vmatpush1.bf16.msra.mxu0 %v847
  %907 = vmatprep.subr.bf16.mxu0 0
  %908 = vmatpush1.bf16.msra.mxu0 %v848
  %909 = vmatprep.subr.bf16.mxu0 0
  %910 = vmatpush1.bf16.msra.mxu0 0
  %911 = vmatprep.subr.bf16.mxu0 0
  %912 = vmatpush1.bf16.msra.mxu0 0
  %913 = vmatprep.subr.bf16.mxu0 0
  %914 = vmatpush1.bf16.msra.mxu0 0
  %915 = vmatprep.subr.bf16.mxu0 0
  %916 = vmatpush1.bf16.msra.mxu0 0
  %917 = vmatprep.subr.bf16.mxu0 0
  %918 = vmatpush1.bf16.msra.mxu0 0
  %919 = vmatprep.subr.bf16.mxu0 0
  %920 = vmatpush1.bf16.msra.mxu0 0
  %921 = vmatprep.subr.bf16.mxu0 0
  %922 = vmatpush1.bf16.msra.mxu0 0
  %923 = vmatprep.subr.bf16.mxu0 0
  %924 = vmatpush1.bf16.msra.mxu0 0
  %925 = vmatprep.subr.bf16.mxu0 0
  %926 = vmatpush1.bf16.msra.mxu0 0
  %927 = vmatprep.subr.bf16.mxu0 0
  %928 = vmatpush1.bf16.msra.mxu0 0
  %929 = vmatprep.subr.bf16.mxu0 0
  %930 = vmatpush1.bf16.msra.mxu0 0
  %931 = vmatprep.subr.bf16.mxu0 0
  %932 = vmatpush1.bf16.msra.mxu0 0
  %933 = vmatprep.mubr.bf16.mxu0 0
  %934 = vmatmul.mubr.bf16.gmra.mrb[0].mxu0 %v854
  %v935 = vpop.f32.mrb[0].mxu0
  %v936 = vadd.f32 %v623, %v935
  %v937 = vpop.f32.mrb[0].mxu0
  %v938 = vpop.f32.mrb[0].mxu0
  %v939 = vadd.f32 %v626, %v938
  %v940 = vpop.f32.mrb[0].mxu0
  %941 = vmatprep.mubr.bf16.mxu0 0
  %942 = vmatmul.mubr.bf16.gmra.mrb[0].mxu0 %v857
  %v943 = vpop.f32.mrb[0].mxu0
  %v944 = vadd.f32 %v631, %v943
  %v945 = vpop.f32.mrb[0].mxu0
  %v946 = vpop.f32.mrb[0].mxu0
  %v947 = vadd.f32 %v634, %v946
  %v948 = vpop.f32.mrb[0].mxu0
  %949 = vmatprep.mubr.bf16.mxu0 0
  %950 = vmatmul.mubr.bf16.gmra.mrb[0].mxu0 %v860
  %v951 = vpop.f32.mrb[0].mxu0
  %v952 = vadd.f32 %v639, %v951
  %v953 = vpop.f32.mrb[0].mxu0
  %v954 = vpop.f32.mrb[0].mxu0
  %v955 = vadd.f32 %v642, %v954
  %v956 = vpop.f32.mrb[0].mxu0
  %957 = vmatprep.mubr.bf16.mxu0 0
  %958 = vmatmul.mubr.bf16.gmra.mrb[0].mxu0 %v863
  %v959 = vpop.f32.mrb[0].mxu0
  %v960 = vadd.f32 %v647, %v959
  %v961 = vpop.f32.mrb[0].mxu0
  %v962 = vpop.f32.mrb[0].mxu0
  %v963 = vadd.f32 %v650, %v962
  %v964 = vpop.f32.mrb[0].mxu0
  %965 = vmatprep.mubr.bf16.mxu0 0
  %966 = vmatmul.mubr.bf16.gmra.mrb[0].mxu0 %v866
  %v967 = vpop.f32.mrb[0].mxu0
  %v968 = vadd.f32 %v655, %v967
  %v969 = vpop.f32.mrb[0].mxu0
  %v970 = vpop.f32.mrb[0].mxu0
  %v971 = vadd.f32 %v658, %v970
  %v972 = vpop.f32.mrb[0].mxu0
  %973 = vmatprep.mubr.bf16.mxu0 0
  %974 = vmatmul.mubr.bf16.gmra.mrb[0].mxu0 %v869
  %v975 = vpop.f32.mrb[0].mxu0
  %v976 = vadd.f32 %v663, %v975
  %v977 = vpop.f32.mrb[0].mxu0
  %v978 = vpop.f32.mrb[0].mxu0
  %v979 = vadd.f32 %v666, %v978
  %v980 = vpop.f32.mrb[0].mxu0
  %981 = vmatprep.mubr.bf16.mxu0 0
  %982 = vmatmul.mubr.bf16.gmra.mrb[0].mxu0 %v872
  %v983 = vpop.f32.mrb[0].mxu0
  %v984 = vadd.f32 %v671, %v983
  %v985 = vpop.f32.mrb[0].mxu0
  %v986 = vpop.f32.mrb[0].mxu0
  %v987 = vadd.f32 %v674, %v986
  %v988 = vpop.f32.mrb[0].mxu0
  %989 = vmatprep.mubr.bf16.mxu0 0
  %990 = vmatmul.mubr.bf16.gmra.mrb[0].mxu0 %v875
  %v991 = vpop.f32.mrb[0].mxu0
  %v992 = vadd.f32 %v679, %v991
  %v993 = vpop.f32.mrb[0].mxu0
  %v994 = vpop.f32.mrb[0].mxu0
  %v995 = vadd.f32 %v682, %v994
  %v996 = vpop.f32.mrb[0].mxu0
  %997 = vmatprep.mubr.bf16.mxu0 0
  %998 = vmatmul.mubr.bf16.gmra.mrb[0].mxu0 %v878
  %v999 = vpop.f32.mrb[0].mxu0
  %v1000 = vadd.f32 %v687, %v999
  %v1001 = vpop.f32.mrb[0].mxu0
  %v1002 = vpop.f32.mrb[0].mxu0
  %v1003 = vadd.f32 %v690, %v1002
  %v1004 = vpop.f32.mrb[0].mxu0
  %1005 = vmatprep.mubr.bf16.mxu0 0
  %1006 = vmatmul.mubr.bf16.gmra.mrb[0].mxu0 %v881
  %v1007 = vpop.f32.mrb[0].mxu0
  %v1008 = vadd.f32 %v695, %v1007
  %v1009 = vpop.f32.mrb[0].mxu0
  %v1010 = vpop.f32.mrb[0].mxu0
  %v1011 = vadd.f32 %v698, %v1010
  %v1012 = vpop.f32.mrb[0].mxu0
  %1013 = vmatprep.mubr.bf16.mxu0 0
  %1014 = vmatmul.mubr.bf16.gmra.mrb[0].mxu0 %v884
  %v1015 = vpop.f32.mrb[0].mxu0
  %v1016 = vadd.f32 %v703, %v1015
  %v1017 = vpop.f32.mrb[0].mxu0
  %v1018 = vpop.f32.mrb[0].mxu0
  %v1019 = vadd.f32 %v706, %v1018
  %v1020 = vpop.f32.mrb[0].mxu0
  %1021 = vmatprep.mubr.bf16.mxu0 0
  %1022 = vmatmul.mubr.bf16.gmra.mrb[0].mxu0 %v887
  %v1023 = vpop.f32.mrb[0].mxu0
  %v1024 = vadd.f32 %v711, %v1023
  %v1025 = vpop.f32.mrb[0].mxu0
  %v1026 = vpop.f32.mrb[0].mxu0
  %v1027 = vadd.f32 %v714, %v1026
  %v1028 = vpop.f32.mrb[0].mxu0
  %1029 = vmatprep.mubr.bf16.mxu0 0
  %1030 = vmatmul.mubr.bf16.gmra.mrb[0].mxu0 %v890
  %v1031 = vpop.f32.mrb[0].mxu0
  %v1032 = vadd.f32 %v719, %v1031
  %v1033 = vpop.f32.mrb[0].mxu0
  %v1034 = vpop.f32.mrb[0].mxu0
  %v1035 = vadd.f32 %v722, %v1034
  %v1036 = vpop.f32.mrb[0].mxu0
  %1037 = vmatprep.mubr.bf16.mxu0 0
  %1038 = vmatmul.mubr.bf16.gmra.mrb[0].mxu0 %v893
  %v1039 = vpop.f32.mrb[0].mxu0
  %v1040 = vadd.f32 %v727, %v1039
  %v1041 = vpop.f32.mrb[0].mxu0
  %v1042 = vpop.f32.mrb[0].mxu0
  %v1043 = vadd.f32 %v730, %v1042
  %v1044 = vpop.f32.mrb[0].mxu0
  %1045 = vmatprep.mubr.bf16.mxu0 0
  %1046 = vmatmul.mubr.bf16.gmra.mrb[0].mxu0 %v896
  %v1047 = vpop.f32.mrb[0].mxu0
  %v1048 = vadd.f32 %v735, %v1047
  %v1049 = vpop.f32.mrb[0].mxu0
  %v1050 = vpop.f32.mrb[0].mxu0
  %v1051 = vadd.f32 %v738, %v1050
  %v1052 = vpop.f32.mrb[0].mxu0
  %1053 = vmatprep.mubr.bf16.mxu0 0
  %1054 = vmatmul.mubr.bf16.gmra.mrb[0].mxu0 %v899
  %v1055 = vpop.f32.mrb[0].mxu0
  %v1056 = vadd.f32 %v743, %v1055
  %v1057 = vpop.f32.mrb[0].mxu0
  %v1058 = vpop.f32.mrb[0].mxu0
  %v1059 = vadd.f32 %v746, %v1058
  %v1060 = vpop.f32.mrb[0].mxu0
  %1061 = vdwg.mxu0
  %s1062 = scalar_lea.vmem %s0, 12
  %v1063 = vld [vmem:[%s1062] sm:$0xf]
  %v1064 = vld [vmem:[%s1062 + $0x4] sm:$0xf]
  %v1065 = vld [vmem:[%s1062 + $0xc] sm:$0xf]
  %v1066 = vld [vmem:[%s1062 + $0x10] sm:$0xf]
  %v1067 = vld [vmem:[%s1062 + $0x18] sm:$0xf]
  %v1068 = vld [vmem:[%s1062 + $0x1c] sm:$0xf]
  %v1069 = vld [vmem:[%s1062 + $0x24] sm:$0xf]
  %v1070 = vld [vmem:[%s1062 + $0x28] sm:$0xf]
  %v1071 = vld [vmem:[%s1062 + $0x30] sm:$0xf]
  %v1072 = vld [vmem:[%s1062 + $0x34] sm:$0xf]
  %v1073 = vld [vmem:[%s1062 + $0x3c] sm:$0xf]
  %v1074 = vld [vmem:[%s1062 + $0x40] sm:$0xf]
  %v1075 = vld [vmem:[%s1062 + $0x48] sm:$0xf]
  %v1076 = vld [vmem:[%s1062 + $0x4c] sm:$0xf]
  %v1077 = vld [vmem:[%s1062 + $0x54] sm:$0xf]
  %v1078 = vld [vmem:[%s1062 + $0x58] sm:$0xf]
  %v1079 = vld [vmem:[%s1062 + $0x6c] sm:$0xf]
  %v1080 = vld [vmem:[%s1062 + $0x70] sm:$0xf]
  %v1081 = vld [vmem:[%s1062 + $0x78] sm:$0xf]
  %v1082 = vld [vmem:[%s1062 + $0x7c] sm:$0xf]
  %v1083 = vld [vmem:[%s1062 + $0x84] sm:$0xf]
  %v1084 = vld [vmem:[%s1062 + $0x88] sm:$0xf]
  %v1085 = vld [vmem:[%s1062 + $0x90] sm:$0xf]
  %v1086 = vld [vmem:[%s1062 + $0x94] sm:$0xf]
  %v1087 = vld [vmem:[%s1062 + $0x9c] sm:$0xf]
  %v1088 = vld [vmem:[%s1062 + $0xa0] sm:$0xf]
  %v1089 = vld [vmem:[%s1062 + $0xa8] sm:$0xf]
  %v1090 = vld [vmem:[%s1062 + $0xac] sm:$0xf]
  %v1091 = vld [vmem:[%s1062 + $0xb4] sm:$0xf]
  %v1092 = vld [vmem:[%s1062 + $0xb8] sm:$0xf]
  %v1093 = vld [vmem:[%s1062 + $0xc0] sm:$0xf]
  %v1094 = vld [vmem:[%s1062 + $0xc4] sm:$0xf]
  %s1095 = scalar_lea.vmem %s1, 64
  %v1096 = vld [vmem:[%s1095] sm:$0xf]
  %v1097 = vld [vmem:[%s1095 + $0x4] sm:$0xf]
  %v1098 = vld [vmem:[%s1095 + $0x8] sm:$0xf]
  %v1099 = vld [vmem:[%s1095 + $0xc] sm:$0xf]
  %v1100 = vld [vmem:[%s1095 + $0x10] sm:$0xf]
  %v1101 = vld [vmem:[%s1095 + $0x14] sm:$0xf]
  %v1102 = vld [vmem:[%s1095 + $0x18] sm:$0xf]
  %v1103 = vld [vmem:[%s1095 + $0x1c] sm:$0xf]
  %v1136 = vunpack.c.l.b16 %v1063
  %v1137 = vunpack.c.l.b16 %v1064
  %v1138 = vunpack.c.l.b16 %v1065
  %v1139 = vunpack.c.l.b16 %v1066
  %v1140 = vunpack.c.l.b16 %v1067
  %v1141 = vunpack.c.l.b16 %v1068
  %v1142 = vunpack.c.l.b16 %v1069
  %v1143 = vunpack.c.l.b16 %v1070
  %v1144 = vunpack.c.l.b16 %v1071
  %v1145 = vunpack.c.l.b16 %v1072
  %v1146 = vunpack.c.l.b16 %v1073
  %v1147 = vunpack.c.l.b16 %v1074
  %v1148 = vunpack.c.l.b16 %v1075
  %v1149 = vunpack.c.l.b16 %v1076
  %v1150 = vunpack.c.l.b16 %v1077
  %v1151 = vunpack.c.l.b16 %v1078
  %v1152 = vunpack.c.l.b16 %v1079
  %v1153 = vunpack.c.l.b16 %v1080
  %v1154 = vunpack.c.l.b16 %v1081
  %v1155 = vunpack.c.l.b16 %v1082
  %v1156 = vunpack.c.l.b16 %v1083
  %v1157 = vunpack.c.l.b16 %v1084
  %v1158 = vunpack.c.l.b16 %v1085
  %v1159 = vunpack.c.l.b16 %v1086
  %v1160 = vunpack.c.l.b16 %v1087
  %v1161 = vunpack.c.l.b16 %v1088
  %v1162 = vunpack.c.l.b16 %v1089
  %v1163 = vunpack.c.l.b16 %v1090
  %v1164 = vunpack.c.l.b16 %v1091
  %v1165 = vunpack.c.l.b16 %v1092
  %v1166 = vunpack.c.l.b16 %v1093
  %v1167 = vunpack.c.l.b16 %v1094
  %v1168 = vpack.c.b16 %v1137, %v1136
  %v1169 = vpack.c.b16 %v1139, %v1138
  %v1170 = vpack.c.b16 %v1141, %v1140
  %v1171 = vpack.c.b16 %v1143, %v1142
  %v1172 = vpack.c.b16 %v1145, %v1144
  %v1173 = vpack.c.b16 %v1147, %v1146
  %v1174 = vpack.c.b16 %v1149, %v1148
  %v1175 = vpack.c.b16 %v1151, %v1150
  %v1176 = vpack.c.b16 %v1153, %v1152
  %v1177 = vpack.c.b16 %v1155, %v1154
  %v1178 = vpack.c.b16 %v1157, %v1156
  %v1179 = vpack.c.b16 %v1159, %v1158
  %v1180 = vpack.c.b16 %v1161, %v1160
  %v1181 = vpack.c.b16 %v1163, %v1162
  %v1182 = vpack.c.b16 %v1165, %v1164
  %v1183 = vpack.c.b16 %v1167, %v1166
  %v1192 = vunpack.c.l.b16 %v1096
  %v1193 = vunpack.c.l.b16 %v1097
  %v1194 = vunpack.c.l.b16 %v1098
  %v1195 = vunpack.c.l.b16 %v1099
  %v1196 = vunpack.c.l.b16 %v1100
  %v1197 = vunpack.c.l.b16 %v1101
  %v1198 = vunpack.c.l.b16 %v1102
  %v1199 = vunpack.c.l.b16 %v1103
  %v1200 = vpack.c.b16 %v1193, %v1192
  %v1201 = vpack.c.b16 %v1195, %v1194
  %v1202 = vpack.c.b16 %v1197, %v1196
  %v1203 = vpack.c.b16 %v1199, %v1198
  %v1209 = vsel %vm539, %v1168, 0
  %v1212 = vsel %vm539, %v1169, 0
  %v1215 = vsel %vm539, %v1170, 0
  %v1218 = vsel %vm539, %v1171, 0
  %v1221 = vsel %vm539, %v1172, 0
  %v1224 = vsel %vm539, %v1173, 0
  %v1227 = vsel %vm539, %v1174, 0
  %v1230 = vsel %vm539, %v1175, 0
  %v1233 = vsel %vm539, %v1176, 0
  %v1236 = vsel %vm539, %v1177, 0
  %v1239 = vsel %vm539, %v1178, 0
  %v1242 = vsel %vm539, %v1179, 0
  %v1245 = vsel %vm539, %v1180, 0
  %v1248 = vsel %vm539, %v1181, 0
  %v1251 = vsel %vm539, %v1182, 0
  %v1254 = vsel %vm539, %v1183, 0
  %1256 = vmatprep.subr.bf16.mxu0 0
  %1257 = vmatpush1.bf16.msra.mxu0 %v1200
  %1258 = vmatprep.subr.bf16.mxu0 0
  %1259 = vmatpush1.bf16.msra.mxu0 %v1201
  %1260 = vmatprep.subr.bf16.mxu0 0
  %1261 = vmatpush1.bf16.msra.mxu0 %v1202
  %1262 = vmatprep.subr.bf16.mxu0 0
  %1263 = vmatpush1.bf16.msra.mxu0 %v1203
  %1264 = vmatprep.subr.bf16.mxu0 0
  %1265 = vmatpush1.bf16.msra.mxu0 0
  %1266 = vmatprep.subr.bf16.mxu0 0
  %1267 = vmatpush1.bf16.msra.mxu0 0
  %1268 = vmatprep.subr.bf16.mxu0 0
  %1269 = vmatpush1.bf16.msra.mxu0 0
  %1270 = vmatprep.subr.bf16.mxu0 0
  %1271 = vmatpush1.bf16.msra.mxu0 0
  %1272 = vmatprep.subr.bf16.mxu0 0
  %1273 = vmatpush1.bf16.msra.mxu0 0
  %1274 = vmatprep.subr.bf16.mxu0 0
  %1275 = vmatpush1.bf16.msra.mxu0 0
  %1276 = vmatprep.subr.bf16.mxu0 0
  %1277 = vmatpush1.bf16.msra.mxu0 0
  %1278 = vmatprep.subr.bf16.mxu0 0
  %1279 = vmatpush1.bf16.msra.mxu0 0
  %1280 = vmatprep.subr.bf16.mxu0 0
  %1281 = vmatpush1.bf16.msra.mxu0 0
  %1282 = vmatprep.subr.bf16.mxu0 0
  %1283 = vmatpush1.bf16.msra.mxu0 0
  %1284 = vmatprep.subr.bf16.mxu0 0
  %1285 = vmatpush1.bf16.msra.mxu0 0
  %1286 = vmatprep.subr.bf16.mxu0 0
  %1287 = vmatpush1.bf16.msra.mxu0 0
  %1288 = vmatprep.mubr.bf16.mxu0 0
  %1289 = vmatmul.mubr.bf16.gmra.mrb[0].mxu0 %v1209
  %v1290 = vpop.f32.mrb[0].mxu0
  %v1291 = vadd.f32 0.0, %v1290
  %v1292 = vpop.f32.mrb[0].mxu0
  %v1293 = vpop.f32.mrb[0].mxu0
  %v1294 = vadd.f32 0.0, %v1293
  %v1295 = vpop.f32.mrb[0].mxu0
  %1296 = vmatprep.mubr.bf16.mxu0 0
  %1297 = vmatmul.mubr.bf16.gmra.mrb[0].mxu0 %v1212
  %v1298 = vpop.f32.mrb[0].mxu0
  %v1299 = vadd.f32 0.0, %v1298
  %v1300 = vpop.f32.mrb[0].mxu0
  %v1301 = vpop.f32.mrb[0].mxu0
  %v1302 = vadd.f32 0.0, %v1301
  %v1303 = vpop.f32.mrb[0].mxu0
  %1304 = vmatprep.mubr.bf16.mxu0 0
  %1305 = vmatmul.mubr.bf16.gmra.mrb[0].mxu0 %v1215
  %v1306 = vpop.f32.mrb[0].mxu0
  %v1307 = vadd.f32 0.0, %v1306
  %v1308 = vpop.f32.mrb[0].mxu0
  %v1309 = vpop.f32.mrb[0].mxu0
  %v1310 = vadd.f32 0.0, %v1309
  %v1311 = vpop.f32.mrb[0].mxu0
  %1312 = vmatprep.mubr.bf16.mxu0 0
  %1313 = vmatmul.mubr.bf16.gmra.mrb[0].mxu0 %v1218
  %v1314 = vpop.f32.mrb[0].mxu0
  %v1315 = vadd.f32 0.0, %v1314
  %v1316 = vpop.f32.mrb[0].mxu0
  %v1317 = vpop.f32.mrb[0].mxu0
  %v1318 = vadd.f32 0.0, %v1317
  %v1319 = vpop.f32.mrb[0].mxu0
  %1320 = vmatprep.mubr.bf16.mxu0 0
  %1321 = vmatmul.mubr.bf16.gmra.mrb[0].mxu0 %v1221
  %v1322 = vpop.f32.mrb[0].mxu0
  %v1323 = vadd.f32 0.0, %v1322
  %v1324 = vpop.f32.mrb[0].mxu0
  %v1325 = vpop.f32.mrb[0].mxu0
  %v1326 = vadd.f32 0.0, %v1325
  %v1327 = vpop.f32.mrb[0].mxu0
  %1328 = vmatprep.mubr.bf16.mxu0 0
  %1329 = vmatmul.mubr.bf16.gmra.mrb[0].mxu0 %v1224
  %v1330 = vpop.f32.mrb[0].mxu0
  %v1331 = vadd.f32 0.0, %v1330
  %v1332 = vpop.f32.mrb[0].mxu0
  %v1333 = vpop.f32.mrb[0].mxu0
  %v1334 = vadd.f32 0.0, %v1333
  %v1335 = vpop.f32.mrb[0].mxu0
  %1336 = vmatprep.mubr.bf16.mxu0 0
  %1337 = vmatmul.mubr.bf16.gmra.mrb[0].mxu0 %v1227
  %v1338 = vpop.f32.mrb[0].mxu0
  %v1339 = vadd.f32 0.0, %v1338
  %v1340 = vpop.f32.mrb[0].mxu0
  %v1341 = vpop.f32.mrb[0].mxu0
  %v1342 = vadd.f32 0.0, %v1341
  %v1343 = vpop.f32.mrb[0].mxu0
  %1344 = vmatprep.mubr.bf16.mxu0 0
  %1345 = vmatmul.mubr.bf16.gmra.mrb[0].mxu0 %v1230
  %v1346 = vpop.f32.mrb[0].mxu0
  %v1347 = vadd.f32 0.0, %v1346
  %v1348 = vpop.f32.mrb[0].mxu0
  %v1349 = vpop.f32.mrb[0].mxu0
  %v1350 = vadd.f32 0.0, %v1349
  %v1351 = vpop.f32.mrb[0].mxu0
  %1352 = vmatprep.mubr.bf16.mxu0 0
  %1353 = vmatmul.mubr.bf16.gmra.mrb[0].mxu0 %v1233
  %v1354 = vpop.f32.mrb[0].mxu0
  %v1355 = vadd.f32 0.0, %v1354
  %v1356 = vpop.f32.mrb[0].mxu0
  %v1357 = vpop.f32.mrb[0].mxu0
  %v1358 = vadd.f32 0.0, %v1357
  %v1359 = vpop.f32.mrb[0].mxu0
  %1360 = vmatprep.mubr.bf16.mxu0 0
  %1361 = vmatmul.mubr.bf16.gmra.mrb[0].mxu0 %v1236
  %v1362 = vpop.f32.mrb[0].mxu0
  %v1363 = vadd.f32 0.0, %v1362
  %v1364 = vpop.f32.mrb[0].mxu0
  %v1365 = vpop.f32.mrb[0].mxu0
  %v1366 = vadd.f32 0.0, %v1365
  %v1367 = vpop.f32.mrb[0].mxu0
  %1368 = vmatprep.mubr.bf16.mxu0 0
  %1369 = vmatmul.mubr.bf16.gmra.mrb[0].mxu0 %v1239
  %v1370 = vpop.f32.mrb[0].mxu0
  %v1371 = vadd.f32 0.0, %v1370
  %v1372 = vpop.f32.mrb[0].mxu0
  %v1373 = vpop.f32.mrb[0].mxu0
  %v1374 = vadd.f32 0.0, %v1373
  %v1375 = vpop.f32.mrb[0].mxu0
  %1376 = vmatprep.mubr.bf16.mxu0 0
  %1377 = vmatmul.mubr.bf16.gmra.mrb[0].mxu0 %v1242
  %v1378 = vpop.f32.mrb[0].mxu0
  %v1379 = vadd.f32 0.0, %v1378
  %v1380 = vpop.f32.mrb[0].mxu0
  %v1381 = vpop.f32.mrb[0].mxu0
  %v1382 = vadd.f32 0.0, %v1381
  %v1383 = vpop.f32.mrb[0].mxu0
  %1384 = vmatprep.mubr.bf16.mxu0 0
  %1385 = vmatmul.mubr.bf16.gmra.mrb[0].mxu0 %v1245
  %v1386 = vpop.f32.mrb[0].mxu0
  %v1387 = vadd.f32 0.0, %v1386
  %v1388 = vpop.f32.mrb[0].mxu0
  %v1389 = vpop.f32.mrb[0].mxu0
  %v1390 = vadd.f32 0.0, %v1389
  %v1391 = vpop.f32.mrb[0].mxu0
  %1392 = vmatprep.mubr.bf16.mxu0 0
  %1393 = vmatmul.mubr.bf16.gmra.mrb[0].mxu0 %v1248
  %v1394 = vpop.f32.mrb[0].mxu0
  %v1395 = vadd.f32 0.0, %v1394
  %v1396 = vpop.f32.mrb[0].mxu0
  %v1397 = vpop.f32.mrb[0].mxu0
  %v1398 = vadd.f32 0.0, %v1397
  %v1399 = vpop.f32.mrb[0].mxu0
  %1400 = vmatprep.mubr.bf16.mxu0 0
  %1401 = vmatmul.mubr.bf16.gmra.mrb[0].mxu0 %v1251
  %v1402 = vpop.f32.mrb[0].mxu0
  %v1403 = vadd.f32 0.0, %v1402
  %v1404 = vpop.f32.mrb[0].mxu0
  %v1405 = vpop.f32.mrb[0].mxu0
  %v1406 = vadd.f32 0.0, %v1405
  %v1407 = vpop.f32.mrb[0].mxu0
  %1408 = vmatprep.mubr.bf16.mxu0 0
  %1409 = vmatmul.mubr.bf16.gmra.mrb[0].mxu0 %v1254
  %v1410 = vpop.f32.mrb[0].mxu0
  %v1411 = vadd.f32 0.0, %v1410
  %v1412 = vpop.f32.mrb[0].mxu0
  %v1413 = vpop.f32.mrb[0].mxu0
  %v1414 = vadd.f32 0.0, %v1413
  %v1415 = vpop.f32.mrb[0].mxu0
  %1416 = vdwg.mxu0
  %v1417 = vadd.f32 %v936, %v1291
  %v1418 = vadd.f32 %v939, %v1294
  %v1419 = vadd.f32 %v944, %v1299
  %v1420 = vadd.f32 %v947, %v1302
  %v1421 = vadd.f32 %v952, %v1307
  %v1422 = vadd.f32 %v955, %v1310
  %v1423 = vadd.f32 %v960, %v1315
  %v1424 = vadd.f32 %v963, %v1318
  %v1425 = vadd.f32 %v968, %v1323
  %v1426 = vadd.f32 %v971, %v1326
  %v1427 = vadd.f32 %v976, %v1331
  %v1428 = vadd.f32 %v979, %v1334
  %v1429 = vadd.f32 %v984, %v1339
  %v1430 = vadd.f32 %v987, %v1342
  %v1431 = vadd.f32 %v992, %v1347
  %v1432 = vadd.f32 %v995, %v1350
  %v1433 = vadd.f32 %v1000, %v1355
  %v1434 = vadd.f32 %v1003, %v1358
  %v1435 = vadd.f32 %v1008, %v1363
  %v1436 = vadd.f32 %v1011, %v1366
  %v1437 = vadd.f32 %v1016, %v1371
  %v1438 = vadd.f32 %v1019, %v1374
  %v1439 = vadd.f32 %v1024, %v1379
  %v1440 = vadd.f32 %v1027, %v1382
  %v1441 = vadd.f32 %v1032, %v1387
  %v1442 = vadd.f32 %v1035, %v1390
  %v1443 = vadd.f32 %v1040, %v1395
  %v1444 = vadd.f32 %v1043, %v1398
  %v1445 = vadd.f32 %v1048, %v1403
  %v1446 = vadd.f32 %v1051, %v1406
  %v1447 = vadd.f32 %v1056, %v1411
  %v1448 = vadd.f32 %v1059, %v1414
  %v1449 = vld [vmem:[%s1062] sm:$0xf]
  %v1450 = vld [vmem:[%s1062 + $0x4] sm:$0xf]
  %v1451 = vld [vmem:[%s1062 + $0x8] sm:$0x1]
  %v1452 = vld [vmem:[%s1062 + $0xc] sm:$0xf]
  %v1453 = vld [vmem:[%s1062 + $0x10] sm:$0xf]
  %v1454 = vld [vmem:[%s1062 + $0x14] sm:$0x1]
  %v1455 = vld [vmem:[%s1062 + $0x18] sm:$0xf]
  %v1456 = vld [vmem:[%s1062 + $0x1c] sm:$0xf]
  %v1457 = vld [vmem:[%s1062 + $0x20] sm:$0x1]
  %v1458 = vld [vmem:[%s1062 + $0x24] sm:$0xf]
  %v1459 = vld [vmem:[%s1062 + $0x28] sm:$0xf]
  %v1460 = vld [vmem:[%s1062 + $0x2c] sm:$0x1]
  %v1461 = vld [vmem:[%s1062 + $0x30] sm:$0xf]
  %v1462 = vld [vmem:[%s1062 + $0x34] sm:$0xf]
  %v1463 = vld [vmem:[%s1062 + $0x38] sm:$0x1]
  %v1464 = vld [vmem:[%s1062 + $0x3c] sm:$0xf]
  %v1465 = vld [vmem:[%s1062 + $0x40] sm:$0xf]
  %v1466 = vld [vmem:[%s1062 + $0x44] sm:$0x1]
  %v1467 = vld [vmem:[%s1062 + $0x48] sm:$0xf]
  %v1468 = vld [vmem:[%s1062 + $0x4c] sm:$0xf]
  %v1469 = vld [vmem:[%s1062 + $0x50] sm:$0x1]
  %v1470 = vld [vmem:[%s1062 + $0x54] sm:$0xf]
  %v1471 = vld [vmem:[%s1062 + $0x58] sm:$0xf]
  %v1472 = vld [vmem:[%s1062 + $0x5c] sm:$0x1]
  %v1473 = vld [vmem:[%s1062 + $0x6c] sm:$0xf]
  %v1474 = vld [vmem:[%s1062 + $0x70] sm:$0xf]
  %v1475 = vld [vmem:[%s1062 + $0x74] sm:$0x1]
  %v1476 = vld [vmem:[%s1062 + $0x78] sm:$0xf]
  %v1477 = vld [vmem:[%s1062 + $0x7c] sm:$0xf]
  %v1478 = vld [vmem:[%s1062 + $0x80] sm:$0x1]
  %v1479 = vld [vmem:[%s1062 + $0x84] sm:$0xf]
  %v1480 = vld [vmem:[%s1062 + $0x88] sm:$0xf]
  %v1481 = vld [vmem:[%s1062 + $0x8c] sm:$0x1]
  %v1482 = vld [vmem:[%s1062 + $0x90] sm:$0xf]
  %v1483 = vld [vmem:[%s1062 + $0x94] sm:$0xf]
  %v1484 = vld [vmem:[%s1062 + $0x98] sm:$0x1]
  %v1485 = vld [vmem:[%s1062 + $0x9c] sm:$0xf]
  %v1486 = vld [vmem:[%s1062 + $0xa0] sm:$0xf]
  %v1487 = vld [vmem:[%s1062 + $0xa4] sm:$0x1]
  %v1488 = vld [vmem:[%s1062 + $0xa8] sm:$0xf]
  %v1489 = vld [vmem:[%s1062 + $0xac] sm:$0xf]
  %v1490 = vld [vmem:[%s1062 + $0xb0] sm:$0x1]
  %v1491 = vld [vmem:[%s1062 + $0xb4] sm:$0xf]
  %v1492 = vld [vmem:[%s1062 + $0xb8] sm:$0xf]
  %v1493 = vld [vmem:[%s1062 + $0xbc] sm:$0x1]
  %v1494 = vld [vmem:[%s1062 + $0xc0] sm:$0xf]
  %v1495 = vld [vmem:[%s1062 + $0xc4] sm:$0xf]
  %v1496 = vld [vmem:[%s1062 + $0xc8] sm:$0x1]
  %v1498 = vshrl.u32 %v1449, 16
  %v1500 = vrot.slane %v1498, 4
  %v1501 = vshll.u32 %v1449, 16
  %v1503 = vrot.slane %v1501, 5
  %v1504 = vor.u32 %v1500, %v1503
  %v1505 = vrot.slane %v1504, 4
  %v1507 = vshll.u32 %v1450, 16
  %v1509 = vrot.slane %v1507, 5
  %v1510 = vsel %vm73, %v1505, %v1509
  %v1511 = vshrl.u32 %v1450, 16
  %v1513 = vrot.slane %v1511, 4
  %v1514 = vor.u32 %v1513, %v1509
  %v1515 = vrot.slane %v1514, 4
  %v1517 = vshll.u32 %v1451, 16
  %v1519 = vrot.slane %v1517, 5
  %v1520 = vsel %vm73, %v1515, %v1519
  %v1522 = vshrl.u32 %v1452, 16
  %v1524 = vrot.slane %v1522, 4
  %v1525 = vshll.u32 %v1452, 16
  %v1527 = vrot.slane %v1525, 5
  %v1528 = vor.u32 %v1524, %v1527
  %v1529 = vrot.slane %v1528, 4
  %v1531 = vshll.u32 %v1453, 16
  %v1533 = vrot.slane %v1531, 5
  %v1534 = vsel %vm73, %v1529, %v1533
  %v1535 = vshrl.u32 %v1453, 16
  %v1537 = vrot.slane %v1535, 4
  %v1538 = vor.u32 %v1537, %v1533
  %v1539 = vrot.slane %v1538, 4
  %v1541 = vshll.u32 %v1454, 16
  %v1543 = vrot.slane %v1541, 5
  %v1544 = vsel %vm73, %v1539, %v1543
  %v1546 = vshrl.u32 %v1455, 16
  %v1548 = vrot.slane %v1546, 4
  %v1549 = vshll.u32 %v1455, 16
  %v1551 = vrot.slane %v1549, 5
  %v1552 = vor.u32 %v1548, %v1551
  %v1553 = vrot.slane %v1552, 4
  %v1555 = vshll.u32 %v1456, 16
  %v1557 = vrot.slane %v1555, 5
  %v1558 = vsel %vm73, %v1553, %v1557
  %v1559 = vshrl.u32 %v1456, 16
  %v1561 = vrot.slane %v1559, 4
  %v1562 = vor.u32 %v1561, %v1557
  %v1563 = vrot.slane %v1562, 4
  %v1565 = vshll.u32 %v1457, 16
  %v1567 = vrot.slane %v1565, 5
  %v1568 = vsel %vm73, %v1563, %v1567
  %v1570 = vshrl.u32 %v1458, 16
  %v1572 = vrot.slane %v1570, 4
  %v1573 = vshll.u32 %v1458, 16
  %v1575 = vrot.slane %v1573, 5
  %v1576 = vor.u32 %v1572, %v1575
  %v1577 = vrot.slane %v1576, 4
  %v1579 = vshll.u32 %v1459, 16
  %v1581 = vrot.slane %v1579, 5
  %v1582 = vsel %vm73, %v1577, %v1581
  %v1583 = vshrl.u32 %v1459, 16
  %v1585 = vrot.slane %v1583, 4
  %v1586 = vor.u32 %v1585, %v1581
  %v1587 = vrot.slane %v1586, 4
  %v1589 = vshll.u32 %v1460, 16
  %v1591 = vrot.slane %v1589, 5
  %v1592 = vsel %vm73, %v1587, %v1591
  %v1594 = vshrl.u32 %v1461, 16
  %v1596 = vrot.slane %v1594, 4
  %v1597 = vshll.u32 %v1461, 16
  %v1599 = vrot.slane %v1597, 5
  %v1600 = vor.u32 %v1596, %v1599
  %v1601 = vrot.slane %v1600, 4
  %v1603 = vshll.u32 %v1462, 16
  %v1605 = vrot.slane %v1603, 5
  %v1606 = vsel %vm73, %v1601, %v1605
  %v1607 = vshrl.u32 %v1462, 16
  %v1609 = vrot.slane %v1607, 4
  %v1610 = vor.u32 %v1609, %v1605
  %v1611 = vrot.slane %v1610, 4
  %v1613 = vshll.u32 %v1463, 16
  %v1615 = vrot.slane %v1613, 5
  %v1616 = vsel %vm73, %v1611, %v1615
  %v1618 = vshrl.u32 %v1464, 16
  %v1620 = vrot.slane %v1618, 4
  %v1621 = vshll.u32 %v1464, 16
  %v1623 = vrot.slane %v1621, 5
  %v1624 = vor.u32 %v1620, %v1623
  %v1625 = vrot.slane %v1624, 4
  %v1627 = vshll.u32 %v1465, 16
  %v1629 = vrot.slane %v1627, 5
  %v1630 = vsel %vm73, %v1625, %v1629
  %v1631 = vshrl.u32 %v1465, 16
  %v1633 = vrot.slane %v1631, 4
  %v1634 = vor.u32 %v1633, %v1629
  %v1635 = vrot.slane %v1634, 4
  %v1637 = vshll.u32 %v1466, 16
  %v1639 = vrot.slane %v1637, 5
  %v1640 = vsel %vm73, %v1635, %v1639
  %v1642 = vshrl.u32 %v1467, 16
  %v1644 = vrot.slane %v1642, 4
  %v1645 = vshll.u32 %v1467, 16
  %v1647 = vrot.slane %v1645, 5
  %v1648 = vor.u32 %v1644, %v1647
  %v1649 = vrot.slane %v1648, 4
  %v1651 = vshll.u32 %v1468, 16
  %v1653 = vrot.slane %v1651, 5
  %v1654 = vsel %vm73, %v1649, %v1653
  %v1655 = vshrl.u32 %v1468, 16
  %v1657 = vrot.slane %v1655, 4
  %v1658 = vor.u32 %v1657, %v1653
  %v1659 = vrot.slane %v1658, 4
  %v1661 = vshll.u32 %v1469, 16
  %v1663 = vrot.slane %v1661, 5
  %v1664 = vsel %vm73, %v1659, %v1663
  %v1666 = vshrl.u32 %v1470, 16
  %v1668 = vrot.slane %v1666, 4
  %v1669 = vshll.u32 %v1470, 16
  %v1671 = vrot.slane %v1669, 5
  %v1672 = vor.u32 %v1668, %v1671
  %v1673 = vrot.slane %v1672, 4
  %v1675 = vshll.u32 %v1471, 16
  %v1677 = vrot.slane %v1675, 5
  %v1678 = vsel %vm73, %v1673, %v1677
  %v1679 = vshrl.u32 %v1471, 16
  %v1681 = vrot.slane %v1679, 4
  %v1682 = vor.u32 %v1681, %v1677
  %v1683 = vrot.slane %v1682, 4
  %v1685 = vshll.u32 %v1472, 16
  %v1687 = vrot.slane %v1685, 5
  %v1688 = vsel %vm73, %v1683, %v1687
  %v1690 = vshrl.u32 %v1473, 16
  %v1692 = vrot.slane %v1690, 4
  %v1693 = vshll.u32 %v1473, 16
  %v1695 = vrot.slane %v1693, 5
  %v1696 = vor.u32 %v1692, %v1695
  %v1697 = vrot.slane %v1696, 4
  %v1699 = vshll.u32 %v1474, 16
  %v1701 = vrot.slane %v1699, 5
  %v1702 = vsel %vm73, %v1697, %v1701
  %v1703 = vshrl.u32 %v1474, 16
  %v1705 = vrot.slane %v1703, 4
  %v1706 = vor.u32 %v1705, %v1701
  %v1707 = vrot.slane %v1706, 4
  %v1709 = vshll.u32 %v1475, 16
  %v1711 = vrot.slane %v1709, 5
  %v1712 = vsel %vm73, %v1707, %v1711
  %v1714 = vshrl.u32 %v1476, 16
  %v1716 = vrot.slane %v1714, 4
  %v1717 = vshll.u32 %v1476, 16
  %v1719 = vrot.slane %v1717, 5
  %v1720 = vor.u32 %v1716, %v1719
  %v1721 = vrot.slane %v1720, 4
  %v1723 = vshll.u32 %v1477, 16
  %v1725 = vrot.slane %v1723, 5
  %v1726 = vsel %vm73, %v1721, %v1725
  %v1727 = vshrl.u32 %v1477, 16
  %v1729 = vrot.slane %v1727, 4
  %v1730 = vor.u32 %v1729, %v1725
  %v1731 = vrot.slane %v1730, 4
  %v1733 = vshll.u32 %v1478, 16
  %v1735 = vrot.slane %v1733, 5
  %v1736 = vsel %vm73, %v1731, %v1735
  %v1738 = vshrl.u32 %v1479, 16
  %v1740 = vrot.slane %v1738, 4
  %v1741 = vshll.u32 %v1479, 16
  %v1743 = vrot.slane %v1741, 5
  %v1744 = vor.u32 %v1740, %v1743
  %v1745 = vrot.slane %v1744, 4
  %v1747 = vshll.u32 %v1480, 16
  %v1749 = vrot.slane %v1747, 5
  %v1750 = vsel %vm73, %v1745, %v1749
  %v1751 = vshrl.u32 %v1480, 16
  %v1753 = vrot.slane %v1751, 4
  %v1754 = vor.u32 %v1753, %v1749
  %v1755 = vrot.slane %v1754, 4
  %v1757 = vshll.u32 %v1481, 16
  %v1759 = vrot.slane %v1757, 5
  %v1760 = vsel %vm73, %v1755, %v1759
  %v1762 = vshrl.u32 %v1482, 16
  %v1764 = vrot.slane %v1762, 4
  %v1765 = vshll.u32 %v1482, 16
  %v1767 = vrot.slane %v1765, 5
  %v1768 = vor.u32 %v1764, %v1767
  %v1769 = vrot.slane %v1768, 4
  %v1771 = vshll.u32 %v1483, 16
  %v1773 = vrot.slane %v1771, 5
  %v1774 = vsel %vm73, %v1769, %v1773
  %v1775 = vshrl.u32 %v1483, 16
  %v1777 = vrot.slane %v1775, 4
  %v1778 = vor.u32 %v1777, %v1773
  %v1779 = vrot.slane %v1778, 4
  %v1781 = vshll.u32 %v1484, 16
  %v1783 = vrot.slane %v1781, 5
  %v1784 = vsel %vm73, %v1779, %v1783
  %v1786 = vshrl.u32 %v1485, 16
  %v1788 = vrot.slane %v1786, 4
  %v1789 = vshll.u32 %v1485, 16
  %v1791 = vrot.slane %v1789, 5
  %v1792 = vor.u32 %v1788, %v1791
  %v1793 = vrot.slane %v1792, 4
  %v1795 = vshll.u32 %v1486, 16
  %v1797 = vrot.slane %v1795, 5
  %v1798 = vsel %vm73, %v1793, %v1797
  %v1799 = vshrl.u32 %v1486, 16
  %v1801 = vrot.slane %v1799, 4
  %v1802 = vor.u32 %v1801, %v1797
  %v1803 = vrot.slane %v1802, 4
  %v1805 = vshll.u32 %v1487, 16
  %v1807 = vrot.slane %v1805, 5
  %v1808 = vsel %vm73, %v1803, %v1807
  %v1810 = vshrl.u32 %v1488, 16
  %v1812 = vrot.slane %v1810, 4
  %v1813 = vshll.u32 %v1488, 16
  %v1815 = vrot.slane %v1813, 5
  %v1816 = vor.u32 %v1812, %v1815
  %v1817 = vrot.slane %v1816, 4
  %v1819 = vshll.u32 %v1489, 16
  %v1821 = vrot.slane %v1819, 5
  %v1822 = vsel %vm73, %v1817, %v1821
  %v1823 = vshrl.u32 %v1489, 16
  %v1825 = vrot.slane %v1823, 4
  %v1826 = vor.u32 %v1825, %v1821
  %v1827 = vrot.slane %v1826, 4
  %v1829 = vshll.u32 %v1490, 16
  %v1831 = vrot.slane %v1829, 5
  %v1832 = vsel %vm73, %v1827, %v1831
  %v1834 = vshrl.u32 %v1491, 16
  %v1836 = vrot.slane %v1834, 4
  %v1837 = vshll.u32 %v1491, 16
  %v1839 = vrot.slane %v1837, 5
  %v1840 = vor.u32 %v1836, %v1839
  %v1841 = vrot.slane %v1840, 4
  %v1843 = vshll.u32 %v1492, 16
  %v1845 = vrot.slane %v1843, 5
  %v1846 = vsel %vm73, %v1841, %v1845
  %v1847 = vshrl.u32 %v1492, 16
  %v1849 = vrot.slane %v1847, 4
  %v1850 = vor.u32 %v1849, %v1845
  %v1851 = vrot.slane %v1850, 4
  %v1853 = vshll.u32 %v1493, 16
  %v1855 = vrot.slane %v1853, 5
  %v1856 = vsel %vm73, %v1851, %v1855
  %v1858 = vshrl.u32 %v1494, 16
  %v1860 = vrot.slane %v1858, 4
  %v1861 = vshll.u32 %v1494, 16
  %v1863 = vrot.slane %v1861, 5
  %v1864 = vor.u32 %v1860, %v1863
  %v1865 = vrot.slane %v1864, 4
  %v1867 = vshll.u32 %v1495, 16
  %v1869 = vrot.slane %v1867, 5
  %v1870 = vsel %vm73, %v1865, %v1869
  %v1871 = vshrl.u32 %v1495, 16
  %v1873 = vrot.slane %v1871, 4
  %v1874 = vor.u32 %v1873, %v1869
  %v1875 = vrot.slane %v1874, 4
  %v1877 = vshll.u32 %v1496, 16
  %v1879 = vrot.slane %v1877, 5
  %v1880 = vsel %vm73, %v1875, %v1879
  %s1881 = scalar_lea.vmem %s1, 96
  %v1882 = vld [vmem:[%s1881] sm:$0xf]
  %v1883 = vld [vmem:[%s1881 + $0x4] sm:$0xf]
  %v1884 = vld [vmem:[%s1881 + $0x8] sm:$0xf]
  %v1885 = vld [vmem:[%s1881 + $0xc] sm:$0xf]
  %v1886 = vld [vmem:[%s1881 + $0x10] sm:$0xf]
  %v1887 = vld [vmem:[%s1881 + $0x14] sm:$0xf]
  %v1888 = vld [vmem:[%s1881 + $0x18] sm:$0xf]
  %v1889 = vld [vmem:[%s1881 + $0x1c] sm:$0xf]
  %v1890 = vunpack.c.l.b16 %v1510
  %v1891 = vunpack.c.l.b16 %v1520
  %v1892 = vunpack.c.l.b16 %v1534
  %v1893 = vunpack.c.l.b16 %v1544
  %v1894 = vunpack.c.l.b16 %v1558
  %v1895 = vunpack.c.l.b16 %v1568
  %v1896 = vunpack.c.l.b16 %v1582
  %v1897 = vunpack.c.l.b16 %v1592
  %v1898 = vunpack.c.l.b16 %v1606
  %v1899 = vunpack.c.l.b16 %v1616
  %v1900 = vunpack.c.l.b16 %v1630
  %v1901 = vunpack.c.l.b16 %v1640
  %v1902 = vunpack.c.l.b16 %v1654
  %v1903 = vunpack.c.l.b16 %v1664
  %v1904 = vunpack.c.l.b16 %v1678
  %v1905 = vunpack.c.l.b16 %v1688
  %v1906 = vunpack.c.l.b16 %v1702
  %v1907 = vunpack.c.l.b16 %v1712
  %v1908 = vunpack.c.l.b16 %v1726
  %v1909 = vunpack.c.l.b16 %v1736
  %v1910 = vunpack.c.l.b16 %v1750
  %v1911 = vunpack.c.l.b16 %v1760
  %v1912 = vunpack.c.l.b16 %v1774
  %v1913 = vunpack.c.l.b16 %v1784
  %v1914 = vunpack.c.l.b16 %v1798
  %v1915 = vunpack.c.l.b16 %v1808
  %v1916 = vunpack.c.l.b16 %v1822
  %v1917 = vunpack.c.l.b16 %v1832
  %v1918 = vunpack.c.l.b16 %v1846
  %v1919 = vunpack.c.l.b16 %v1856
  %v1920 = vunpack.c.l.b16 %v1870
  %v1921 = vunpack.c.l.b16 %v1880
  %v1922 = vpack.c.b16 %v1891, %v1890
  %v1923 = vpack.c.b16 %v1893, %v1892
  %v1924 = vpack.c.b16 %v1895, %v1894
  %v1925 = vpack.c.b16 %v1897, %v1896
  %v1926 = vpack.c.b16 %v1899, %v1898
  %v1927 = vpack.c.b16 %v1901, %v1900
  %v1928 = vpack.c.b16 %v1903, %v1902
  %v1929 = vpack.c.b16 %v1905, %v1904
  %v1930 = vpack.c.b16 %v1907, %v1906
  %v1931 = vpack.c.b16 %v1909, %v1908
  %v1932 = vpack.c.b16 %v1911, %v1910
  %v1933 = vpack.c.b16 %v1913, %v1912
  %v1934 = vpack.c.b16 %v1915, %v1914
  %v1935 = vpack.c.b16 %v1917, %v1916
  %v1936 = vpack.c.b16 %v1919, %v1918
  %v1937 = vpack.c.b16 %v1921, %v1920
  %v1946 = vunpack.c.l.b16 %v1882
  %v1947 = vunpack.c.l.b16 %v1883
  %v1948 = vunpack.c.l.b16 %v1884
  %v1949 = vunpack.c.l.b16 %v1885
  %v1950 = vunpack.c.l.b16 %v1886
  %v1951 = vunpack.c.l.b16 %v1887
  %v1952 = vunpack.c.l.b16 %v1888
  %v1953 = vunpack.c.l.b16 %v1889
  %v1954 = vpack.c.b16 %v1947, %v1946
  %v1955 = vpack.c.b16 %v1949, %v1948
  %v1956 = vpack.c.b16 %v1951, %v1950
  %v1957 = vpack.c.b16 %v1953, %v1952
  %v1963 = vsel %vm539, %v1922, 0
  %v1966 = vsel %vm539, %v1923, 0
  %v1969 = vsel %vm539, %v1924, 0
  %v1972 = vsel %vm539, %v1925, 0
  %v1975 = vsel %vm539, %v1926, 0
  %v1978 = vsel %vm539, %v1927, 0
  %v1981 = vsel %vm539, %v1928, 0
  %v1984 = vsel %vm539, %v1929, 0
  %v1987 = vsel %vm539, %v1930, 0
  %v1990 = vsel %vm539, %v1931, 0
  %v1993 = vsel %vm539, %v1932, 0
  %v1996 = vsel %vm539, %v1933, 0
  %v1999 = vsel %vm539, %v1934, 0
  %v2002 = vsel %vm539, %v1935, 0
  %v2005 = vsel %vm539, %v1936, 0
  %v2008 = vsel %vm539, %v1937, 0
  %2010 = vmatprep.subr.bf16.mxu0 0
  %2011 = vmatpush1.bf16.msra.mxu0 %v1954
  %2012 = vmatprep.subr.bf16.mxu0 0
  %2013 = vmatpush1.bf16.msra.mxu0 %v1955
  %2014 = vmatprep.subr.bf16.mxu0 0
  %2015 = vmatpush1.bf16.msra.mxu0 %v1956
  %2016 = vmatprep.subr.bf16.mxu0 0
  %2017 = vmatpush1.bf16.msra.mxu0 %v1957
  %2018 = vmatprep.subr.bf16.mxu0 0
  %2019 = vmatpush1.bf16.msra.mxu0 0
  %2020 = vmatprep.subr.bf16.mxu0 0
  %2021 = vmatpush1.bf16.msra.mxu0 0
  %2022 = vmatprep.subr.bf16.mxu0 0
  %2023 = vmatpush1.bf16.msra.mxu0 0
  %2024 = vmatprep.subr.bf16.mxu0 0
  %2025 = vmatpush1.bf16.msra.mxu0 0
  %2026 = vmatprep.subr.bf16.mxu0 0
  %2027 = vmatpush1.bf16.msra.mxu0 0
  %2028 = vmatprep.subr.bf16.mxu0 0
  %2029 = vmatpush1.bf16.msra.mxu0 0
  %2030 = vmatprep.subr.bf16.mxu0 0
  %2031 = vmatpush1.bf16.msra.mxu0 0
  %2032 = vmatprep.subr.bf16.mxu0 0
  %2033 = vmatpush1.bf16.msra.mxu0 0
  %2034 = vmatprep.subr.bf16.mxu0 0
  %2035 = vmatpush1.bf16.msra.mxu0 0
  %2036 = vmatprep.subr.bf16.mxu0 0
  %2037 = vmatpush1.bf16.msra.mxu0 0
  %2038 = vmatprep.subr.bf16.mxu0 0
  %2039 = vmatpush1.bf16.msra.mxu0 0
  %2040 = vmatprep.subr.bf16.mxu0 0
  %2041 = vmatpush1.bf16.msra.mxu0 0
  %2042 = vmatprep.mubr.bf16.mxu0 0
  %2043 = vmatmul.mubr.bf16.gmra.mrb[0].mxu0 %v1963
  %v2044 = vpop.f32.mrb[0].mxu0
  %v2045 = vadd.f32 0.0, %v2044
  %v2046 = vpop.f32.mrb[0].mxu0
  %v2047 = vpop.f32.mrb[0].mxu0
  %v2048 = vadd.f32 0.0, %v2047
  %v2049 = vpop.f32.mrb[0].mxu0
  %2050 = vmatprep.mubr.bf16.mxu0 0
  %2051 = vmatmul.mubr.bf16.gmra.mrb[0].mxu0 %v1966
  %v2052 = vpop.f32.mrb[0].mxu0
  %v2053 = vadd.f32 0.0, %v2052
  %v2054 = vpop.f32.mrb[0].mxu0
  %v2055 = vpop.f32.mrb[0].mxu0
  %v2056 = vadd.f32 0.0, %v2055
  %v2057 = vpop.f32.mrb[0].mxu0
  %2058 = vmatprep.mubr.bf16.mxu0 0
  %2059 = vmatmul.mubr.bf16.gmra.mrb[0].mxu0 %v1969
  %v2060 = vpop.f32.mrb[0].mxu0
  %v2061 = vadd.f32 0.0, %v2060
  %v2062 = vpop.f32.mrb[0].mxu0
  %v2063 = vpop.f32.mrb[0].mxu0
  %v2064 = vadd.f32 0.0, %v2063
  %v2065 = vpop.f32.mrb[0].mxu0
  %2066 = vmatprep.mubr.bf16.mxu0 0
  %2067 = vmatmul.mubr.bf16.gmra.mrb[0].mxu0 %v1972
  %v2068 = vpop.f32.mrb[0].mxu0
  %v2069 = vadd.f32 0.0, %v2068
  %v2070 = vpop.f32.mrb[0].mxu0
  %v2071 = vpop.f32.mrb[0].mxu0
  %v2072 = vadd.f32 0.0, %v2071
  %v2073 = vpop.f32.mrb[0].mxu0
  %2074 = vmatprep.mubr.bf16.mxu0 0
  %2075 = vmatmul.mubr.bf16.gmra.mrb[0].mxu0 %v1975
  %v2076 = vpop.f32.mrb[0].mxu0
  %v2077 = vadd.f32 0.0, %v2076
  %v2078 = vpop.f32.mrb[0].mxu0
  %v2079 = vpop.f32.mrb[0].mxu0
  %v2080 = vadd.f32 0.0, %v2079
  %v2081 = vpop.f32.mrb[0].mxu0
  %2082 = vmatprep.mubr.bf16.mxu0 0
  %2083 = vmatmul.mubr.bf16.gmra.mrb[0].mxu0 %v1978
  %v2084 = vpop.f32.mrb[0].mxu0
  %v2085 = vadd.f32 0.0, %v2084
  %v2086 = vpop.f32.mrb[0].mxu0
  %v2087 = vpop.f32.mrb[0].mxu0
  %v2088 = vadd.f32 0.0, %v2087
  %v2089 = vpop.f32.mrb[0].mxu0
  %2090 = vmatprep.mubr.bf16.mxu0 0
  %2091 = vmatmul.mubr.bf16.gmra.mrb[0].mxu0 %v1981
  %v2092 = vpop.f32.mrb[0].mxu0
  %v2093 = vadd.f32 0.0, %v2092
  %v2094 = vpop.f32.mrb[0].mxu0
  %v2095 = vpop.f32.mrb[0].mxu0
  %v2096 = vadd.f32 0.0, %v2095
  %v2097 = vpop.f32.mrb[0].mxu0
  %2098 = vmatprep.mubr.bf16.mxu0 0
  %2099 = vmatmul.mubr.bf16.gmra.mrb[0].mxu0 %v1984
  %v2100 = vpop.f32.mrb[0].mxu0
  %v2101 = vadd.f32 0.0, %v2100
  %v2102 = vpop.f32.mrb[0].mxu0
  %v2103 = vpop.f32.mrb[0].mxu0
  %v2104 = vadd.f32 0.0, %v2103
  %v2105 = vpop.f32.mrb[0].mxu0
  %2106 = vmatprep.mubr.bf16.mxu0 0
  %2107 = vmatmul.mubr.bf16.gmra.mrb[0].mxu0 %v1987
  %v2108 = vpop.f32.mrb[0].mxu0
  %v2109 = vadd.f32 0.0, %v2108
  %v2110 = vpop.f32.mrb[0].mxu0
  %v2111 = vpop.f32.mrb[0].mxu0
  %v2112 = vadd.f32 0.0, %v2111
  %v2113 = vpop.f32.mrb[0].mxu0
  %2114 = vmatprep.mubr.bf16.mxu0 0
  %2115 = vmatmul.mubr.bf16.gmra.mrb[0].mxu0 %v1990
  %v2116 = vpop.f32.mrb[0].mxu0
  %v2117 = vadd.f32 0.0, %v2116
  %v2118 = vpop.f32.mrb[0].mxu0
  %v2119 = vpop.f32.mrb[0].mxu0
  %v2120 = vadd.f32 0.0, %v2119
  %v2121 = vpop.f32.mrb[0].mxu0
  %2122 = vmatprep.mubr.bf16.mxu0 0
  %2123 = vmatmul.mubr.bf16.gmra.mrb[0].mxu0 %v1993
  %v2124 = vpop.f32.mrb[0].mxu0
  %v2125 = vadd.f32 0.0, %v2124
  %v2126 = vpop.f32.mrb[0].mxu0
  %v2127 = vpop.f32.mrb[0].mxu0
  %v2128 = vadd.f32 0.0, %v2127
  %v2129 = vpop.f32.mrb[0].mxu0
  %2130 = vmatprep.mubr.bf16.mxu0 0
  %2131 = vmatmul.mubr.bf16.gmra.mrb[0].mxu0 %v1996
  %v2132 = vpop.f32.mrb[0].mxu0
  %v2133 = vadd.f32 0.0, %v2132
  %v2134 = vpop.f32.mrb[0].mxu0
  %v2135 = vpop.f32.mrb[0].mxu0
  %v2136 = vadd.f32 0.0, %v2135
  %v2137 = vpop.f32.mrb[0].mxu0
  %2138 = vmatprep.mubr.bf16.mxu0 0
  %2139 = vmatmul.mubr.bf16.gmra.mrb[0].mxu0 %v1999
  %v2140 = vpop.f32.mrb[0].mxu0
  %v2141 = vadd.f32 0.0, %v2140
  %v2142 = vpop.f32.mrb[0].mxu0
  %v2143 = vpop.f32.mrb[0].mxu0
  %v2144 = vadd.f32 0.0, %v2143
  %v2145 = vpop.f32.mrb[0].mxu0
  %2146 = vmatprep.mubr.bf16.mxu0 0
  %2147 = vmatmul.mubr.bf16.gmra.mrb[0].mxu0 %v2002
  %v2148 = vpop.f32.mrb[0].mxu0
  %v2149 = vadd.f32 0.0, %v2148
  %v2150 = vpop.f32.mrb[0].mxu0
  %v2151 = vpop.f32.mrb[0].mxu0
  %v2152 = vadd.f32 0.0, %v2151
  %v2153 = vpop.f32.mrb[0].mxu0
  %2154 = vmatprep.mubr.bf16.mxu0 0
  %2155 = vmatmul.mubr.bf16.gmra.mrb[0].mxu0 %v2005
  %v2156 = vpop.f32.mrb[0].mxu0
  %v2157 = vadd.f32 0.0, %v2156
  %v2158 = vpop.f32.mrb[0].mxu0
  %v2159 = vpop.f32.mrb[0].mxu0
  %v2160 = vadd.f32 0.0, %v2159
  %v2161 = vpop.f32.mrb[0].mxu0
  %2162 = vmatprep.mubr.bf16.mxu0 0
  %2163 = vmatmul.mubr.bf16.gmra.mrb[0].mxu0 %v2008
  %v2164 = vpop.f32.mrb[0].mxu0
  %v2165 = vadd.f32 0.0, %v2164
  %v2166 = vpop.f32.mrb[0].mxu0
  %v2167 = vpop.f32.mrb[0].mxu0
  %v2168 = vadd.f32 0.0, %v2167
  %v2169 = vpop.f32.mrb[0].mxu0
  %2170 = vdwg.mxu0
  %v2171 = vadd.f32 %v1417, %v2045
  %v2172 = vadd.f32 %v1418, %v2048
  %v2173 = vadd.f32 %v1419, %v2053
  %v2174 = vadd.f32 %v1420, %v2056
  %v2175 = vadd.f32 %v1421, %v2061
  %v2176 = vadd.f32 %v1422, %v2064
  %v2177 = vadd.f32 %v1423, %v2069
  %v2178 = vadd.f32 %v1424, %v2072
  %v2179 = vadd.f32 %v1425, %v2077
  %v2180 = vadd.f32 %v1426, %v2080
  %v2181 = vadd.f32 %v1427, %v2085
  %v2182 = vadd.f32 %v1428, %v2088
  %v2183 = vadd.f32 %v1429, %v2093
  %v2184 = vadd.f32 %v1430, %v2096
  %v2185 = vadd.f32 %v1431, %v2101
  %v2186 = vadd.f32 %v1432, %v2104
  %v2187 = vadd.f32 %v1433, %v2109
  %v2188 = vadd.f32 %v1434, %v2112
  %v2189 = vadd.f32 %v1435, %v2117
  %v2190 = vadd.f32 %v1436, %v2120
  %v2191 = vadd.f32 %v1437, %v2125
  %v2192 = vadd.f32 %v1438, %v2128
  %v2193 = vadd.f32 %v1439, %v2133
  %v2194 = vadd.f32 %v1440, %v2136
  %v2195 = vadd.f32 %v1441, %v2141
  %v2196 = vadd.f32 %v1442, %v2144
  %v2197 = vadd.f32 %v1443, %v2149
  %v2198 = vadd.f32 %v1444, %v2152
  %v2199 = vadd.f32 %v1445, %v2157
  %v2200 = vadd.f32 %v1446, %v2160
  %v2201 = vadd.f32 %v1447, %v2165
  %v2202 = vadd.f32 %v1448, %v2168
  %v2203 = vld [vmem:[%s2] sm:$0x1]
  %v2205 = vlaneseq
  %v2206 = vshrl.u32 %v2205, 7
  %v2207 = vsub.s32 0, %v2206
  %v2208 = vrot.slane %v2203, %v2207
  %v2210 = vadd.f32 %v2171, %v2208
  %v2211 = vadd.f32 %v2172, %v2208
  %v2212 = vadd.f32 %v2173, %v2208
  %v2213 = vadd.f32 %v2174, %v2208
  %v2214 = vadd.f32 %v2175, %v2208
  %v2215 = vadd.f32 %v2176, %v2208
  %v2216 = vadd.f32 %v2177, %v2208
  %v2217 = vadd.f32 %v2178, %v2208
  %v2218 = vadd.f32 %v2179, %v2208
  %v2219 = vadd.f32 %v2180, %v2208
  %v2220 = vadd.f32 %v2181, %v2208
  %v2221 = vadd.f32 %v2182, %v2208
  %v2222 = vadd.f32 %v2183, %v2208
  %v2223 = vadd.f32 %v2184, %v2208
  %v2224 = vadd.f32 %v2185, %v2208
  %v2225 = vadd.f32 %v2186, %v2208
  %v2226 = vadd.f32 %v2187, %v2208
  %v2227 = vadd.f32 %v2188, %v2208
  %v2228 = vadd.f32 %v2189, %v2208
  %v2229 = vadd.f32 %v2190, %v2208
  %v2230 = vadd.f32 %v2191, %v2208
  %v2231 = vadd.f32 %v2192, %v2208
  %v2232 = vadd.f32 %v2193, %v2208
  %v2233 = vadd.f32 %v2194, %v2208
  %v2234 = vadd.f32 %v2195, %v2208
  %v2235 = vadd.f32 %v2196, %v2208
  %v2236 = vadd.f32 %v2197, %v2208
  %v2237 = vadd.f32 %v2198, %v2208
  %v2238 = vadd.f32 %v2199, %v2208
  %v2239 = vadd.f32 %v2200, %v2208
  %v2240 = vadd.f32 %v2201, %v2208
  %v2241 = vadd.f32 %v2202, %v2208
  %v2242 = vmax.f32 %v2210, 0.0
  %v2243 = vmax.f32 %v2211, 0.0
  %v2244 = vmax.f32 %v2212, 0.0
  %v2245 = vmax.f32 %v2213, 0.0
  %v2246 = vmax.f32 %v2214, 0.0
  %v2247 = vmax.f32 %v2215, 0.0
  %v2248 = vmax.f32 %v2216, 0.0
  %v2249 = vmax.f32 %v2217, 0.0
  %v2250 = vmax.f32 %v2218, 0.0
  %v2251 = vmax.f32 %v2219, 0.0
  %v2252 = vmax.f32 %v2220, 0.0
  %v2253 = vmax.f32 %v2221, 0.0
  %v2254 = vmax.f32 %v2222, 0.0
  %v2255 = vmax.f32 %v2223, 0.0
  %v2256 = vmax.f32 %v2224, 0.0
  %v2257 = vmax.f32 %v2225, 0.0
  %v2258 = vmax.f32 %v2226, 0.0
  %v2259 = vmax.f32 %v2227, 0.0
  %v2260 = vmax.f32 %v2228, 0.0
  %v2261 = vmax.f32 %v2229, 0.0
  %v2262 = vmax.f32 %v2230, 0.0
  %v2263 = vmax.f32 %v2231, 0.0
  %v2264 = vmax.f32 %v2232, 0.0
  %v2265 = vmax.f32 %v2233, 0.0
  %v2266 = vmax.f32 %v2234, 0.0
  %v2267 = vmax.f32 %v2235, 0.0
  %v2268 = vmax.f32 %v2236, 0.0
  %v2269 = vmax.f32 %v2237, 0.0
  %v2270 = vmax.f32 %v2238, 0.0
  %v2271 = vmax.f32 %v2239, 0.0
  %v2272 = vmax.f32 %v2240, 0.0
  %v2273 = vmax.f32 %v2241, 0.0
  %v2274 = vpack.c.bf16 %v2243, %v2242
  %v2275 = vpack.c.bf16 %v2245, %v2244
  %v2276 = vpack.c.bf16 %v2247, %v2246
  %v2277 = vpack.c.bf16 %v2249, %v2248
  %v2278 = vpack.c.bf16 %v2251, %v2250
  %v2279 = vpack.c.bf16 %v2253, %v2252
  %v2280 = vpack.c.bf16 %v2255, %v2254
  %v2281 = vpack.c.bf16 %v2257, %v2256
  %v2282 = vpack.c.bf16 %v2259, %v2258
  %v2283 = vpack.c.bf16 %v2261, %v2260
  %v2284 = vpack.c.bf16 %v2263, %v2262
  %v2285 = vpack.c.bf16 %v2265, %v2264
  %v2286 = vpack.c.bf16 %v2267, %v2266
  %v2287 = vpack.c.bf16 %v2269, %v2268
  %v2288 = vpack.c.bf16 %v2271, %v2270
  %v2289 = vpack.c.bf16 %v2273, %v2272
  %v2306 = vunpack.c.l.b16 %v2274
  %v2307 = vunpack.c.h.b16 %v2274
  %v2308 = vunpack.c.l.b16 %v2275
  %v2309 = vunpack.c.h.b16 %v2275
  %v2310 = vunpack.c.l.b16 %v2276
  %v2311 = vunpack.c.h.b16 %v2276
  %v2312 = vunpack.c.l.b16 %v2277
  %v2313 = vunpack.c.h.b16 %v2277
  %v2314 = vunpack.c.l.b16 %v2278
  %v2315 = vunpack.c.h.b16 %v2278
  %v2316 = vunpack.c.l.b16 %v2279
  %v2317 = vunpack.c.h.b16 %v2279
  %v2318 = vunpack.c.l.b16 %v2280
  %v2319 = vunpack.c.h.b16 %v2280
  %v2320 = vunpack.c.l.b16 %v2281
  %v2321 = vunpack.c.h.b16 %v2281
  %v2322 = vunpack.c.l.b16 %v2282
  %v2323 = vunpack.c.h.b16 %v2282
  %v2324 = vunpack.c.l.b16 %v2283
  %v2325 = vunpack.c.h.b16 %v2283
  %v2326 = vunpack.c.l.b16 %v2284
  %v2327 = vunpack.c.h.b16 %v2284
  %v2328 = vunpack.c.l.b16 %v2285
  %v2329 = vunpack.c.h.b16 %v2285
  %v2330 = vunpack.c.l.b16 %v2286
  %v2331 = vunpack.c.h.b16 %v2286
  %v2332 = vunpack.c.l.b16 %v2287
  %v2333 = vunpack.c.h.b16 %v2287
  %v2334 = vunpack.c.l.b16 %v2288
  %v2335 = vunpack.c.h.b16 %v2288
  %v2336 = vunpack.c.l.b16 %v2289
  %v2337 = vunpack.c.h.b16 %v2289
  %v2338 = vpack.c.b16 %v2306, %v2306
  %v2339 = vpack.c.b16 %v2307, %v2307
  %v2340 = vpack.c.b16 %v2308, %v2308
  %v2341 = vpack.c.b16 %v2309, %v2309
  %v2342 = vpack.c.b16 %v2310, %v2310
  %v2343 = vpack.c.b16 %v2311, %v2311
  %v2344 = vpack.c.b16 %v2312, %v2312
  %v2345 = vpack.c.b16 %v2313, %v2313
  %v2346 = vpack.c.b16 %v2314, %v2314
  %v2347 = vpack.c.b16 %v2315, %v2315
  %v2348 = vpack.c.b16 %v2316, %v2316
  %v2349 = vpack.c.b16 %v2317, %v2317
  %v2350 = vpack.c.b16 %v2318, %v2318
  %v2351 = vpack.c.b16 %v2319, %v2319
  %v2352 = vpack.c.b16 %v2320, %v2320
  %v2353 = vpack.c.b16 %v2321, %v2321
  %v2354 = vpack.c.b16 %v2322, %v2322
  %v2355 = vpack.c.b16 %v2323, %v2323
  %v2356 = vpack.c.b16 %v2324, %v2324
  %v2357 = vpack.c.b16 %v2325, %v2325
  %v2358 = vpack.c.b16 %v2326, %v2326
  %v2359 = vpack.c.b16 %v2327, %v2327
  %v2360 = vpack.c.b16 %v2328, %v2328
  %v2361 = vpack.c.b16 %v2329, %v2329
  %v2362 = vpack.c.b16 %v2330, %v2330
  %v2363 = vpack.c.b16 %v2331, %v2331
  %v2364 = vpack.c.b16 %v2332, %v2332
  %v2365 = vpack.c.b16 %v2333, %v2333
  %v2366 = vpack.c.b16 %v2334, %v2334
  %v2367 = vpack.c.b16 %v2335, %v2335
  %v2368 = vpack.c.b16 %v2336, %v2336
  %v2369 = vpack.c.b16 %v2337, %v2337
  %vm2402 = vcmask 257024
  %2403 = vst.msk [vmem:[%s3] sm:$0xf] %vm2402, %v2338
  %2404 = vst.msk [vmem:[%s3 + $0x4] sm:$0xf] %vm2402, %v2339
  %2405 = vst.msk [vmem:[%s3 + $0x8] sm:$0xf] %vm2402, %v2340
  %2406 = vst.msk [vmem:[%s3 + $0xc] sm:$0xf] %vm2402, %v2341
  %2407 = vst.msk [vmem:[%s3 + $0x10] sm:$0xf] %vm2402, %v2342
  %2408 = vst.msk [vmem:[%s3 + $0x14] sm:$0xf] %vm2402, %v2343
  %2409 = vst.msk [vmem:[%s3 + $0x18] sm:$0xf] %vm2402, %v2344
  %2410 = vst.msk [vmem:[%s3 + $0x1c] sm:$0xf] %vm2402, %v2345
  %2411 = vst.msk [vmem:[%s3 + $0x20] sm:$0xf] %vm2402, %v2346
  %2412 = vst.msk [vmem:[%s3 + $0x24] sm:$0xf] %vm2402, %v2347
  %2413 = vst.msk [vmem:[%s3 + $0x28] sm:$0xf] %vm2402, %v2348
  %2414 = vst.msk [vmem:[%s3 + $0x2c] sm:$0xf] %vm2402, %v2349
  %2415 = vst.msk [vmem:[%s3 + $0x30] sm:$0xf] %vm2402, %v2350
  %2416 = vst.msk [vmem:[%s3 + $0x34] sm:$0xf] %vm2402, %v2351
  %2417 = vst.msk [vmem:[%s3 + $0x38] sm:$0xf] %vm2402, %v2352
  %2418 = vst.msk [vmem:[%s3 + $0x3c] sm:$0xf] %vm2402, %v2353
  %2419 = vst.msk [vmem:[%s3 + $0x40] sm:$0xf] %vm2402, %v2354
  %2420 = vst.msk [vmem:[%s3 + $0x44] sm:$0xf] %vm2402, %v2355
  %2421 = vst.msk [vmem:[%s3 + $0x48] sm:$0xf] %vm2402, %v2356
  %2422 = vst.msk [vmem:[%s3 + $0x4c] sm:$0xf] %vm2402, %v2357
  %2423 = vst.msk [vmem:[%s3 + $0x50] sm:$0xf] %vm2402, %v2358
  %2424 = vst.msk [vmem:[%s3 + $0x54] sm:$0xf] %vm2402, %v2359
  %2425 = vst.msk [vmem:[%s3 + $0x58] sm:$0xf] %vm2402, %v2360
  %2426 = vst.msk [vmem:[%s3 + $0x5c] sm:$0xf] %vm2402, %v2361
  %2427 = vst.msk [vmem:[%s3 + $0x60] sm:$0xf] %vm2402, %v2362
  %2428 = vst.msk [vmem:[%s3 + $0x64] sm:$0xf] %vm2402, %v2363
  %2429 = vst.msk [vmem:[%s3 + $0x68] sm:$0xf] %vm2402, %v2364
  %2430 = vst.msk [vmem:[%s3 + $0x6c] sm:$0xf] %vm2402, %v2365
  %2431 = vst.msk [vmem:[%s3 + $0x70] sm:$0xf] %vm2402, %v2366
  %2432 = vst.msk [vmem:[%s3 + $0x74] sm:$0xf] %vm2402, %v2367
  %2433 = vst.msk [vmem:[%s3 + $0x78] sm:$0xf] %vm2402, %v2368
  %2434 = vst.msk [vmem:[%s3 + $0x7c] sm:$0xf] %vm2402, %v2369
  // Predicated region
  $region14: #{network_forward.4} parent=0 // pred_check
    _
  $region15: #{network_forward.4} parent=0 // pred_check_branch
    %2436 = sbr.rel (0) target = $region17
  $region16: #{network_forward.4} parent=0 // pred_region
    _
  $region17: #{network_forward.4} parent=0 // pred_fallthru
    _
  // Predicated region
  $region18: #{network_forward.4} parent=0 // pred_check
    _
  $region19: #{network_forward.4} parent=0 // pred_check_branch
    %2438 = sbr.rel (0) target = $region21
  $region20: #{network_forward.4} parent=0 // pred_region
    _
  $region21: #{network_forward.4} parent=0 // pred_fallthru
    _

// kernel: network_forward.6
$region0: #{network_forward.6}
  #allocation0 [shape = 'u32[]', space=smem, size = 0x4, offset = 0x4, fixed_abs, tag = 'smem constant byte address 0x4 - core index']
  #allocation1 [shape = 'u32[144,128]{1,0:T(1,128)}', space=vmem, size = 0x12000, scoped, tag = 'internal scratch']
  %s0 = inlined_call_operand.vmem [shape: bf16[2,3,18,64], index: 0, kind: input, shape index: {}]
  %s1 = inlined_call_operand.vmem [shape: bf16[9,64,64], index: 1, kind: input, shape index: {}]
  %s2 = inlined_call_operand.vmem [shape: f32[1,64], index: 2, kind: input, shape index: {}]
  %s3 = inlined_call_operand.vmem [shape: bf16[32,64], index: 3, kind: output, shape index: {}]
  %s4 = sld [smem:[#allocation0]]
  $region22: #{network_forward.6} parent=0
    _
  %s6 = ssub.s32 1, %s4
  %s7 = scalar_select 0, %s6, %s4
  // Predicated region
  $region2: #{network_forward.6} parent=0 // pred_check
    _
  $region3: #{network_forward.6} parent=0 // pred_check_branch
    %9 = sbr.rel (0) target = $region5
  $region4: #{network_forward.6} parent=0 // pred_region
    _
  $region5: #{network_forward.6} parent=0 // pred_fallthru
    _
  // Predicated region
  $region6: #{network_forward.6} parent=0 // pred_check
    _
  $region7: #{network_forward.6} parent=0 // pred_check_branch
    %11 = sbr.rel (0) target = $region9
  $region8: #{network_forward.6} parent=0 // pred_region
    _
  $region9: #{network_forward.6} parent=0 // pred_fallthru
    _
  // Predicated region
  $region10: #{network_forward.6} parent=0 // pred_check
    _
  $region11: #{network_forward.6} parent=0 // pred_check_branch
    %13 = sbr.rel (0) target = $region13
  $region12: #{network_forward.6} parent=0 // pred_region
    _
  $region13: #{network_forward.6} parent=0 // pred_fallthru
    _
  %v15 = vld [vmem:[%s0] sm:$0xf]
  %v16 = vld [vmem:[%s0 + $0x4] sm:$0xf]
  %v17 = vld [vmem:[%s0 + $0x24] sm:$0xf]
  %v18 = vld [vmem:[%s0 + $0x28] sm:$0xf]
  %v19 = vld [vmem:[%s1] sm:$0xf]
  %v20 = vld [vmem:[%s1 + $0x4] sm:$0xf]
  %v21 = vld [vmem:[%s1 + $0x8] sm:$0xf]
  %v22 = vld [vmem:[%s1 + $0xc] sm:$0xf]
  %v23 = vld [vmem:[%s1 + $0x10] sm:$0xf]
  %v24 = vld [vmem:[%s1 + $0x14] sm:$0xf]
  %v25 = vld [vmem:[%s1 + $0x18] sm:$0xf]
  %v26 = vld [vmem:[%s1 + $0x1c] sm:$0xf]
  %v27 = vld [vmem:[%s0 + $0x8] sm:$0x1]
  %v28 = vld [vmem:[%s0 + $0x2c] sm:$0x1]
  %vm29 = vsmask.f32 3328
  %vm30 = vsmask.f32 7440
  %vm31 = vmor %vm29, %vm30
  %v33 = vshrl.u32 %v15, 16
  %v35 = vrot.slane %v33, 4
  %v36 = vshll.u32 %v15, 16
  %v38 = vrot.slane %v36, 5
  %v39 = vor.u32 %v35, %v38
  %v40 = vrot.slane %v39, 4
  %v42 = vshll.u32 %v16, 16
  %v44 = vrot.slane %v42, 5
  %v45 = vsel %vm31, %v40, %v44
  %v46 = vshrl.u32 %v16, 16
  %v48 = vrot.slane %v46, 4
  %v49 = vor.u32 %v48, %v44
  %v50 = vrot.slane %v49, 4
  %v52 = vshll.u32 %v27, 16
  %v54 = vrot.slane %v52, 5
  %v55 = vsel %vm31, %v50, %v54
  %v57 = vshrl.u32 %v17, 16
  %v59 = vrot.slane %v57, 4
  %v60 = vshll.u32 %v17, 16
  %v62 = vrot.slane %v60, 5
  %v63 = vor.u32 %v59, %v62
  %v64 = vrot.slane %v63, 4
  %v66 = vshll.u32 %v18, 16
  %v68 = vrot.slane %v66, 5
  %v69 = vsel %vm31, %v64, %v68
  %v70 = vshrl.u32 %v18, 16
  %v72 = vrot.slane %v70, 4
  %v73 = vor.u32 %v72, %v68
  %v74 = vrot.slane %v73, 4
  %v76 = vshll.u32 %v28, 16
  %v78 = vrot.slane %v76, 5
  %v79 = vsel %vm31, %v74, %v78
  %s80 = scalar_lea.vmem %s1, 32
  %v81 = vld [vmem:[%s80] sm:$0xf]
  %v82 = vld [vmem:[%s80 + $0x4] sm:$0xf]
  %v83 = vld [vmem:[%s80 + $0x8] sm:$0xf]
  %v84 = vld [vmem:[%s80 + $0xc] sm:$0xf]
  %v85 = vld [vmem:[%s80 + $0x10] sm:$0xf]
  %v86 = vld [vmem:[%s80 + $0x14] sm:$0xf]
  %v87 = vld [vmem:[%s80 + $0x18] sm:$0xf]
  %v88 = vld [vmem:[%s80 + $0x1c] sm:$0xf]
  %v89 = vunpack.c.l.b16 %v45
  %v90 = vunpack.c.l.b16 %v55
  %v91 = vunpack.c.l.b16 %v69
  %v92 = vunpack.c.l.b16 %v79
  %v93 = vpack.c.b16 %v90, %v89
  %v94 = vpack.c.b16 %v92, %v91
  %v103 = vunpack.c.l.b16 %v81
  %v104 = vunpack.c.l.b16 %v82
  %v105 = vunpack.c.l.b16 %v83
  %v106 = vunpack.c.l.b16 %v84
  %v107 = vunpack.c.l.b16 %v85
  %v108 = vunpack.c.l.b16 %v86
  %v109 = vunpack.c.l.b16 %v87
  %v110 = vunpack.c.l.b16 %v88
  %v111 = vpack.c.b16 %v104, %v103
  %v112 = vpack.c.b16 %v106, %v105
  %v113 = vpack.c.b16 %v108, %v107
  %v114 = vpack.c.b16 %v110, %v109
  %vm119 = vcmask 523264
  %v121 = vsel %vm119, %v93, 0
  %v124 = vsel %vm119, %v94, 0
  %126 = vmatprep.subr.bf16.mxu0 0
  %127 = vmatpush1.bf16.msra.mxu0 %v111
  %128 = vmatprep.subr.bf16.mxu0 0
  %129 = vmatpush1.bf16.msra.mxu0 %v112
  %130 = vmatprep.subr.bf16.mxu0 0
  %131 = vmatpush1.bf16.msra.mxu0 %v113
  %132 = vmatprep.subr.bf16.mxu0 0
  %133 = vmatpush1.bf16.msra.mxu0 %v114
  %134 = vmatprep.subr.bf16.mxu0 0
  %135 = vmatpush1.bf16.msra.mxu0 0
  %136 = vmatprep.subr.bf16.mxu0 0
  %137 = vmatpush1.bf16.msra.mxu0 0
  %138 = vmatprep.subr.bf16.mxu0 0
  %139 = vmatpush1.bf16.msra.mxu0 0
  %140 = vmatprep.subr.bf16.mxu0 0
  %141 = vmatpush1.bf16.msra.mxu0 0
  %142 = vmatprep.subr.bf16.mxu0 0
  %143 = vmatpush1.bf16.msra.mxu0 0
  %144 = vmatprep.subr.bf16.mxu0 0
  %145 = vmatpush1.bf16.msra.mxu0 0
  %146 = vmatprep.subr.bf16.mxu0 0
  %147 = vmatpush1.bf16.msra.mxu0 0
  %148 = vmatprep.subr.bf16.mxu0 0
  %149 = vmatpush1.bf16.msra.mxu0 0
  %150 = vmatprep.subr.bf16.mxu0 0
  %151 = vmatpush1.bf16.msra.mxu0 0
  %152 = vmatprep.subr.bf16.mxu0 0
  %153 = vmatpush1.bf16.msra.mxu0 0
  %154 = vmatprep.subr.bf16.mxu0 0
  %155 = vmatpush1.bf16.msra.mxu0 0
  %156 = vmatprep.subr.bf16.mxu0 0
  %157 = vmatpush1.bf16.msra.mxu0 0
  %158 = vmatprep.mubr.bf16.mxu0 0
  %159 = vmatmul.mubr.bf16.gmra.mrb[0].mxu0 %v121
  %v160 = vpop.f32.mrb[0].mxu0
  %v161 = vadd.f32 0.0, %v160
  %v162 = vpop.f32.mrb[0].mxu0
  %v163 = vpop.f32.mrb[0].mxu0
  %v164 = vadd.f32 0.0, %v163
  %v165 = vpop.f32.mrb[0].mxu0
  %166 = vmatprep.mubr.bf16.mxu0 0
  %167 = vmatmul.mubr.bf16.gmra.mrb[0].mxu0 %v124
  %v168 = vpop.f32.mrb[0].mxu0
  %v169 = vadd.f32 0.0, %v168
  %v170 = vpop.f32.mrb[0].mxu0
  %v171 = vpop.f32.mrb[0].mxu0
  %v172 = vadd.f32 0.0, %v171
  %v173 = vpop.f32.mrb[0].mxu0
  %174 = vdwg.mxu0
  %v179 = vunpack.c.l.b16 %v15
  %v180 = vunpack.c.l.b16 %v16
  %v181 = vunpack.c.l.b16 %v17
  %v182 = vunpack.c.l.b16 %v18
  %v183 = vpack.c.b16 %v180, %v179
  %v184 = vpack.c.b16 %v182, %v181
  %v193 = vunpack.c.l.b16 %v19
  %v194 = vunpack.c.l.b16 %v20
  %v195 = vunpack.c.l.b16 %v21
  %v196 = vunpack.c.l.b16 %v22
  %v197 = vunpack.c.l.b16 %v23
  %v198 = vunpack.c.l.b16 %v24
  %v199 = vunpack.c.l.b16 %v25
  %v200 = vunpack.c.l.b16 %v26
  %v201 = vpack.c.b16 %v194, %v193
  %v202 = vpack.c.b16 %v196, %v195
  %v203 = vpack.c.b16 %v198, %v197
  %v204 = vpack.c.b16 %v200, %v199
  %v210 = vsel %vm119, %v183, 0
  %v213 = vsel %vm119, %v184, 0
  %215 = vmatprep.subr.bf16.mxu0 0
  %216 = vmatpush1.bf16.msra.mxu0 %v201
  %217 = vmatprep.subr.bf16.mxu0 0
  %218 = vmatpush1.bf16.msra.mxu0 %v202
  %219 = vmatprep.subr.bf16.mxu0 0
  %220 = vmatpush1.bf16.msra.mxu0 %v203
  %221 = vmatprep.subr.bf16.mxu0 0
  %222 = vmatpush1.bf16.msra.mxu0 %v204
  %223 = vmatprep.subr.bf16.mxu0 0
  %224 = vmatpush1.bf16.msra.mxu0 0
  %225 = vmatprep.subr.bf16.mxu0 0
  %226 = vmatpush1.bf16.msra.mxu0 0
  %227 = vmatprep.subr.bf16.mxu0 0
  %228 = vmatpush1.bf16.msra.mxu0 0
  %229 = vmatprep.subr.bf16.mxu0 0
  %230 = vmatpush1.bf16.msra.mxu0 0
  %231 = vmatprep.subr.bf16.mxu0 0
  %232 = vmatpush1.bf16.msra.mxu0 0
  %233 = vmatprep.subr.bf16.mxu0 0
  %234 = vmatpush1.bf16.msra.mxu0 0
  %235 = vmatprep.subr.bf16.mxu0 0
  %236 = vmatpush1.bf16.msra.mxu0 0
  %237 = vmatprep.subr.bf16.mxu0 0
  %238 = vmatpush1.bf16.msra.mxu0 0
  %239 = vmatprep.subr.bf16.mxu0 0
  %240 = vmatpush1.bf16.msra.mxu0 0
  %241 = vmatprep.subr.bf16.mxu0 0
  %242 = vmatpush1.bf16.msra.mxu0 0
  %243 = vmatprep.subr.bf16.mxu0 0
  %244 = vmatpush1.bf16.msra.mxu0 0
  %245 = vmatprep.subr.bf16.mxu0 0
  %246 = vmatpush1.bf16.msra.mxu0 0
  %247 = vmatprep.mubr.bf16.mxu0 0
  %248 = vmatmul.mubr.bf16.gmra.mrb[0].mxu0 %v210
  %v249 = vpop.f32.mrb[0].mxu0
  %v250 = vadd.f32 %v161, %v249
  %v251 = vpop.f32.mrb[0].mxu0
  %v252 = vpop.f32.mrb[0].mxu0
  %v253 = vadd.f32 %v164, %v252
  %v254 = vpop.f32.mrb[0].mxu0
  %255 = vmatprep.mubr.bf16.mxu0 0
  %256 = vmatmul.mubr.bf16.gmra.mrb[0].mxu0 %v213
  %v257 = vpop.f32.mrb[0].mxu0
  %v258 = vadd.f32 %v169, %v257
  %v259 = vpop.f32.mrb[0].mxu0
  %v260 = vpop.f32.mrb[0].mxu0
  %v261 = vadd.f32 %v172, %v260
  %v262 = vpop.f32.mrb[0].mxu0
  %263 = vdwg.mxu0
  %v264 = vld [vmem:[%s0] sm:$0xe]
  %v265 = vld [vmem:[%s0 + $0x24] sm:$0xe]
  %vm270 = vcmask 1042432
  %vm271 = vcmask 1046532
  %vm272 = vmor %vm270, %vm271
  %v273 = vrot.slane %v264, 5
  %v274 = vrot.slane %v273, 4
  %v275 = vrot.slane %v16, 5
  %v276 = vsel %vm272, %v274, %v275
  %v277 = vrot.slane %v275, 4
  %v278 = vrot.slane %v27, 5
  %v279 = vsel %vm272, %v277, %v278
  %v280 = vrot.slane %v265, 5
  %v281 = vrot.slane %v280, 4
  %v282 = vrot.slane %v18, 5
  %v283 = vsel %vm272, %v281, %v282
  %v284 = vrot.slane %v282, 4
  %v285 = vrot.slane %v28, 5
  %v286 = vsel %vm272, %v284, %v285
  %s287 = scalar_lea.vmem %s1, 64
  %v288 = vld [vmem:[%s287] sm:$0xf]
  %v289 = vld [vmem:[%s287 + $0x4] sm:$0xf]
  %v290 = vld [vmem:[%s287 + $0x8] sm:$0xf]
  %v291 = vld [vmem:[%s287 + $0xc] sm:$0xf]
  %v292 = vld [vmem:[%s287 + $0x10] sm:$0xf]
  %v293 = vld [vmem:[%s287 + $0x14] sm:$0xf]
  %v294 = vld [vmem:[%s287 + $0x18] sm:$0xf]
  %v295 = vld [vmem:[%s287 + $0x1c] sm:$0xf]
  %v296 = vunpack.c.l.b16 %v276
  %v297 = vunpack.c.l.b16 %v279
  %v298 = vunpack.c.l.b16 %v283
  %v299 = vunpack.c.l.b16 %v286
  %v300 = vpack.c.b16 %v297, %v296
  %v301 = vpack.c.b16 %v299, %v298
  %v310 = vunpack.c.l.b16 %v288
  %v311 = vunpack.c.l.b16 %v289
  %v312 = vunpack.c.l.b16 %v290
  %v313 = vunpack.c.l.b16 %v291
  %v314 = vunpack.c.l.b16 %v292
  %v315 = vunpack.c.l.b16 %v293
  %v316 = vunpack.c.l.b16 %v294
  %v317 = vunpack.c.l.b16 %v295
  %v318 = vpack.c.b16 %v311, %v310
  %v319 = vpack.c.b16 %v313, %v312
  %v320 = vpack.c.b16 %v315, %v314
  %v321 = vpack.c.b16 %v317, %v316
  %v327 = vsel %vm119, %v300, 0
  %v330 = vsel %vm119, %v301, 0
  %332 = vmatprep.subr.bf16.mxu0 0
  %333 = vmatpush1.bf16.msra.mxu0 %v318
  %334 = vmatprep.subr.bf16.mxu0 0
  %335 = vmatpush1.bf16.msra.mxu0 %v319
  %336 = vmatprep.subr.bf16.mxu0 0
  %337 = vmatpush1.bf16.msra.mxu0 %v320
  %338 = vmatprep.subr.bf16.mxu0 0
  %339 = vmatpush1.bf16.msra.mxu0 %v321
  %340 = vmatprep.subr.bf16.mxu0 0
  %341 = vmatpush1.bf16.msra.mxu0 0
  %342 = vmatprep.subr.bf16.mxu0 0
  %343 = vmatpush1.bf16.msra.mxu0 0
  %344 = vmatprep.subr.bf16.mxu0 0
  %345 = vmatpush1.bf16.msra.mxu0 0
  %346 = vmatprep.subr.bf16.mxu0 0
  %347 = vmatpush1.bf16.msra.mxu0 0
  %348 = vmatprep.subr.bf16.mxu0 0
  %349 = vmatpush1.bf16.msra.mxu0 0
  %350 = vmatprep.subr.bf16.mxu0 0
  %351 = vmatpush1.bf16.msra.mxu0 0
  %352 = vmatprep.subr.bf16.mxu0 0
  %353 = vmatpush1.bf16.msra.mxu0 0
  %354 = vmatprep.subr.bf16.mxu0 0
  %355 = vmatpush1.bf16.msra.mxu0 0
  %356 = vmatprep.subr.bf16.mxu0 0
  %357 = vmatpush1.bf16.msra.mxu0 0
  %358 = vmatprep.subr.bf16.mxu0 0
  %359 = vmatpush1.bf16.msra.mxu0 0
  %360 = vmatprep.subr.bf16.mxu0 0
  %361 = vmatpush1.bf16.msra.mxu0 0
  %362 = vmatprep.subr.bf16.mxu0 0
  %363 = vmatpush1.bf16.msra.mxu0 0
  %364 = vmatprep.mubr.bf16.mxu0 0
  %365 = vmatmul.mubr.bf16.gmra.mrb[0].mxu0 %v327
  %v366 = vpop.f32.mrb[0].mxu0
  %v367 = vadd.f32 0.0, %v366
  %v368 = vpop.f32.mrb[0].mxu0
  %v369 = vpop.f32.mrb[0].mxu0
  %v370 = vadd.f32 0.0, %v369
  %v371 = vpop.f32.mrb[0].mxu0
  %372 = vmatprep.mubr.bf16.mxu0 0
  %373 = vmatmul.mubr.bf16.gmra.mrb[0].mxu0 %v330
  %v374 = vpop.f32.mrb[0].mxu0
  %v375 = vadd.f32 0.0, %v374
  %v376 = vpop.f32.mrb[0].mxu0
  %v377 = vpop.f32.mrb[0].mxu0
  %v378 = vadd.f32 0.0, %v377
  %v379 = vpop.f32.mrb[0].mxu0
  %380 = vdwg.mxu0
  %v381 = vadd.f32 %v250, %v367
  %v382 = vadd.f32 %v253, %v370
  %v383 = vadd.f32 %v258, %v375
  %v384 = vadd.f32 %v261, %v378
  %s385 = scalar_lea.vmem %s0, 12
  %v386 = vld [vmem:[%s385] sm:$0xf]
  %v387 = vld [vmem:[%s385 + $0x4] sm:$0xf]
  %v388 = vld [vmem:[%s385 + $0x24] sm:$0xf]
  %v389 = vld [vmem:[%s385 + $0x28] sm:$0xf]
  %s390 = scalar_lea.vmem %s1, 96
  %v391 = vld [vmem:[%s390] sm:$0xf]
  %v392 = vld [vmem:[%s390 + $0x4] sm:$0xf]
  %v393 = vld [vmem:[%s390 + $0x8] sm:$0xf]
  %v394 = vld [vmem:[%s390 + $0xc] sm:$0xf]
  %v395 = vld [vmem:[%s390 + $0x10] sm:$0xf]
  %v396 = vld [vmem:[%s390 + $0x14] sm:$0xf]
  %v397 = vld [vmem:[%s390 + $0x18] sm:$0xf]
  %v398 = vld [vmem:[%s390 + $0x1c] sm:$0xf]
  %v403 = vunpack.c.l.b16 %v386
  %v404 = vunpack.c.l.b16 %v387
  %v405 = vunpack.c.l.b16 %v388
  %v406 = vunpack.c.l.b16 %v389
  %v407 = vpack.c.b16 %v404, %v403
  %v408 = vpack.c.b16 %v406, %v405
  %v417 = vunpack.c.l.b16 %v391
  %v418 = vunpack.c.l.b16 %v392
  %v419 = vunpack.c.l.b16 %v393
  %v420 = vunpack.c.l.b16 %v394
  %v421 = vunpack.c.l.b16 %v395
  %v422 = vunpack.c.l.b16 %v396
  %v423 = vunpack.c.l.b16 %v397
  %v424 = vunpack.c.l.b16 %v398
  %v425 = vpack.c.b16 %v418, %v417
  %v426 = vpack.c.b16 %v420, %v419
  %v427 = vpack.c.b16 %v422, %v421
  %v428 = vpack.c.b16 %v424, %v423
  %v434 = vsel %vm119, %v407, 0
  %v437 = vsel %vm119, %v408, 0
  %439 = vmatprep.subr.bf16.mxu0 0
  %440 = vmatpush1.bf16.msra.mxu0 %v425
  %441 = vmatprep.subr.bf16.mxu0 0
  %442 = vmatpush1.bf16.msra.mxu0 %v426
  %443 = vmatprep.subr.bf16.mxu0 0
  %444 = vmatpush1.bf16.msra.mxu0 %v427
  %445 = vmatprep.subr.bf16.mxu0 0
  %446 = vmatpush1.bf16.msra.mxu0 %v428
  %447 = vmatprep.subr.bf16.mxu0 0
  %448 = vmatpush1.bf16.msra.mxu0 0
  %449 = vmatprep.subr.bf16.mxu0 0
  %450 = vmatpush1.bf16.msra.mxu0 0
  %451 = vmatprep.subr.bf16.mxu0 0
  %452 = vmatpush1.bf16.msra.mxu0 0
  %453 = vmatprep.subr.bf16.mxu0 0
  %454 = vmatpush1.bf16.msra.mxu0 0
  %455 = vmatprep.subr.bf16.mxu0 0
  %456 = vmatpush1.bf16.msra.mxu0 0
  %457 = vmatprep.subr.bf16.mxu0 0
  %458 = vmatpush1.bf16.msra.mxu0 0
  %459 = vmatprep.subr.bf16.mxu0 0
  %460 = vmatpush1.bf16.msra.mxu0 0
  %461 = vmatprep.subr.bf16.mxu0 0
  %462 = vmatpush1.bf16.msra.mxu0 0
  %463 = vmatprep.subr.bf16.mxu0 0
  %464 = vmatpush1.bf16.msra.mxu0 0
  %465 = vmatprep.subr.bf16.mxu0 0
  %466 = vmatpush1.bf16.msra.mxu0 0
  %467 = vmatprep.subr.bf16.mxu0 0
  %468 = vmatpush1.bf16.msra.mxu0 0
  %469 = vmatprep.subr.bf16.mxu0 0
  %470 = vmatpush1.bf16.msra.mxu0 0
  %471 = vmatprep.mubr.bf16.mxu0 0
  %472 = vmatmul.mubr.bf16.gmra.mrb[0].mxu0 %v434
  %v473 = vpop.f32.mrb[0].mxu0
  %v474 = vadd.f32 0.0, %v473
  %v475 = vpop.f32.mrb[0].mxu0
  %v476 = vpop.f32.mrb[0].mxu0
  %v477 = vadd.f32 0.0, %v476
  %v478 = vpop.f32.mrb[0].mxu0
  %479 = vmatprep.mubr.bf16.mxu0 0
  %480 = vmatmul.mubr.bf16.gmra.mrb[0].mxu0 %v437
  %v481 = vpop.f32.mrb[0].mxu0
  %v482 = vadd.f32 0.0, %v481
  %v483 = vpop.f32.mrb[0].mxu0
  %v484 = vpop.f32.mrb[0].mxu0
  %v485 = vadd.f32 0.0, %v484
  %v486 = vpop.f32.mrb[0].mxu0
  %487 = vdwg.mxu0
  %v488 = vadd.f32 %v381, %v474
  %v489 = vadd.f32 %v382, %v477
  %v490 = vadd.f32 %v383, %v482
  %v491 = vadd.f32 %v384, %v485
  %v492 = vld [vmem:[%s385] sm:$0xf]
  %v493 = vld [vmem:[%s385 + $0x4] sm:$0xf]
  %v494 = vld [vmem:[%s385 + $0x8] sm:$0x1]
  %v495 = vld [vmem:[%s385 + $0x24] sm:$0xf]
  %v496 = vld [vmem:[%s385 + $0x28] sm:$0xf]
  %v497 = vld [vmem:[%s385 + $0x2c] sm:$0x1]
  %v499 = vshrl.u32 %v492, 16
  %v501 = vrot.slane %v499, 4
  %v502 = vshll.u32 %v492, 16
  %v504 = vrot.slane %v502, 5
  %v505 = vor.u32 %v501, %v504
  %v506 = vrot.slane %v505, 4
  %v508 = vshll.u32 %v493, 16
  %v510 = vrot.slane %v508, 5
  %v511 = vsel %vm31, %v506, %v510
  %v512 = vshrl.u32 %v493, 16
  %v514 = vrot.slane %v512, 4
  %v515 = vor.u32 %v514, %v510
  %v516 = vrot.slane %v515, 4
  %v518 = vshll.u32 %v494, 16
  %v520 = vrot.slane %v518, 5
  %v521 = vsel %vm31, %v516, %v520
  %v523 = vshrl.u32 %v495, 16
  %v525 = vrot.slane %v523, 4
  %v526 = vshll.u32 %v495, 16
  %v528 = vrot.slane %v526, 5
  %v529 = vor.u32 %v525, %v528
  %v530 = vrot.slane %v529, 4
  %v532 = vshll.u32 %v496, 16
  %v534 = vrot.slane %v532, 5
  %v535 = vsel %vm31, %v530, %v534
  %v536 = vshrl.u32 %v496, 16
  %v538 = vrot.slane %v536, 4
  %v539 = vor.u32 %v538, %v534
  %v540 = vrot.slane %v539, 4
  %v542 = vshll.u32 %v497, 16
  %v544 = vrot.slane %v542, 5
  %v545 = vsel %vm31, %v540, %v544
  %s546 = scalar_lea.vmem %s1, 128
  %v547 = vld [vmem:[%s546] sm:$0xf]
  %v548 = vld [vmem:[%s546 + $0x4] sm:$0xf]
  %v549 = vld [vmem:[%s546 + $0x8] sm:$0xf]
  %v550 = vld [vmem:[%s546 + $0xc] sm:$0xf]
  %v551 = vld [vmem:[%s546 + $0x10] sm:$0xf]
  %v552 = vld [vmem:[%s546 + $0x14] sm:$0xf]
  %v553 = vld [vmem:[%s546 + $0x18] sm:$0xf]
  %v554 = vld [vmem:[%s546 + $0x1c] sm:$0xf]
  %v555 = vunpack.c.l.b16 %v511
  %v556 = vunpack.c.l.b16 %v521
  %v557 = vunpack.c.l.b16 %v535
  %v558 = vunpack.c.l.b16 %v545
  %v559 = vpack.c.b16 %v556, %v555
  %v560 = vpack.c.b16 %v558, %v557
  %v569 = vunpack.c.l.b16 %v547
  %v570 = vunpack.c.l.b16 %v548
  %v571 = vunpack.c.l.b16 %v549
  %v572 = vunpack.c.l.b16 %v550
  %v573 = vunpack.c.l.b16 %v551
  %v574 = vunpack.c.l.b16 %v552
  %v575 = vunpack.c.l.b16 %v553
  %v576 = vunpack.c.l.b16 %v554
  %v577 = vpack.c.b16 %v570, %v569
  %v578 = vpack.c.b16 %v572, %v571
  %v579 = vpack.c.b16 %v574, %v573
  %v580 = vpack.c.b16 %v576, %v575
  %v586 = vsel %vm119, %v559, 0
  %v589 = vsel %vm119, %v560, 0
  %591 = vmatprep.subr.bf16.mxu0 0
  %592 = vmatpush1.bf16.msra.mxu0 %v577
  %593 = vmatprep.subr.bf16.mxu0 0
  %594 = vmatpush1.bf16.msra.mxu0 %v578
  %595 = vmatprep.subr.bf16.mxu0 0
  %596 = vmatpush1.bf16.msra.mxu0 %v579
  %597 = vmatprep.subr.bf16.mxu0 0
  %598 = vmatpush1.bf16.msra.mxu0 %v580
  %599 = vmatprep.subr.bf16.mxu0 0
  %600 = vmatpush1.bf16.msra.mxu0 0
  %601 = vmatprep.subr.bf16.mxu0 0
  %602 = vmatpush1.bf16.msra.mxu0 0
  %603 = vmatprep.subr.bf16.mxu0 0
  %604 = vmatpush1.bf16.msra.mxu0 0
  %605 = vmatprep.subr.bf16.mxu0 0
  %606 = vmatpush1.bf16.msra.mxu0 0
  %607 = vmatprep.subr.bf16.mxu0 0
  %608 = vmatpush1.bf16.msra.mxu0 0
  %609 = vmatprep.subr.bf16.mxu0 0
  %610 = vmatpush1.bf16.msra.mxu0 0
  %611 = vmatprep.subr.bf16.mxu0 0
  %612 = vmatpush1.bf16.msra.mxu0 0
  %613 = vmatprep.subr.bf16.mxu0 0
  %614 = vmatpush1.bf16.msra.mxu0 0
  %615 = vmatprep.subr.bf16.mxu0 0
  %616 = vmatpush1.bf16.msra.mxu0 0
  %617 = vmatprep.subr.bf16.mxu0 0
  %618 = vmatpush1.bf16.msra.mxu0 0
  %619 = vmatprep.subr.bf16.mxu0 0
  %620 = vmatpush1.bf16.msra.mxu0 0
  %621 = vmatprep.subr.bf16.mxu0 0
  %622 = vmatpush1.bf16.msra.mxu0 0
  %623 = vmatprep.mubr.bf16.mxu0 0
  %624 = vmatmul.mubr.bf16.gmra.mrb[0].mxu0 %v586
  %v625 = vpop.f32.mrb[0].mxu0
  %v626 = vadd.f32 0.0, %v625
  %v627 = vpop.f32.mrb[0].mxu0
  %v628 = vpop.f32.mrb[0].mxu0
  %v629 = vadd.f32 0.0, %v628
  %v630 = vpop.f32.mrb[0].mxu0
  %631 = vmatprep.mubr.bf16.mxu0 0
  %632 = vmatmul.mubr.bf16.gmra.mrb[0].mxu0 %v589
  %v633 = vpop.f32.mrb[0].mxu0
  %v634 = vadd.f32 0.0, %v633
  %v635 = vpop.f32.mrb[0].mxu0
  %v636 = vpop.f32.mrb[0].mxu0
  %v637 = vadd.f32 0.0, %v636
  %v638 = vpop.f32.mrb[0].mxu0
  %639 = vdwg.mxu0
  %v640 = vadd.f32 %v488, %v626
  %v641 = vadd.f32 %v489, %v629
  %v642 = vadd.f32 %v490, %v634
  %v643 = vadd.f32 %v491, %v637
  %v644 = vld [vmem:[%s385] sm:$0xe]
  %v645 = vld [vmem:[%s385 + $0x24] sm:$0xe]
  %v652 = vrot.slane %v644, 5
  %v653 = vrot.slane %v652, 4
  %v654 = vrot.slane %v493, 5
  %v655 = vsel %vm272, %v653, %v654
  %v656 = vrot.slane %v654, 4
  %v657 = vrot.slane %v494, 5
  %v658 = vsel %vm272, %v656, %v657
  %v659 = vrot.slane %v645, 5
  %v660 = vrot.slane %v659, 4
  %v661 = vrot.slane %v496, 5
  %v662 = vsel %vm272, %v660, %v661
  %v663 = vrot.slane %v661, 4
  %v664 = vrot.slane %v497, 5
  %v665 = vsel %vm272, %v663, %v664
  %s666 = scalar_lea.vmem %s1, 160
  %v667 = vld [vmem:[%s666] sm:$0xf]
  %v668 = vld [vmem:[%s666 + $0x4] sm:$0xf]
  %v669 = vld [vmem:[%s666 + $0x8] sm:$0xf]
  %v670 = vld [vmem:[%s666 + $0xc] sm:$0xf]
  %v671 = vld [vmem:[%s666 + $0x10] sm:$0xf]
  %v672 = vld [vmem:[%s666 + $0x14] sm:$0xf]
  %v673 = vld [vmem:[%s666 + $0x18] sm:$0xf]
  %v674 = vld [vmem:[%s666 + $0x1c] sm:$0xf]
  %v675 = vunpack.c.l.b16 %v655
  %v676 = vunpack.c.l.b16 %v658
  %v677 = vunpack.c.l.b16 %v662
  %v678 = vunpack.c.l.b16 %v665
  %v679 = vpack.c.b16 %v676, %v675
  %v680 = vpack.c.b16 %v678, %v677
  %v689 = vunpack.c.l.b16 %v667
  %v690 = vunpack.c.l.b16 %v668
  %v691 = vunpack.c.l.b16 %v669
  %v692 = vunpack.c.l.b16 %v670
  %v693 = vunpack.c.l.b16 %v671
  %v694 = vunpack.c.l.b16 %v672
  %v695 = vunpack.c.l.b16 %v673
  %v696 = vunpack.c.l.b16 %v674
  %v697 = vpack.c.b16 %v690, %v689
  %v698 = vpack.c.b16 %v692, %v691
  %v699 = vpack.c.b16 %v694, %v693
  %v700 = vpack.c.b16 %v696, %v695
  %v706 = vsel %vm119, %v679, 0
  %v709 = vsel %vm119, %v680, 0
  %711 = vmatprep.subr.bf16.mxu0 0
  %712 = vmatpush1.bf16.msra.mxu0 %v697
  %713 = vmatprep.subr.bf16.mxu0 0
  %714 = vmatpush1.bf16.msra.mxu0 %v698
  %715 = vmatprep.subr.bf16.mxu0 0
  %716 = vmatpush1.bf16.msra.mxu0 %v699
  %717 = vmatprep.subr.bf16.mxu0 0
  %718 = vmatpush1.bf16.msra.mxu0 %v700
  %719 = vmatprep.subr.bf16.mxu0 0
  %720 = vmatpush1.bf16.msra.mxu0 0
  %721 = vmatprep.subr.bf16.mxu0 0
  %722 = vmatpush1.bf16.msra.mxu0 0
  %723 = vmatprep.subr.bf16.mxu0 0
  %724 = vmatpush1.bf16.msra.mxu0 0
  %725 = vmatprep.subr.bf16.mxu0 0
  %726 = vmatpush1.bf16.msra.mxu0 0
  %727 = vmatprep.subr.bf16.mxu0 0
  %728 = vmatpush1.bf16.msra.mxu0 0
  %729 = vmatprep.subr.bf16.mxu0 0
  %730 = vmatpush1.bf16.msra.mxu0 0
  %731 = vmatprep.subr.bf16.mxu0 0
  %732 = vmatpush1.bf16.msra.mxu0 0
  %733 = vmatprep.subr.bf16.mxu0 0
  %734 = vmatpush1.bf16.msra.mxu0 0
  %735 = vmatprep.subr.bf16.mxu0 0
  %736 = vmatpush1.bf16.msra.mxu0 0
  %737 = vmatprep.subr.bf16.mxu0 0
  %738 = vmatpush1.bf16.msra.mxu0 0
  %739 = vmatprep.subr.bf16.mxu0 0
  %740 = vmatpush1.bf16.msra.mxu0 0
  %741 = vmatprep.subr.bf16.mxu0 0
  %742 = vmatpush1.bf16.msra.mxu0 0
  %743 = vmatprep.mubr.bf16.mxu0 0
  %744 = vmatmul.mubr.bf16.gmra.mrb[0].mxu0 %v706
  %v745 = vpop.f32.mrb[0].mxu0
  %v746 = vadd.f32 0.0, %v745
  %v747 = vpop.f32.mrb[0].mxu0
  %v748 = vpop.f32.mrb[0].mxu0
  %v749 = vadd.f32 0.0, %v748
  %v750 = vpop.f32.mrb[0].mxu0
  %751 = vmatprep.mubr.bf16.mxu0 0
  %752 = vmatmul.mubr.bf16.gmra.mrb[0].mxu0 %v709
  %v753 = vpop.f32.mrb[0].mxu0
  %v754 = vadd.f32 0.0, %v753
  %v755 = vpop.f32.mrb[0].mxu0
  %v756 = vpop.f32.mrb[0].mxu0
  %v757 = vadd.f32 0.0, %v756
  %v758 = vpop.f32.mrb[0].mxu0
  %759 = vdwg.mxu0
  %v760 = vadd.f32 %v640, %v746
  %v761 = vadd.f32 %v641, %v749
  %v762 = vadd.f32 %v642, %v754
  %v763 = vadd.f32 %v643, %v757
  %s764 = scalar_lea.vmem %s0, 24
  %v765 = vld [vmem:[%s764] sm:$0xf]
  %v766 = vld [vmem:[%s764 + $0x4] sm:$0xf]
  %v767 = vld [vmem:[%s764 + $0x24] sm:$0xf]
  %v768 = vld [vmem:[%s764 + $0x28] sm:$0xf]
  %s769 = scalar_lea.vmem %s1, 192
  %v770 = vld [vmem:[%s769] sm:$0xf]
  %v771 = vld [vmem:[%s769 + $0x4] sm:$0xf]
  %v772 = vld [vmem:[%s769 + $0x8] sm:$0xf]
  %v773 = vld [vmem:[%s769 + $0xc] sm:$0xf]
  %v774 = vld [vmem:[%s769 + $0x10] sm:$0xf]
  %v775 = vld [vmem:[%s769 + $0x14] sm:$0xf]
  %v776 = vld [vmem:[%s769 + $0x18] sm:$0xf]
  %v777 = vld [vmem:[%s769 + $0x1c] sm:$0xf]
  %v782 = vunpack.c.l.b16 %v765
  %v783 = vunpack.c.l.b16 %v766
  %v784 = vunpack.c.l.b16 %v767
  %v785 = vunpack.c.l.b16 %v768
  %v786 = vpack.c.b16 %v783, %v782
  %v787 = vpack.c.b16 %v785, %v784
  %v796 = vunpack.c.l.b16 %v770
  %v797 = vunpack.c.l.b16 %v771
  %v798 = vunpack.c.l.b16 %v772
  %v799 = vunpack.c.l.b16 %v773
  %v800 = vunpack.c.l.b16 %v774
  %v801 = vunpack.c.l.b16 %v775
  %v802 = vunpack.c.l.b16 %v776
  %v803 = vunpack.c.l.b16 %v777
  %v804 = vpack.c.b16 %v797, %v796
  %v805 = vpack.c.b16 %v799, %v798
  %v806 = vpack.c.b16 %v801, %v800
  %v807 = vpack.c.b16 %v803, %v802
  %v813 = vsel %vm119, %v786, 0
  %v816 = vsel %vm119, %v787, 0
  %818 = vmatprep.subr.bf16.mxu0 0
  %819 = vmatpush1.bf16.msra.mxu0 %v804
  %820 = vmatprep.subr.bf16.mxu0 0
  %821 = vmatpush1.bf16.msra.mxu0 %v805
  %822 = vmatprep.subr.bf16.mxu0 0
  %823 = vmatpush1.bf16.msra.mxu0 %v806
  %824 = vmatprep.subr.bf16.mxu0 0
  %825 = vmatpush1.bf16.msra.mxu0 %v807
  %826 = vmatprep.subr.bf16.mxu0 0
  %827 = vmatpush1.bf16.msra.mxu0 0
  %828 = vmatprep.subr.bf16.mxu0 0
  %829 = vmatpush1.bf16.msra.mxu0 0
  %830 = vmatprep.subr.bf16.mxu0 0
  %831 = vmatpush1.bf16.msra.mxu0 0
  %832 = vmatprep.subr.bf16.mxu0 0
  %833 = vmatpush1.bf16.msra.mxu0 0
  %834 = vmatprep.subr.bf16.mxu0 0
  %835 = vmatpush1.bf16.msra.mxu0 0
  %836 = vmatprep.subr.bf16.mxu0 0
  %837 = vmatpush1.bf16.msra.mxu0 0
  %838 = vmatprep.subr.bf16.mxu0 0
  %839 = vmatpush1.bf16.msra.mxu0 0
  %840 = vmatprep.subr.bf16.mxu0 0
  %841 = vmatpush1.bf16.msra.mxu0 0
  %842 = vmatprep.subr.bf16.mxu0 0
  %843 = vmatpush1.bf16.msra.mxu0 0
  %844 = vmatprep.subr.bf16.mxu0 0
  %845 = vmatpush1.bf16.msra.mxu0 0
  %846 = vmatprep.subr.bf16.mxu0 0
  %847 = vmatpush1.bf16.msra.mxu0 0
  %848 = vmatprep.subr.bf16.mxu0 0
  %849 = vmatpush1.bf16.msra.mxu0 0
  %850 = vmatprep.mubr.bf16.mxu0 0
  %851 = vmatmul.mubr.bf16.gmra.mrb[0].mxu0 %v813
  %v852 = vpop.f32.mrb[0].mxu0
  %v853 = vadd.f32 0.0, %v852
  %v854 = vpop.f32.mrb[0].mxu0
  %v855 = vpop.f32.mrb[0].mxu0
  %v856 = vadd.f32 0.0, %v855
  %v857 = vpop.f32.mrb[0].mxu0
  %858 = vmatprep.mubr.bf16.mxu0 0
  %859 = vmatmul.mubr.bf16.gmra.mrb[0].mxu0 %v816
  %v860 = vpop.f32.mrb[0].mxu0
  %v861 = vadd.f32 0.0, %v860
  %v862 = vpop.f32.mrb[0].mxu0
  %v863 = vpop.f32.mrb[0].mxu0
  %v864 = vadd.f32 0.0, %v863
  %v865 = vpop.f32.mrb[0].mxu0
  %866 = vdwg.mxu0
  %v867 = vadd.f32 %v760, %v853
  %v868 = vadd.f32 %v761, %v856
  %v869 = vadd.f32 %v762, %v861
  %v870 = vadd.f32 %v763, %v864
  %v871 = vld [vmem:[%s764] sm:$0xf]
  %v872 = vld [vmem:[%s764 + $0x4] sm:$0xf]
  %v873 = vld [vmem:[%s764 + $0x8] sm:$0x1]
  %v874 = vld [vmem:[%s764 + $0x24] sm:$0xf]
  %v875 = vld [vmem:[%s764 + $0x28] sm:$0xf]
  %v876 = vld [vmem:[%s764 + $0x2c] sm:$0x1]
  %v878 = vshrl.u32 %v871, 16
  %v880 = vrot.slane %v878, 4
  %v881 = vshll.u32 %v871, 16
  %v883 = vrot.slane %v881, 5
  %v884 = vor.u32 %v880, %v883
  %v885 = vrot.slane %v884, 4
  %v887 = vshll.u32 %v872, 16
  %v889 = vrot.slane %v887, 5
  %v890 = vsel %vm31, %v885, %v889
  %v891 = vshrl.u32 %v872, 16
  %v893 = vrot.slane %v891, 4
  %v894 = vor.u32 %v893, %v889
  %v895 = vrot.slane %v894, 4
  %v897 = vshll.u32 %v873, 16
  %v899 = vrot.slane %v897, 5
  %v900 = vsel %vm31, %v895, %v899
  %v902 = vshrl.u32 %v874, 16
  %v904 = vrot.slane %v902, 4
  %v905 = vshll.u32 %v874, 16
  %v907 = vrot.slane %v905, 5
  %v908 = vor.u32 %v904, %v907
  %v909 = vrot.slane %v908, 4
  %v911 = vshll.u32 %v875, 16
  %v913 = vrot.slane %v911, 5
  %v914 = vsel %vm31, %v909, %v913
  %v915 = vshrl.u32 %v875, 16
  %v917 = vrot.slane %v915, 4
  %v918 = vor.u32 %v917, %v913
  %v919 = vrot.slane %v918, 4
  %v921 = vshll.u32 %v876, 16
  %v923 = vrot.slane %v921, 5
  %v924 = vsel %vm31, %v919, %v923
  %s925 = scalar_lea.vmem %s1, 224
  %v926 = vld [vmem:[%s925] sm:$0xf]
  %v927 = vld [vmem:[%s925 + $0x4] sm:$0xf]
  %v928 = vld [vmem:[%s925 + $0x8] sm:$0xf]
  %v929 = vld [vmem:[%s925 + $0xc] sm:$0xf]
  %v930 = vld [vmem:[%s925 + $0x10] sm:$0xf]
  %v931 = vld [vmem:[%s925 + $0x14] sm:$0xf]
  %v932 = vld [vmem:[%s925 + $0x18] sm:$0xf]
  %v933 = vld [vmem:[%s925 + $0x1c] sm:$0xf]
  %v934 = vunpack.c.l.b16 %v890
  %v935 = vunpack.c.l.b16 %v900
  %v936 = vunpack.c.l.b16 %v914
  %v937 = vunpack.c.l.b16 %v924
  %v938 = vpack.c.b16 %v935, %v934
  %v939 = vpack.c.b16 %v937, %v936
  %v948 = vunpack.c.l.b16 %v926
  %v949 = vunpack.c.l.b16 %v927
  %v950 = vunpack.c.l.b16 %v928
  %v951 = vunpack.c.l.b16 %v929
  %v952 = vunpack.c.l.b16 %v930
  %v953 = vunpack.c.l.b16 %v931
  %v954 = vunpack.c.l.b16 %v932
  %v955 = vunpack.c.l.b16 %v933
  %v956 = vpack.c.b16 %v949, %v948
  %v957 = vpack.c.b16 %v951, %v950
  %v958 = vpack.c.b16 %v953, %v952
  %v959 = vpack.c.b16 %v955, %v954
  %v965 = vsel %vm119, %v938, 0
  %v968 = vsel %vm119, %v939, 0
  %970 = vmatprep.subr.bf16.mxu0 0
  %971 = vmatpush1.bf16.msra.mxu0 %v956
  %972 = vmatprep.subr.bf16.mxu0 0
  %973 = vmatpush1.bf16.msra.mxu0 %v957
  %974 = vmatprep.subr.bf16.mxu0 0
  %975 = vmatpush1.bf16.msra.mxu0 %v958
  %976 = vmatprep.subr.bf16.mxu0 0
  %977 = vmatpush1.bf16.msra.mxu0 %v959
  %978 = vmatprep.subr.bf16.mxu0 0
  %979 = vmatpush1.bf16.msra.mxu0 0
  %980 = vmatprep.subr.bf16.mxu0 0
  %981 = vmatpush1.bf16.msra.mxu0 0
  %982 = vmatprep.subr.bf16.mxu0 0
  %983 = vmatpush1.bf16.msra.mxu0 0
  %984 = vmatprep.subr.bf16.mxu0 0
  %985 = vmatpush1.bf16.msra.mxu0 0
  %986 = vmatprep.subr.bf16.mxu0 0
  %987 = vmatpush1.bf16.msra.mxu0 0
  %988 = vmatprep.subr.bf16.mxu0 0
  %989 = vmatpush1.bf16.msra.mxu0 0
  %990 = vmatprep.subr.bf16.mxu0 0
  %991 = vmatpush1.bf16.msra.mxu0 0
  %992 = vmatprep.subr.bf16.mxu0 0
  %993 = vmatpush1.bf16.msra.mxu0 0
  %994 = vmatprep.subr.bf16.mxu0 0
  %995 = vmatpush1.bf16.msra.mxu0 0
  %996 = vmatprep.subr.bf16.mxu0 0
  %997 = vmatpush1.bf16.msra.mxu0 0
  %998 = vmatprep.subr.bf16.mxu0 0
  %999 = vmatpush1.bf16.msra.mxu0 0
  %1000 = vmatprep.subr.bf16.mxu0 0
  %1001 = vmatpush1.bf16.msra.mxu0 0
  %1002 = vmatprep.mubr.bf16.mxu0 0
  %1003 = vmatmul.mubr.bf16.gmra.mrb[0].mxu0 %v965
  %v1004 = vpop.f32.mrb[0].mxu0
  %v1005 = vadd.f32 0.0, %v1004
  %v1006 = vpop.f32.mrb[0].mxu0
  %v1007 = vpop.f32.mrb[0].mxu0
  %v1008 = vadd.f32 0.0, %v1007
  %v1009 = vpop.f32.mrb[0].mxu0
  %1010 = vmatprep.mubr.bf16.mxu0 0
  %1011 = vmatmul.mubr.bf16.gmra.mrb[0].mxu0 %v968
  %v1012 = vpop.f32.mrb[0].mxu0
  %v1013 = vadd.f32 0.0, %v1012
  %v1014 = vpop.f32.mrb[0].mxu0
  %v1015 = vpop.f32.mrb[0].mxu0
  %v1016 = vadd.f32 0.0, %v1015
  %v1017 = vpop.f32.mrb[0].mxu0
  %1018 = vdwg.mxu0
  %v1019 = vadd.f32 %v867, %v1005
  %v1020 = vadd.f32 %v868, %v1008
  %v1021 = vadd.f32 %v869, %v1013
  %v1022 = vadd.f32 %v870, %v1016
  %v1023 = vld [vmem:[%s764] sm:$0xe]
  %v1024 = vld [vmem:[%s764 + $0x24] sm:$0xe]
  %v1031 = vrot.slane %v1023, 5
  %v1032 = vrot.slane %v1031, 4
  %v1033 = vrot.slane %v872, 5
  %v1034 = vsel %vm272, %v1032, %v1033
  %v1035 = vrot.slane %v1033, 4
  %v1036 = vrot.slane %v873, 5
  %v1037 = vsel %vm272, %v1035, %v1036
  %v1038 = vrot.slane %v1024, 5
  %v1039 = vrot.slane %v1038, 4
  %v1040 = vrot.slane %v875, 5
  %v1041 = vsel %vm272, %v1039, %v1040
  %v1042 = vrot.slane %v1040, 4
  %v1043 = vrot.slane %v876, 5
  %v1044 = vsel %vm272, %v1042, %v1043
  %s1045 = scalar_lea.vmem %s1, 256
  %v1046 = vld [vmem:[%s1045] sm:$0xf]
  %v1047 = vld [vmem:[%s1045 + $0x4] sm:$0xf]
  %v1048 = vld [vmem:[%s1045 + $0x8] sm:$0xf]
  %v1049 = vld [vmem:[%s1045 + $0xc] sm:$0xf]
  %v1050 = vld [vmem:[%s1045 + $0x10] sm:$0xf]
  %v1051 = vld [vmem:[%s1045 + $0x14] sm:$0xf]
  %v1052 = vld [vmem:[%s1045 + $0x18] sm:$0xf]
  %v1053 = vld [vmem:[%s1045 + $0x1c] sm:$0xf]
  %v1054 = vunpack.c.l.b16 %v1034
  %v1055 = vunpack.c.l.b16 %v1037
  %v1056 = vunpack.c.l.b16 %v1041
  %v1057 = vunpack.c.l.b16 %v1044
  %v1058 = vpack.c.b16 %v1055, %v1054
  %v1059 = vpack.c.b16 %v1057, %v1056
  %v1068 = vunpack.c.l.b16 %v1046
  %v1069 = vunpack.c.l.b16 %v1047
  %v1070 = vunpack.c.l.b16 %v1048
  %v1071 = vunpack.c.l.b16 %v1049
  %v1072 = vunpack.c.l.b16 %v1050
  %v1073 = vunpack.c.l.b16 %v1051
  %v1074 = vunpack.c.l.b16 %v1052
  %v1075 = vunpack.c.l.b16 %v1053
  %v1076 = vpack.c.b16 %v1069, %v1068
  %v1077 = vpack.c.b16 %v1071, %v1070
  %v1078 = vpack.c.b16 %v1073, %v1072
  %v1079 = vpack.c.b16 %v1075, %v1074
  %v1085 = vsel %vm119, %v1058, 0
  %v1088 = vsel %vm119, %v1059, 0
  %1090 = vmatprep.subr.bf16.mxu0 0
  %1091 = vmatpush1.bf16.msra.mxu0 %v1076
  %1092 = vmatprep.subr.bf16.mxu0 0
  %1093 = vmatpush1.bf16.msra.mxu0 %v1077
  %1094 = vmatprep.subr.bf16.mxu0 0
  %1095 = vmatpush1.bf16.msra.mxu0 %v1078
  %1096 = vmatprep.subr.bf16.mxu0 0
  %1097 = vmatpush1.bf16.msra.mxu0 %v1079
  %1098 = vmatprep.subr.bf16.mxu0 0
  %1099 = vmatpush1.bf16.msra.mxu0 0
  %1100 = vmatprep.subr.bf16.mxu0 0
  %1101 = vmatpush1.bf16.msra.mxu0 0
  %1102 = vmatprep.subr.bf16.mxu0 0
  %1103 = vmatpush1.bf16.msra.mxu0 0
  %1104 = vmatprep.subr.bf16.mxu0 0
  %1105 = vmatpush1.bf16.msra.mxu0 0
  %1106 = vmatprep.subr.bf16.mxu0 0
  %1107 = vmatpush1.bf16.msra.mxu0 0
  %1108 = vmatprep.subr.bf16.mxu0 0
  %1109 = vmatpush1.bf16.msra.mxu0 0
  %1110 = vmatprep.subr.bf16.mxu0 0
  %1111 = vmatpush1.bf16.msra.mxu0 0
  %1112 = vmatprep.subr.bf16.mxu0 0
  %1113 = vmatpush1.bf16.msra.mxu0 0
  %1114 = vmatprep.subr.bf16.mxu0 0
  %1115 = vmatpush1.bf16.msra.mxu0 0
  %1116 = vmatprep.subr.bf16.mxu0 0
  %1117 = vmatpush1.bf16.msra.mxu0 0
  %1118 = vmatprep.subr.bf16.mxu0 0
  %1119 = vmatpush1.bf16.msra.mxu0 0
  %1120 = vmatprep.subr.bf16.mxu0 0
  %1121 = vmatpush1.bf16.msra.mxu0 0
  %1122 = vmatprep.mubr.bf16.mxu0 0
  %1123 = vmatmul.mubr.bf16.gmra.mrb[0].mxu0 %v1085
  %v1124 = vpop.f32.mrb[0].mxu0
  %v1125 = vadd.f32 0.0, %v1124
  %v1126 = vpop.f32.mrb[0].mxu0
  %v1127 = vpop.f32.mrb[0].mxu0
  %v1128 = vadd.f32 0.0, %v1127
  %v1129 = vpop.f32.mrb[0].mxu0
  %1130 = vmatprep.mubr.bf16.mxu0 0
  %1131 = vmatmul.mubr.bf16.gmra.mrb[0].mxu0 %v1088
  %v1132 = vpop.f32.mrb[0].mxu0
  %v1133 = vadd.f32 0.0, %v1132
  %v1134 = vpop.f32.mrb[0].mxu0
  %v1135 = vpop.f32.mrb[0].mxu0
  %v1136 = vadd.f32 0.0, %v1135
  %v1137 = vpop.f32.mrb[0].mxu0
  %1138 = vdwg.mxu0
  %v1139 = vadd.f32 %v1019, %v1125
  %v1140 = vadd.f32 %v1020, %v1128
  %v1141 = vadd.f32 %v1021, %v1133
  %v1142 = vadd.f32 %v1022, %v1136
  %v1143 = vld [vmem:[%s2] sm:$0x1]
  %v1145 = vlaneseq
  %v1146 = vshrl.u32 %v1145, 7
  %v1147 = vsub.s32 0, %v1146
  %v1148 = vrot.slane %v1143, %v1147
  %v1150 = vadd.f32 %v1139, %v1148
  %v1151 = vadd.f32 %v1140, %v1148
  %v1152 = vadd.f32 %v1141, %v1148
  %v1153 = vadd.f32 %v1142, %v1148
  %v1154 = vmax.f32 %v1150, 0.0
  %v1155 = vmax.f32 %v1151, 0.0
  %v1156 = vmax.f32 %v1152, 0.0
  %v1157 = vmax.f32 %v1153, 0.0
  %v1158 = vpack.c.bf16 %v1155, %v1154
  %v1159 = vpack.c.bf16 %v1157, %v1156
  %v1162 = vunpack.c.l.b16 %v1158
  %v1163 = vunpack.c.h.b16 %v1158
  %v1164 = vunpack.c.l.b16 %v1159
  %v1165 = vunpack.c.h.b16 %v1159
  %v1166 = vpack.c.b16 %v1162, %v1162
  %v1167 = vpack.c.b16 %v1163, %v1163
  %v1168 = vpack.c.b16 %v1164, %v1164
  %v1169 = vpack.c.b16 %v1165, %v1165
  %vm1174 = vcmask 519168
  %1175 = vst.msk [vmem:[%s3] sm:$0xf] %vm1174, %v1166
  %1176 = vst.msk [vmem:[%s3 + $0x4] sm:$0xf] %vm1174, %v1167
  %1177 = vst.msk [vmem:[%s3 + $0x8] sm:$0xf] %vm1174, %v1168
  %1178 = vst.msk [vmem:[%s3 + $0xc] sm:$0xf] %vm1174, %v1169
  // Predicated region
  $region14: #{network_forward.6} parent=0 // pred_check
    _
  $region15: #{network_forward.6} parent=0 // pred_check_branch
    %1180 = sbr.rel (0) target = $region17
  $region16: #{network_forward.6} parent=0 // pred_region
    _
  $region17: #{network_forward.6} parent=0 // pred_fallthru
    _
  // Predicated region
  $region18: #{network_forward.6} parent=0 // pred_check
    _
  $region19: #{network_forward.6} parent=0 // pred_check_branch
    %1182 = sbr.rel (0) target = $region21
  $region20: #{network_forward.6} parent=0 // pred_region
    _
  $region21: #{network_forward.6} parent=0 // pred_fallthru
    _

// kernel: network_forward.7
$region0: #{network_forward.7}
  #allocation0 [shape = 'u32[]', space=smem, size = 0x4, offset = 0x4, fixed_abs, tag = 'smem constant byte address 0x4 - core index']
  #allocation1 [shape = 'u32[144,128]{1,0:T(1,128)}', space=vmem, size = 0x12000, scoped, tag = 'internal scratch']
  %s0 = inlined_call_operand.vmem [shape: bf16[8,64], index: 0, kind: input, shape index: {}]
  %s1 = inlined_call_operand.vmem [shape: bf16[64,512], index: 1, kind: input, shape index: {}]
  %s2 = inlined_call_operand.vmem [shape: f32[1,512], index: 2, kind: input, shape index: {}]
  %s3 = inlined_call_operand.vmem [shape: bf16[512,128], index: 3, kind: input, shape index: {}]
  %s4 = inlined_call_operand.vmem [shape: f32[1,128], index: 4, kind: input, shape index: {}]
  %s5 = inlined_call_operand.vmem [shape: f32[8,128], index: 5, kind: output, shape index: {}]
  %s6 = sld [smem:[#allocation0]]
  $region30: #{network_forward.7} parent=0
    _
  %s8 = ssub.s32 1, %s6
  %s9 = scalar_select 0, %s8, %s6
  // Predicated region
  $region2: #{network_forward.7} parent=0 // pred_check
    _
  $region3: #{network_forward.7} parent=0 // pred_check_branch
    %11 = sbr.rel (0) target = $region5
  $region4: #{network_forward.7} parent=0 // pred_region
    _
  $region5: #{network_forward.7} parent=0 // pred_fallthru
    _
  // Predicated region
  $region6: #{network_forward.7} parent=0 // pred_check
    _
  $region7: #{network_forward.7} parent=0 // pred_check_branch
    %13 = sbr.rel (0) target = $region9
  $region8: #{network_forward.7} parent=0 // pred_region
    _
  $region9: #{network_forward.7} parent=0 // pred_fallthru
    _
  // Predicated region
  $region10: #{network_forward.7} parent=0 // pred_check
    _
  $region11: #{network_forward.7} parent=0 // pred_check_branch
    %15 = sbr.rel (0) target = $region13
  $region12: #{network_forward.7} parent=0 // pred_region
    _
  $region13: #{network_forward.7} parent=0 // pred_fallthru
    _
  // Predicated region
  $region14: #{network_forward.7} parent=0 // pred_check
    _
  $region15: #{network_forward.7} parent=0 // pred_check_branch
    %17 = sbr.rel (0) target = $region17
  $region16: #{network_forward.7} parent=0 // pred_region
    _
  $region17: #{network_forward.7} parent=0 // pred_fallthru
    _
  // Predicated region
  $region18: #{network_forward.7} parent=0 // pred_check
    _
  $region19: #{network_forward.7} parent=0 // pred_check_branch
    %19 = sbr.rel (0) target = $region21
  $region20: #{network_forward.7} parent=0 // pred_region
    _
  $region21: #{network_forward.7} parent=0 // pred_fallthru
    _
  %v21 = vld [vmem:[%s0] sm:$0xf]
  %v22 = vld [vmem:[%s1] sm:$0xff]
  %v23 = vld [vmem:[%s1 + $0x8] sm:$0xff]
  %v24 = vld [vmem:[%s1 + $0x10] sm:$0xff]
  %v25 = vld [vmem:[%s1 + $0x18] sm:$0xff]
  %v26 = vld [vmem:[%s1 + $0x20] sm:$0xff]
  %v27 = vld [vmem:[%s1 + $0x28] sm:$0xff]
  %v28 = vld [vmem:[%s1 + $0x30] sm:$0xff]
  %v29 = vld [vmem:[%s1 + $0x38] sm:$0xff]
  %v30 = vld [vmem:[%s1 + $0x40] sm:$0xff]
  %v31 = vld [vmem:[%s1 + $0x48] sm:$0xff]
  %v32 = vld [vmem:[%s1 + $0x50] sm:$0xff]
  %v33 = vld [vmem:[%s1 + $0x58] sm:$0xff]
  %v34 = vld [vmem:[%s1 + $0x60] sm:$0xff]
  %v35 = vld [vmem:[%s1 + $0x68] sm:$0xff]
  %v36 = vld [vmem:[%s1 + $0x70] sm:$0xff]
  %v37 = vld [vmem:[%s1 + $0x78] sm:$0xff]
  %v38 = vld [vmem:[%s2] sm:$0xf]
  %v40 = vlaneseq
  %v41 = vshrl.u32 %v40, 7
  %v42 = vsub.s32 0, %v41
  %v43 = vrot.slane %v38, %v42
  %v44 = vlaneseq
  %v45 = vshrl.u32 %v44, 7
  %v46 = vsub.s32 1, %v45
  %v47 = vrot.slane %v38, %v46
  %v48 = vlaneseq
  %v49 = vshrl.u32 %v48, 7
  %v50 = vsub.s32 2, %v49
  %v51 = vrot.slane %v38, %v50
  %v52 = vlaneseq
  %v53 = vshrl.u32 %v52, 7
  %v54 = vsub.s32 3, %v53
  %v55 = vrot.slane %v38, %v54
  %v76 = vunpack.c.l.b16 %v22
  %v77 = vunpack.c.h.b16 %v22
  %v78 = vunpack.c.l.b16 %v23
  %v79 = vunpack.c.h.b16 %v23
  %v80 = vunpack.c.l.b16 %v24
  %v81 = vunpack.c.h.b16 %v24
  %v82 = vunpack.c.l.b16 %v25
  %v83 = vunpack.c.h.b16 %v25
  %v84 = vunpack.c.l.b16 %v26
  %v85 = vunpack.c.h.b16 %v26
  %v86 = vunpack.c.l.b16 %v27
  %v87 = vunpack.c.h.b16 %v27
  %v88 = vunpack.c.l.b16 %v28
  %v89 = vunpack.c.h.b16 %v28
  %v90 = vunpack.c.l.b16 %v29
  %v91 = vunpack.c.h.b16 %v29
  %v92 = vunpack.c.l.b16 %v30
  %v93 = vunpack.c.h.b16 %v30
  %v94 = vunpack.c.l.b16 %v31
  %v95 = vunpack.c.h.b16 %v31
  %v96 = vunpack.c.l.b16 %v32
  %v97 = vunpack.c.h.b16 %v32
  %v98 = vunpack.c.l.b16 %v33
  %v99 = vunpack.c.h.b16 %v33
  %v100 = vunpack.c.l.b16 %v34
  %v101 = vunpack.c.h.b16 %v34
  %v102 = vunpack.c.l.b16 %v35
  %v103 = vunpack.c.h.b16 %v35
  %v104 = vunpack.c.l.b16 %v36
  %v105 = vunpack.c.h.b16 %v36
  %v106 = vunpack.c.l.b16 %v37
  %v107 = vunpack.c.h.b16 %v37
  %v108 = vpack.c.b16 %v80, %v76
  %v109 = vpack.c.b16 %v81, %v77
  %v110 = vpack.c.b16 %v82, %v78
  %v111 = vpack.c.b16 %v83, %v79
  %v112 = vpack.c.b16 %v88, %v84
  %v113 = vpack.c.b16 %v89, %v85
  %v114 = vpack.c.b16 %v90, %v86
  %v115 = vpack.c.b16 %v91, %v87
  %v116 = vpack.c.b16 %v96, %v92
  %v117 = vpack.c.b16 %v97, %v93
  %v118 = vpack.c.b16 %v98, %v94
  %v119 = vpack.c.b16 %v99, %v95
  %v120 = vpack.c.b16 %v104, %v100
  %v121 = vpack.c.b16 %v105, %v101
  %v122 = vpack.c.b16 %v106, %v102
  %v123 = vpack.c.b16 %v107, %v103
  %vm140 = vcmask 523264
  %v142 = vsel %vm140, %v21, 0
  %144 = vmatprep.subr.bf16.mxu0 %v109
  %145 = vmatpush1.bf16.msra.mxu0 %v108
  %146 = vmatprep.subr.bf16.mxu0 %v113
  %147 = vmatpush1.bf16.msra.mxu0 %v112
  %148 = vmatprep.subr.bf16.mxu0 %v117
  %149 = vmatpush1.bf16.msra.mxu0 %v116
  %150 = vmatprep.subr.bf16.mxu0 %v121
  %151 = vmatpush1.bf16.msra.mxu0 %v120
  %152 = vmatprep.subr.bf16.mxu0 0
  %153 = vmatpush1.bf16.msra.mxu0 0
  %154 = vmatprep.subr.bf16.mxu0 0
  %155 = vmatpush1.bf16.msra.mxu0 0
  %156 = vmatprep.subr.bf16.mxu0 0
  %157 = vmatpush1.bf16.msra.mxu0 0
  %158 = vmatprep.subr.bf16.mxu0 0
  %159 = vmatpush1.bf16.msra.mxu0 0
  %160 = vmatprep.subr.bf16.mxu0 0
  %161 = vmatpush1.bf16.msra.mxu0 0
  %162 = vmatprep.subr.bf16.mxu0 0
  %163 = vmatpush1.bf16.msra.mxu0 0
  %164 = vmatprep.subr.bf16.mxu0 0
  %165 = vmatpush1.bf16.msra.mxu0 0
  %166 = vmatprep.subr.bf16.mxu0 0
  %167 = vmatpush1.bf16.msra.mxu0 0
  %168 = vmatprep.subr.bf16.mxu0 0
  %169 = vmatpush1.bf16.msra.mxu0 0
  %170 = vmatprep.subr.bf16.mxu0 0
  %171 = vmatpush1.bf16.msra.mxu0 0
  %172 = vmatprep.subr.bf16.mxu0 0
  %173 = vmatpush1.bf16.msra.mxu0 0
  %174 = vmatprep.subr.bf16.mxu0 0
  %175 = vmatpush1.bf16.msra.mxu0 0
  %176 = vmatprep.mubr.bf16.mxu0 0
  %177 = vmatmul.mubr.bf16.gmra.mrb[0].mxu0 %v142
  %v178 = vpop.f32.mrb[0].mxu0
  %v179 = vadd.f32 %v43, %v178
  %v180 = vpop.f32.mrb[0].mxu0
  %v181 = vadd.f32 %v47, %v180
  %v182 = vpop.f32.mrb[0].mxu0
  %v183 = vpop.f32.mrb[0].mxu0
  %184 = vdwg.mxu0
  %185 = vmatprep.subr.bf16.mxu0 %v111
  %186 = vmatpush1.bf16.msra.mxu0 %v110
  %187 = vmatprep.subr.bf16.mxu0 %v115
  %188 = vmatpush1.bf16.msra.mxu0 %v114
  %189 = vmatprep.subr.bf16.mxu0 %v119
  %190 = vmatpush1.bf16.msra.mxu0 %v118
  %191 = vmatprep.subr.bf16.mxu0 %v123
  %192 = vmatpush1.bf16.msra.mxu0 %v122
  %193 = vmatprep.subr.bf16.mxu0 0
  %194 = vmatpush1.bf16.msra.mxu0 0
  %195 = vmatprep.subr.bf16.mxu0 0
  %196 = vmatpush1.bf16.msra.mxu0 0
  %197 = vmatprep.subr.bf16.mxu0 0
  %198 = vmatpush1.bf16.msra.mxu0 0
  %199 = vmatprep.subr.bf16.mxu0 0
  %200 = vmatpush1.bf16.msra.mxu0 0
  %201 = vmatprep.subr.bf16.mxu0 0
  %202 = vmatpush1.bf16.msra.mxu0 0
  %203 = vmatprep.subr.bf16.mxu0 0
  %204 = vmatpush1.bf16.msra.mxu0 0
  %205 = vmatprep.subr.bf16.mxu0 0
  %206 = vmatpush1.bf16.msra.mxu0 0
  %207 = vmatprep.subr.bf16.mxu0 0
  %208 = vmatpush1.bf16.msra.mxu0 0
  %209 = vmatprep.subr.bf16.mxu0 0
  %210 = vmatpush1.bf16.msra.mxu0 0
  %211 = vmatprep.subr.bf16.mxu0 0
  %212 = vmatpush1.bf16.msra.mxu0 0
  %213 = vmatprep.subr.bf16.mxu0 0
  %214 = vmatpush1.bf16.msra.mxu0 0
  %215 = vmatprep.subr.bf16.mxu0 0
  %216 = vmatpush1.bf16.msra.mxu0 0
  %217 = vmatprep.mubr.bf16.mxu0 0
  %218 = vmatmul.mubr.bf16.gmra.mrb[0].mxu0 %v142
  %v219 = vpop.f32.mrb[0].mxu0
  %v220 = vadd.f32 %v51, %v219
  %v221 = vpop.f32.mrb[0].mxu0
  %v222 = vadd.f32 %v55, %v221
  %v223 = vpop.f32.mrb[0].mxu0
  %v224 = vpop.f32.mrb[0].mxu0
  %225 = vdwg.mxu0
  %v226 = vmax.f32 %v179, 0.0
  %v227 = vmax.f32 %v181, 0.0
  %v228 = vmax.f32 %v220, 0.0
  %v229 = vmax.f32 %v222, 0.0
  %v230 = vpack.c.bf16 %v226, %v226
  %v231 = vpack.c.bf16 %v227, %v227
  %v232 = vpack.c.bf16 %v228, %v228
  %v233 = vpack.c.bf16 %v229, %v229
  %v234 = vld [vmem:[%s3] sm:$0xf]
  %v235 = vld [vmem:[%s3 + $0x4] sm:$0xf]
  %v236 = vld [vmem:[%s3 + $0x8] sm:$0xf]
  %v237 = vld [vmem:[%s3 + $0xc] sm:$0xf]
  %v238 = vld [vmem:[%s3 + $0x10] sm:$0xf]
  %v239 = vld [vmem:[%s3 + $0x14] sm:$0xf]
  %v240 = vld [vmem:[%s3 + $0x18] sm:$0xf]
  %v241 = vld [vmem:[%s3 + $0x1c] sm:$0xf]
  %v242 = vld [vmem:[%s3 + $0x20] sm:$0xf]
  %v243 = vld [vmem:[%s3 + $0x24] sm:$0xf]
  %v244 = vld [vmem:[%s3 + $0x28] sm:$0xf]
  %v245 = vld [vmem:[%s3 + $0x2c] sm:$0xf]
  %v246 = vld [vmem:[%s3 + $0x30] sm:$0xf]
  %v247 = vld [vmem:[%s3 + $0x34] sm:$0xf]
  %v248 = vld [vmem:[%s3 + $0x38] sm:$0xf]
  %v249 = vld [vmem:[%s3 + $0x3c] sm:$0xf]
  %v250 = vld [vmem:[%s3 + $0x40] sm:$0xf]
  %v251 = vld [vmem:[%s3 + $0x44] sm:$0xf]
  %v252 = vld [vmem:[%s3 + $0x48] sm:$0xf]
  %v253 = vld [vmem:[%s3 + $0x4c] sm:$0xf]
  %v254 = vld [vmem:[%s3 + $0x50] sm:$0xf]
  %v255 = vld [vmem:[%s3 + $0x54] sm:$0xf]
  %v256 = vld [vmem:[%s3 + $0x58] sm:$0xf]
  %v257 = vld [vmem:[%s3 + $0x5c] sm:$0xf]
  %v258 = vld [vmem:[%s3 + $0x60] sm:$0xf]
  %v259 = vld [vmem:[%s3 + $0x64] sm:$0xf]
  %v260 = vld [vmem:[%s3 + $0x68] sm:$0xf]
  %v261 = vld [vmem:[%s3 + $0x6c] sm:$0xf]
  %v262 = vld [vmem:[%s3 + $0x70] sm:$0xf]
  %v263 = vld [vmem:[%s3 + $0x74] sm:$0xf]
  %v264 = vld [vmem:[%s3 + $0x78] sm:$0xf]
  %v265 = vld [vmem:[%s3 + $0x7c] sm:$0xf]
  %v266 = vld [vmem:[%s3 + $0x80] sm:$0xf]
  %v267 = vld [vmem:[%s3 + $0x84] sm:$0xf]
  %v268 = vld [vmem:[%s3 + $0x88] sm:$0xf]
  %v269 = vld [vmem:[%s3 + $0x8c] sm:$0xf]
  %v270 = vld [vmem:[%s3 + $0x90] sm:$0xf]
  %v271 = vld [vmem:[%s3 + $0x94] sm:$0xf]
  %v272 = vld [vmem:[%s3 + $0x98] sm:$0xf]
  %v273 = vld [vmem:[%s3 + $0x9c] sm:$0xf]
  %v274 = vld [vmem:[%s3 + $0xa0] sm:$0xf]
  %v275 = vld [vmem:[%s3 + $0xa4] sm:$0xf]
  %v276 = vld [vmem:[%s3 + $0xa8] sm:$0xf]
  %v277 = vld [vmem:[%s3 + $0xac] sm:$0xf]
  %v278 = vld [vmem:[%s3 + $0xb0] sm:$0xf]
  %v279 = vld [vmem:[%s3 + $0xb4] sm:$0xf]
  %v280 = vld [vmem:[%s3 + $0xb8] sm:$0xf]
  %v281 = vld [vmem:[%s3 + $0xbc] sm:$0xf]
  %v282 = vld [vmem:[%s3 + $0xc0] sm:$0xf]
  %v283 = vld [vmem:[%s3 + $0xc4] sm:$0xf]
  %v284 = vld [vmem:[%s3 + $0xc8] sm:$0xf]
  %v285 = vld [vmem:[%s3 + $0xcc] sm:$0xf]
  %v286 = vld [vmem:[%s3 + $0xd0] sm:$0xf]
  %v287 = vld [vmem:[%s3 + $0xd4] sm:$0xf]
  %v288 = vld [vmem:[%s3 + $0xd8] sm:$0xf]
  %v289 = vld [vmem:[%s3 + $0xdc] sm:$0xf]
  %v290 = vld [vmem:[%s3 + $0xe0] sm:$0xf]
  %v291 = vld [vmem:[%s3 + $0xe4] sm:$0xf]
  %v292 = vld [vmem:[%s3 + $0xe8] sm:$0xf]
  %v293 = vld [vmem:[%s3 + $0xec] sm:$0xf]
  %v294 = vld [vmem:[%s3 + $0xf0] sm:$0xf]
  %v295 = vld [vmem:[%s3 + $0xf4] sm:$0xf]
  %v296 = vld [vmem:[%s3 + $0xf8] sm:$0xf]
  %v297 = vld [vmem:[%s3 + $0xfc] sm:$0xf]
  %v298 = vld [vmem:[%s4] sm:$0x1]
  %v300 = vlaneseq
  %v301 = vshrl.u32 %v300, 7
  %v302 = vsub.s32 0, %v301
  %v303 = vrot.slane %v298, %v302
  %v369 = vunpack.c.l.b16 %v234
  %v370 = vunpack.c.l.b16 %v235
  %v371 = vunpack.c.l.b16 %v236
  %v372 = vunpack.c.l.b16 %v237
  %v373 = vunpack.c.l.b16 %v238
  %v374 = vunpack.c.l.b16 %v239
  %v375 = vunpack.c.l.b16 %v240
  %v376 = vunpack.c.l.b16 %v241
  %v377 = vunpack.c.l.b16 %v242
  %v378 = vunpack.c.l.b16 %v243
  %v379 = vunpack.c.l.b16 %v244
  %v380 = vunpack.c.l.b16 %v245
  %v381 = vunpack.c.l.b16 %v246
  %v382 = vunpack.c.l.b16 %v247
  %v383 = vunpack.c.l.b16 %v248
  %v384 = vunpack.c.l.b16 %v249
  %v385 = vunpack.c.l.b16 %v250
  %v386 = vunpack.c.l.b16 %v251
  %v387 = vunpack.c.l.b16 %v252
  %v388 = vunpack.c.l.b16 %v253
  %v389 = vunpack.c.l.b16 %v254
  %v390 = vunpack.c.l.b16 %v255
  %v391 = vunpack.c.l.b16 %v256
  %v392 = vunpack.c.l.b16 %v257
  %v393 = vunpack.c.l.b16 %v258
  %v394 = vunpack.c.l.b16 %v259
  %v395 = vunpack.c.l.b16 %v260
  %v396 = vunpack.c.l.b16 %v261
  %v397 = vunpack.c.l.b16 %v262
  %v398 = vunpack.c.l.b16 %v263
  %v399 = vunpack.c.l.b16 %v264
  %v400 = vunpack.c.l.b16 %v265
  %v401 = vunpack.c.l.b16 %v266
  %v402 = vunpack.c.l.b16 %v267
  %v403 = vunpack.c.l.b16 %v268
  %v404 = vunpack.c.l.b16 %v269
  %v405 = vunpack.c.l.b16 %v270
  %v406 = vunpack.c.l.b16 %v271
  %v407 = vunpack.c.l.b16 %v272
  %v408 = vunpack.c.l.b16 %v273
  %v409 = vunpack.c.l.b16 %v274
  %v410 = vunpack.c.l.b16 %v275
  %v411 = vunpack.c.l.b16 %v276
  %v412 = vunpack.c.l.b16 %v277
  %v413 = vunpack.c.l.b16 %v278
  %v414 = vunpack.c.l.b16 %v279
  %v415 = vunpack.c.l.b16 %v280
  %v416 = vunpack.c.l.b16 %v281
  %v417 = vunpack.c.l.b16 %v282
  %v418 = vunpack.c.l.b16 %v283
  %v419 = vunpack.c.l.b16 %v284
  %v420 = vunpack.c.l.b16 %v285
  %v421 = vunpack.c.l.b16 %v286
  %v422 = vunpack.c.l.b16 %v287
  %v423 = vunpack.c.l.b16 %v288
  %v424 = vunpack.c.l.b16 %v289
  %v425 = vunpack.c.l.b16 %v290
  %v426 = vunpack.c.l.b16 %v291
  %v427 = vunpack.c.l.b16 %v292
  %v428 = vunpack.c.l.b16 %v293
  %v429 = vunpack.c.l.b16 %v294
  %v430 = vunpack.c.l.b16 %v295
  %v431 = vunpack.c.l.b16 %v296
  %v432 = vunpack.c.l.b16 %v297
  %v433 = vpack.c.b16 %v370, %v369
  %v434 = vpack.c.b16 %v372, %v371
  %v435 = vpack.c.b16 %v374, %v373
  %v436 = vpack.c.b16 %v376, %v375
  %v437 = vpack.c.b16 %v378, %v377
  %v438 = vpack.c.b16 %v380, %v379
  %v439 = vpack.c.b16 %v382, %v381
  %v440 = vpack.c.b16 %v384, %v383
  %v441 = vpack.c.b16 %v386, %v385
  %v442 = vpack.c.b16 %v388, %v387
  %v443 = vpack.c.b16 %v390, %v389
  %v444 = vpack.c.b16 %v392, %v391
  %v445 = vpack.c.b16 %v394, %v393
  %v446 = vpack.c.b16 %v396, %v395
  %v447 = vpack.c.b16 %v398, %v397
  %v448 = vpack.c.b16 %v400, %v399
  %v449 = vpack.c.b16 %v402, %v401
  %v450 = vpack.c.b16 %v404, %v403
  %v451 = vpack.c.b16 %v406, %v405
  %v452 = vpack.c.b16 %v408, %v407
  %v453 = vpack.c.b16 %v410, %v409
  %v454 = vpack.c.b16 %v412, %v411
  %v455 = vpack.c.b16 %v414, %v413
  %v456 = vpack.c.b16 %v416, %v415
  %v457 = vpack.c.b16 %v418, %v417
  %v458 = vpack.c.b16 %v420, %v419
  %v459 = vpack.c.b16 %v422, %v421
  %v460 = vpack.c.b16 %v424, %v423
  %v461 = vpack.c.b16 %v426, %v425
  %v462 = vpack.c.b16 %v428, %v427
  %v463 = vpack.c.b16 %v430, %v429
  %v464 = vpack.c.b16 %v432, %v431
  %497 = vmatprep.subr.bf16.mxu0 0
  %498 = vmatpush1.bf16.msra.mxu0 %v433
  %499 = vmatprep.subr.bf16.mxu0 0
  %500 = vmatpush1.bf16.msra.mxu0 %v434
  %501 = vmatprep.subr.bf16.mxu0 0
  %502 = vmatpush1.bf16.msra.mxu0 %v435
  %503 = vmatprep.subr.bf16.mxu0 0
  %504 = vmatpush1.bf16.msra.mxu0 %v436
  %505 = vmatprep.subr.bf16.mxu0 0
  %506 = vmatpush1.bf16.msra.mxu0 %v437
  %507 = vmatprep.subr.bf16.mxu0 0
  %508 = vmatpush1.bf16.msra.mxu0 %v438
  %509 = vmatprep.subr.bf16.mxu0 0
  %510 = vmatpush1.bf16.msra.mxu0 %v439
  %511 = vmatprep.subr.bf16.mxu0 0
  %512 = vmatpush1.bf16.msra.mxu0 %v440
  %513 = vmatprep.subr.bf16.mxu0 0
  %514 = vmatpush1.bf16.msra.mxu0 %v441
  %515 = vmatprep.subr.bf16.mxu0 0
  %516 = vmatpush1.bf16.msra.mxu0 %v442
  %517 = vmatprep.subr.bf16.mxu0 0
  %518 = vmatpush1.bf16.msra.mxu0 %v443
  %519 = vmatprep.subr.bf16.mxu0 0
  %520 = vmatpush1.bf16.msra.mxu0 %v444
  %521 = vmatprep.subr.bf16.mxu0 0
  %522 = vmatpush1.bf16.msra.mxu0 %v445
  %523 = vmatprep.subr.bf16.mxu0 0
  %524 = vmatpush1.bf16.msra.mxu0 %v446
  %525 = vmatprep.subr.bf16.mxu0 0
  %526 = vmatpush1.bf16.msra.mxu0 %v447
  %527 = vmatprep.subr.bf16.mxu0 0
  %528 = vmatpush1.bf16.msra.mxu0 %v448
  %529 = vmatprep.mubr.bf16.mxu0 %v231
  %530 = vmatmul.mubr.bf16.gmra.mrb[0].mxu0 %v230
  %v531 = vpop.f32.mrb[0].mxu0
  %v532 = vadd.f32 %v303, %v531
  %v533 = vpop.f32.mrb[0].mxu0
  %v534 = vpop.f32.mrb[0].mxu0
  %v535 = vpop.f32.mrb[0].mxu0
  %536 = vdwg.mxu0
  %537 = vmatprep.subr.bf16.mxu0 0
  %538 = vmatpush1.bf16.msra.mxu0 %v449
  %539 = vmatprep.subr.bf16.mxu0 0
  %540 = vmatpush1.bf16.msra.mxu0 %v450
  %541 = vmatprep.subr.bf16.mxu0 0
  %542 = vmatpush1.bf16.msra.mxu0 %v451
  %543 = vmatprep.subr.bf16.mxu0 0
  %544 = vmatpush1.bf16.msra.mxu0 %v452
  %545 = vmatprep.subr.bf16.mxu0 0
  %546 = vmatpush1.bf16.msra.mxu0 %v453
  %547 = vmatprep.subr.bf16.mxu0 0
  %548 = vmatpush1.bf16.msra.mxu0 %v454
  %549 = vmatprep.subr.bf16.mxu0 0
  %550 = vmatpush1.bf16.msra.mxu0 %v455
  %551 = vmatprep.subr.bf16.mxu0 0
  %552 = vmatpush1.bf16.msra.mxu0 %v456
  %553 = vmatprep.subr.bf16.mxu0 0
  %554 = vmatpush1.bf16.msra.mxu0 %v457
  %555 = vmatprep.subr.bf16.mxu0 0
  %556 = vmatpush1.bf16.msra.mxu0 %v458
  %557 = vmatprep.subr.bf16.mxu0 0
  %558 = vmatpush1.bf16.msra.mxu0 %v459
  %559 = vmatprep.subr.bf16.mxu0 0
  %560 = vmatpush1.bf16.msra.mxu0 %v460
  %561 = vmatprep.subr.bf16.mxu0 0
  %562 = vmatpush1.bf16.msra.mxu0 %v461
  %563 = vmatprep.subr.bf16.mxu0 0
  %564 = vmatpush1.bf16.msra.mxu0 %v462
  %565 = vmatprep.subr.bf16.mxu0 0
  %566 = vmatpush1.bf16.msra.mxu0 %v463
  %567 = vmatprep.subr.bf16.mxu0 0
  %568 = vmatpush1.bf16.msra.mxu0 %v464
  %569 = vmatprep.mubr.bf16.mxu0 %v233
  %570 = vmatmul.mubr.bf16.gmra.mrb[0].mxu0 %v232
  %v571 = vpop.f32.mrb[0].mxu0
  %v572 = vadd.f32 %v532, %v571
  %v573 = vpop.f32.mrb[0].mxu0
  %v574 = vpop.f32.mrb[0].mxu0
  %v575 = vpop.f32.mrb[0].mxu0
  %576 = vdwg.mxu0
  %577 = vst [vmem:[%s5] sm:$0xff] %v572
  // Predicated region
  $region22: #{network_forward.7} parent=0 // pred_check
    _
  $region23: #{network_forward.7} parent=0 // pred_check_branch
    %579 = sbr.rel (0) target = $region25
  $region24: #{network_forward.7} parent=0 // pred_region
    _
  $region25: #{network_forward.7} parent=0 // pred_fallthru
    _
  // Predicated region
  $region26: #{network_forward.7} parent=0 // pred_check
    _
  $region27: #{network_forward.7} parent=0 // pred_check_branch
    %581 = sbr.rel (0) target = $region29
  $region28: #{network_forward.7} parent=0 // pred_region
    _
  $region29: #{network_forward.7} parent=0 // pred_fallthru
    _

</llo_original>
